<compile_context>
chip_gen: v7x
topology: tpu7x:2x2x1
jax: 0.10.0
libtpu: 0.0.40
codegen_flags: <defaults>
</compile_context>

<pallas_src>
import functools

import jax
import jax.numpy as jnp
from jax import lax
from jax.experimental import pallas as pl
from jax.experimental.pallas import tpu as pltpu

BN_EPS = 1e-5
_PREC = lax.Precision.HIGHEST   # only used for the tiny wrapper-side BN stats
                                # and the pure-JAX reference, never in the kernel.


def _round_up(v, mult):
    return (v + mult - 1) // mult * mult


def _residual_block_kernel(ph_ref, w1_ref, w2_ref, wsc_ref, scale_ref, bias_ref,
                           out_ref, ypad_ref, *, stride, hout, wout, cin_p, cout_p):
    """One batch image per grid step; everything below runs out of VMEM."""
    s = stride
    m = hout * wout

    # The s*s phase planes of the zero-padded input for this image (f32).
    planes = [ph_ref[p] for p in range(s * s)]

    # ---- conv1: 3x3 / stride-s as ONE MXU matmul with K = 9*cin_p ----------
    # tap (dy, dx) with stride s == contiguous slice of phase (dy%s, dx%s).
    taps = []
    for dy in range(3):
        for dx in range(3):
            py, qy = dy % s, dy // s
            px, qx = dx % s, dx // s
            taps.append(planes[py * s + px][qy:qy + hout, qx:qx + wout, :])
    patches = jnp.concatenate(taps, axis=-1).reshape(m, 9 * cin_p)
    y1 = jnp.dot(patches.astype(jnp.bfloat16), w1_ref[...],
                 preferred_element_type=jnp.float32)
    y1 = jnp.maximum(y1, 0.0)                                    # ReLU (f32)

    # ---- shortcut: 1x1 conv of the centre tap (identity -> identity matrix),
    # then the folded training-mode BatchNorm affine (f32 scale/bias). --------
    x_c = taps[4].reshape(m, cin_p)                 # == x at the output grid
    sc = jnp.dot(x_c.astype(jnp.bfloat16), wsc_ref[...],
                 preferred_element_type=jnp.float32)
    sc = sc * scale_ref[...] + bias_ref[...]

    # ---- conv2: 3x3 / stride-1 as ONE MXU matmul with K = 9*cout_p ----------
    # Zero only the 1-pixel border of the padding scratch, then write interior.
    ypad_ref[0:1, :, :] = jnp.zeros((1, wout + 2, cout_p), jnp.float32)
    ypad_ref[hout + 1:hout + 2, :, :] = jnp.zeros((1, wout + 2, cout_p), jnp.float32)
    ypad_ref[:, 0:1, :] = jnp.zeros((hout + 2, 1, cout_p), jnp.float32)
    ypad_ref[:, wout + 1:wout + 2, :] = jnp.zeros((hout + 2, 1, cout_p), jnp.float32)
    ypad_ref[1:hout + 1, 1:wout + 1, :] = y1.reshape(hout, wout, cout_p)

    taps2 = [ypad_ref[dy:dy + hout, dx:dx + wout, :]
             for dy in range(3) for dx in range(3)]
    patches2 = jnp.concatenate(taps2, axis=-1).reshape(m, 9 * cout_p)
    y2 = jnp.dot(patches2.astype(jnp.bfloat16), w2_ref[...],
                 preferred_element_type=jnp.float32)

    out_ref[...] = jnp.maximum(y2 + sc, 0.0).reshape(1, hout, wout, cout_p)


def residual_block_pallas(x_nchw, w1_oihw, w2_oihw, wsc_oihw=None,
                          gamma=None, beta=None, stride=1):
    n, cin, h, w = x_nchw.shape
    cout = w1_oihw.shape[0]
    use_proj = (stride != 1) or (cin != cout)
    s = stride
    hout = (h + 2 - 3) // s + 1
    wout = (w + 2 - 3) // s + 1
    cin_p = _round_up(cin, 128)      # lane-dense K pieces / aligned concats
    cout_p = _round_up(cout, 128)    # lane-dense matmul N-dim and stores

    x = jnp.transpose(x_nchw, (0, 2, 3, 1)).astype(jnp.float32)        # NHWC

    # ---- shortcut weight + folded training-mode BatchNorm --------------------
    # sc = BN(conv1x1(x_strided)) = (x_strided @ W) * scale + bias, where the
    # batch statistics of the 1x1-conv output are computed analytically from
    # the first / second moments of the strided input (so no cross-tile
    # reduction is needed inside the gridded kernel).
    if use_proj:
        wsc2d = jnp.transpose(wsc_oihw[:, :, 0, 0], (1, 0)).astype(jnp.float32)
        xs = x[:, ::s, ::s, :].reshape(-1, cin)
        m_tot = xs.shape[0]
        mean_x = jnp.mean(xs, axis=0)                                   # (cin,)
        second = jnp.dot(xs.T, xs, precision=_PREC) / m_tot             # (cin,cin)
        mean_sc = jnp.dot(mean_x, wsc2d, precision=_PREC)               # (cout,)
        ex2 = jnp.sum(wsc2d * jnp.dot(second, wsc2d, precision=_PREC), axis=0)
        var_sc = ex2 - mean_sc ** 2          # biased, as in BN training mode
        scale = gamma.astype(jnp.float32) / jnp.sqrt(var_sc + BN_EPS)
        bias = beta.astype(jnp.float32) - mean_sc * scale
        # TODO(synk): running_mean/running_var buffer updates (training-time
        # side effect) are not reproduced; they do not affect the forward pass.
    else:
        wsc2d = jnp.eye(cin, dtype=jnp.float32)        # identity shortcut
        scale = jnp.ones((cout,), jnp.float32)
        bias = jnp.zeros((cout,), jnp.float32)
    wsck = (jnp.zeros((cin_p, cout_p), jnp.float32)
            .at[:cin, :cout].set(wsc2d).astype(jnp.bfloat16))
    scale = jnp.pad(scale, (0, cout_p - cout)).reshape(1, cout_p)
    bias = jnp.pad(bias, (0, cout_p - cout)).reshape(1, cout_p)

    # ---- phase-decomposed, zero-padded input (no 9x im2col duplication) ------
    xc = jnp.pad(x, ((0, 0), (0, 0), (0, 0), (0, cin_p - cin)))
    xp = jnp.pad(xc, ((0, 0), (1, 1), (1, 1), (0, 0)))                  # +1 halo
    qmax = 2 // s
    ph_h, ph_w = hout + qmax, wout + qmax
    planes = []
    for py in range(s):
        for px in range(s):
            plane = xp[:, py::s, px::s, :]
            pad_h = max(ph_h - plane.shape[1], 0)
            pad_w = max(ph_w - plane.shape[2], 0)
            plane = jnp.pad(plane, ((0, 0), (0, pad_h), (0, pad_w), (0, 0)))
            planes.append(plane[:, :ph_h, :ph_w, :])
    phases = jnp.stack(planes, axis=1).reshape(n * s * s, ph_h, ph_w, cin_p)

    # ---- conv weights: OIHW -> (9*C_in, C_out), taps contiguous along K ------
    w1t = jnp.transpose(w1_oihw, (2, 3, 1, 0)).astype(jnp.float32)      # (3,3,cin,cout)
    w1k = (jnp.zeros((3, 3, cin_p, cout_p), jnp.float32)
           .at[:, :, :cin, :cout].set(w1t)
           .reshape(9 * cin_p, cout_p).astype(jnp.bfloat16))
    w2t = jnp.transpose(w2_oihw, (2, 3, 1, 0)).astype(jnp.float32)      # (3,3,cout,cout)
    w2k = (jnp.zeros((3, 3, cout_p, cout_p), jnp.float32)
           .at[:, :, :cout, :cout].set(w2t)
           .reshape(9 * cout_p, cout_p).astype(jnp.bfloat16))

    kernel = functools.partial(_residual_block_kernel, stride=s, hout=hout,
                               wout=wout, cin_p=cin_p, cout_p=cout_p)

    out_padded = pl.pallas_call(
        kernel,
        out_shape=jax.ShapeDtypeStruct((n, hout, wout, cout_p), jnp.float32),
        grid_spec=pltpu.PrefetchScalarGridSpec(
            num_scalar_prefetch=0,
            grid=(n,),                                   # one image per step
            in_specs=[
                pl.BlockSpec((s * s, ph_h, ph_w, cin_p), lambda i: (i, 0, 0, 0)),
                pl.BlockSpec((9 * cin_p, cout_p), lambda i: (0, 0)),
                pl.BlockSpec((9 * cout_p, cout_p), lambda i: (0, 0)),
                pl.BlockSpec((cin_p, cout_p), lambda i: (0, 0)),
                pl.BlockSpec((1, cout_p), lambda i: (0, 0)),
                pl.BlockSpec((1, cout_p), lambda i: (0, 0)),
            ],
            out_specs=pl.BlockSpec((1, hout, wout, cout_p), lambda i: (i, 0, 0, 0)),
            scratch_shapes=[pltpu.VMEM((hout + 2, wout + 2, cout_p), jnp.float32)],
        ),
        compiler_params=pltpu.CompilerParams(
            dimension_semantics=("parallel",),           # megacore on v7x
            vmem_limit_bytes=32 * 1024 * 1024,
        ),
    )(phases, w1k, w2k, wsck, scale, bias)

    out = out_padded[..., :cout]                         # drop lane padding
    return jnp.transpose(out, (0, 3, 1, 2))              # back to NCHW


def residual_block_ref(x, w1, w2, wsc, gamma, beta, stride):
    """Pure-JAX reference matching the PyTorch module (training-mode BN)."""
    dn = ("NCHW", "OIHW", "NCHW")
    cin, cout = x.shape[1], w1.shape[0]
    use_proj = (stride != 1) or (cin != cout)
    y = lax.conv_general_dilated(x, w1, (stride, stride), ((1, 1), (1, 1)),
                                 dimension_numbers=dn, precision=_PREC)
    y = jnp.maximum(y, 0.0)
    y = lax.conv_general_dilated(y, w2, (1, 1), ((1, 1), (1, 1)),
                                 dimension_numbers=dn, precision=_PREC)
    if use_proj:
        sc = lax.conv_general_dilated(x, wsc, (stride, stride), ((0, 0), (0, 0)),
                                      dimension_numbers=dn, precision=_PREC)
        mean = sc.mean(axis=(0, 2, 3), keepdims=True)
        var = ((sc - mean) ** 2).mean(axis=(0, 2, 3), keepdims=True)
        sc = ((sc - mean) / jnp.sqrt(var + BN_EPS)
              * gamma.reshape(1, -1, 1, 1) + beta.reshape(1, -1, 1, 1))
    else:
        sc = x
    return jnp.maximum(y + sc, 0.0)


if __name__ == "__main__":
    key = jax.random.PRNGKey(0)
    k_x, k1, k2, k3, k4, k5 = jax.random.split(key, 6)

    N, Cin, H, W = 2, 4, 16, 16
    x = jax.random.normal(k_x, (N, Cin, H, W), jnp.float32)

    # ---- Case 1: stride=1, in==out -> identity shortcut ----------------------
    Cout = 4
    w1 = jax.random.normal(k1, (Cout, Cin, 3, 3), jnp.float32) / jnp.sqrt(9.0 * Cin)
    w2 = jax.random.normal(k2, (Cout, Cout, 3, 3), jnp.float32) / jnp.sqrt(9.0 * Cout)
    out1 = residual_block_pallas(x, w1, w2, stride=1)
    jax.block_until_ready(out1)
    ref1 = residual_block_ref(x, w1, w2, None, None, None, 1)
    assert out1.shape == (N, Cout, H, W)
    err1 = float(jnp.max(jnp.abs(out1 - ref1)))
    assert jnp.allclose(out1, ref1, atol=3e-2, rtol=3e-2), err1

    # ---- Case 2: stride=2, in!=out -> 1x1 conv + BatchNorm projection --------
    Cout2, stride2 = 8, 2
    w1b = jax.random.normal(k3, (Cout2, Cin, 3, 3), jnp.float32) / jnp.sqrt(9.0 * Cin)
    w2b = jax.random.normal(k4, (Cout2, Cout2, 3, 3), jnp.float32) / jnp.sqrt(9.0 * Cout2)
    wsc = jax.random.normal(k5, (Cout2, Cin, 1, 1), jnp.float32) / jnp.sqrt(1.0 * Cin)
    gamma = jnp.ones((Cout2,), jnp.float32)   # BatchNorm2d default init
    beta = jnp.zeros((Cout2,), jnp.float32)
    out2 = residual_block_pallas(x, w1b, w2b, wsc, gamma, beta, stride=stride2)
    jax.block_until_ready(out2)
    ref2 = residual_block_ref(x, w1b, w2b, wsc, gamma, beta, stride2)
    assert out2.shape == (N, Cout2, H // 2, W // 2)
    err2 = float(jnp.max(jnp.abs(out2 - ref2)))
    assert jnp.allclose(out2, ref2, atol=3e-2, rtol=3e-2), err2

    print("KERNEL_OK")
</pallas_src>

<mosaic_0001>
module attributes {stable_mosaic.version = 11 : i64} {
  func.func @_residual_block_kernel(%arg0: i32, %arg1: memref<1x18x18x128xf32, #tpu.memory_space<vmem>>, %arg2: memref<1152x128xbf16, #tpu.memory_space<vmem>>, %arg3: memref<1152x128xbf16, #tpu.memory_space<vmem>>, %arg4: memref<128x128xbf16, #tpu.memory_space<vmem>>, %arg5: memref<1x128xf32, #tpu.memory_space<vmem>>, %arg6: memref<1x128xf32, #tpu.memory_space<vmem>>, %arg7: memref<1x16x16x128xf32, #tpu.memory_space<vmem>>, %arg8: memref<18x18x128xf32, #tpu.memory_space<vmem>>) attributes {dimension_semantics = [#tpu.dimension_semantics<parallel>], iteration_bounds = array<i64: 2>, scalar_prefetch = 0 : i64, scratch_operands = 1 : i64, tpu.core_type = #tpu.core_type<tc>, window_params = [{transform_indices = @transform_0, window_bounds = array<i64: 1, 18, 18, 128>}, {pipeline_mode = #tpu.pipeline_mode<synchronous>, transform_indices = @transform_1, window_bounds = array<i64: 1152, 128>}, {pipeline_mode = #tpu.pipeline_mode<synchronous>, transform_indices = @transform_2, window_bounds = array<i64: 1152, 128>}, {pipeline_mode = #tpu.pipeline_mode<synchronous>, transform_indices = @transform_3, window_bounds = array<i64: 128, 128>}, {pipeline_mode = #tpu.pipeline_mode<synchronous>, transform_indices = @transform_4, window_bounds = array<i64: 1, 128>}, {pipeline_mode = #tpu.pipeline_mode<synchronous>, transform_indices = @transform_5, window_bounds = array<i64: 1, 128>}, {transform_indices = @transform_6, window_bounds = array<i64: 1, 16, 16, 128>}]} {
    %c0 = arith.constant 0 : index
    %c0_0 = arith.constant 0 : index
    %c0_1 = arith.constant 0 : index
    %c0_2 = arith.constant 0 : index
    %0 = vector.load %arg1[%c0, %c0_0, %c0_1, %c0_2] : memref<1x18x18x128xf32, #tpu.memory_space<vmem>>, vector<1x18x18x128xf32>
    %1 = vector.shape_cast %0 : vector<1x18x18x128xf32> to vector<18x18x128xf32>
    %2 = vector.extract_strided_slice %1 {offsets = [0, 0, 0], sizes = [16, 16, 128], strides = [1, 1, 1]} : vector<18x18x128xf32> to vector<16x16x128xf32>
    %3 = vector.extract_strided_slice %1 {offsets = [0, 1, 0], sizes = [16, 16, 128], strides = [1, 1, 1]} : vector<18x18x128xf32> to vector<16x16x128xf32>
    %4 = vector.extract_strided_slice %1 {offsets = [0, 2, 0], sizes = [16, 16, 128], strides = [1, 1, 1]} : vector<18x18x128xf32> to vector<16x16x128xf32>
    %5 = vector.extract_strided_slice %1 {offsets = [1, 0, 0], sizes = [16, 16, 128], strides = [1, 1, 1]} : vector<18x18x128xf32> to vector<16x16x128xf32>
    %6 = vector.extract_strided_slice %1 {offsets = [1, 1, 0], sizes = [16, 16, 128], strides = [1, 1, 1]} : vector<18x18x128xf32> to vector<16x16x128xf32>
    %7 = vector.extract_strided_slice %1 {offsets = [1, 2, 0], sizes = [16, 16, 128], strides = [1, 1, 1]} : vector<18x18x128xf32> to vector<16x16x128xf32>
    %8 = vector.extract_strided_slice %1 {offsets = [2, 0, 0], sizes = [16, 16, 128], strides = [1, 1, 1]} : vector<18x18x128xf32> to vector<16x16x128xf32>
    %9 = vector.extract_strided_slice %1 {offsets = [2, 1, 0], sizes = [16, 16, 128], strides = [1, 1, 1]} : vector<18x18x128xf32> to vector<16x16x128xf32>
    %10 = vector.extract_strided_slice %1 {offsets = [2, 2, 0], sizes = [16, 16, 128], strides = [1, 1, 1]} : vector<18x18x128xf32> to vector<16x16x128xf32>
    %11 = tpu.concatenate %2, %3, %4, %5, %6, %7, %8, %9, %10 in 2 : vector<16x16x128xf32>, vector<16x16x128xf32>, vector<16x16x128xf32>, vector<16x16x128xf32>, vector<16x16x128xf32>, vector<16x16x128xf32>, vector<16x16x128xf32>, vector<16x16x128xf32>, vector<16x16x128xf32> -> vector<16x16x1152xf32>
    %12 = vector.shape_cast %11 : vector<16x16x1152xf32> to vector<256x1152xf32>
    %13 = arith.truncf %12 : vector<256x1152xf32> to vector<256x1152xbf16>
    %c0_3 = arith.constant 0 : index
    %c0_4 = arith.constant 0 : index
    %14 = vector.load %arg2[%c0_3, %c0_4] : memref<1152x128xbf16, #tpu.memory_space<vmem>>, vector<1152x128xbf16>
    %cst = arith.constant dense<0.000000e+00> : vector<256x128xf32>
    %15 = tpu.matmul %13, %14, %cst {dimension_numbers = #tpu.dot_dimension_numbers<[1], [0], [0], [1], [0, 0, 1, 1], [], []>} : vector<256x1152xbf16>, vector<1152x128xbf16>, vector<256x128xf32> -> vector<256x128xf32>
    %cst_5 = arith.constant 0.000000e+00 : f32
    %16 = vector.broadcast %cst_5 : f32 to vector<256x128xf32>
    %17 = arith.maximumf %15, %16 : vector<256x128xf32>
    %18 = vector.shape_cast %6 : vector<16x16x128xf32> to vector<256x128xf32>
    %19 = arith.truncf %18 : vector<256x128xf32> to vector<256x128xbf16>
    %c0_6 = arith.constant 0 : index
    %c0_7 = arith.constant 0 : index
    %20 = vector.load %arg4[%c0_6, %c0_7] : memref<128x128xbf16, #tpu.memory_space<vmem>>, vector<128x128xbf16>
    %cst_8 = arith.constant dense<0.000000e+00> : vector<256x128xf32>
    %21 = tpu.matmul %19, %20, %cst_8 {dimension_numbers = #tpu.dot_dimension_numbers<[1], [0], [0], [1], [0, 0, 1, 1], [], []>} : vector<256x128xbf16>, vector<128x128xbf16>, vector<256x128xf32> -> vector<256x128xf32>
    %c0_9 = arith.constant 0 : index
    %c0_10 = arith.constant 0 : index
    %22 = vector.load %arg5[%c0_9, %c0_10] : memref<1x128xf32, #tpu.memory_space<vmem>>, vector<1x128xf32>
    %23 = vector.broadcast %22 : vector<1x128xf32> to vector<256x128xf32>
    %24 = arith.mulf %21, %23 : vector<256x128xf32>
    %c0_11 = arith.constant 0 : index
    %c0_12 = arith.constant 0 : index
    %25 = vector.load %arg6[%c0_11, %c0_12] : memref<1x128xf32, #tpu.memory_space<vmem>>, vector<1x128xf32>
    %26 = vector.broadcast %25 : vector<1x128xf32> to vector<256x128xf32>
    %27 = arith.addf %24, %26 : vector<256x128xf32>
    %cst_13 = arith.constant 0.000000e+00 : f32
    %28 = vector.broadcast %cst_13 : f32 to vector<1x18x128xf32>
    %c0_14 = arith.constant 0 : index
    %c0_15 = arith.constant 0 : index
    %c0_16 = arith.constant 0 : index
    %29 = vector.load %arg8[%c0_14, %c0_15, %c0_16] : memref<18x18x128xf32, #tpu.memory_space<vmem>>, vector<1x18x128xf32>
    tpu.vector_store %arg8[%c0_14, %c0_15, %c0_16], %28 {strides = array<i32>} : memref<18x18x128xf32, #tpu.memory_space<vmem>>, vector<1x18x128xf32>,
    %cst_17 = arith.constant 0.000000e+00 : f32
    %30 = vector.broadcast %cst_17 : f32 to vector<1x18x128xf32>
    %c17 = arith.constant 17 : index
    %c0_18 = arith.constant 0 : index
    %c0_19 = arith.constant 0 : index
    %31 = vector.load %arg8[%c17, %c0_18, %c0_19] : memref<18x18x128xf32, #tpu.memory_space<vmem>>, vector<1x18x128xf32>
    tpu.vector_store %arg8[%c17, %c0_18, %c0_19], %30 {strides = array<i32>} : memref<18x18x128xf32, #tpu.memory_space<vmem>>, vector<1x18x128xf32>,
    %cst_20 = arith.constant 0.000000e+00 : f32
    %32 = vector.broadcast %cst_20 : f32 to vector<18x1x128xf32>
    %c0_21 = arith.constant 0 : index
    %c0_22 = arith.constant 0 : index
    %c0_23 = arith.constant 0 : index
    %33 = vector.load %arg8[%c0_21, %c0_22, %c0_23] : memref<18x18x128xf32, #tpu.memory_space<vmem>>, vector<18x1x128xf32>
    tpu.vector_store %arg8[%c0_21, %c0_22, %c0_23], %32 {strides = array<i32>} : memref<18x18x128xf32, #tpu.memory_space<vmem>>, vector<18x1x128xf32>,
    %cst_24 = arith.constant 0.000000e+00 : f32
    %34 = vector.broadcast %cst_24 : f32 to vector<18x1x128xf32>
    %c0_25 = arith.constant 0 : index
    %c17_26 = arith.constant 17 : index
    %c0_27 = arith.constant 0 : index
    %35 = vector.load %arg8[%c0_25, %c17_26, %c0_27] : memref<18x18x128xf32, #tpu.memory_space<vmem>>, vector<18x1x128xf32>
    tpu.vector_store %arg8[%c0_25, %c17_26, %c0_27], %34 {strides = array<i32>} : memref<18x18x128xf32, #tpu.memory_space<vmem>>, vector<18x1x128xf32>,
    %36 = vector.shape_cast %17 : vector<256x128xf32> to vector<16x16x128xf32>
    %c1 = arith.constant 1 : index
    %c1_28 = arith.constant 1 : index
    %c0_29 = arith.constant 0 : index
    %37 = vector.load %arg8[%c1, %c1_28, %c0_29] : memref<18x18x128xf32, #tpu.memory_space<vmem>>, vector<16x16x128xf32>
    tpu.vector_store %arg8[%c1, %c1_28, %c0_29], %36 {strides = array<i32>} : memref<18x18x128xf32, #tpu.memory_space<vmem>>, vector<16x16x128xf32>,
    %c0_30 = arith.constant 0 : index
    %c0_31 = arith.constant 0 : index
    %c0_32 = arith.constant 0 : index
    %38 = vector.load %arg8[%c0_30, %c0_31, %c0_32] : memref<18x18x128xf32, #tpu.memory_space<vmem>>, vector<16x16x128xf32>
    %c0_33 = arith.constant 0 : index
    %c1_34 = arith.constant 1 : index
    %c0_35 = arith.constant 0 : index
    %39 = vector.load %arg8[%c0_33, %c1_34, %c0_35] : memref<18x18x128xf32, #tpu.memory_space<vmem>>, vector<16x16x128xf32>
    %c0_36 = arith.constant 0 : index
    %c2 = arith.constant 2 : index
    %c0_37 = arith.constant 0 : index
    %40 = vector.load %arg8[%c0_36, %c2, %c0_37] : memref<18x18x128xf32, #tpu.memory_space<vmem>>, vector<16x16x128xf32>
    %c1_38 = arith.constant 1 : index
    %c0_39 = arith.constant 0 : index
    %c0_40 = arith.constant 0 : index
    %41 = vector.load %arg8[%c1_38, %c0_39, %c0_40] : memref<18x18x128xf32, #tpu.memory_space<vmem>>, vector<16x16x128xf32>
    %c1_41 = arith.constant 1 : index
    %c1_42 = arith.constant 1 : index
    %c0_43 = arith.constant 0 : index
    %42 = vector.load %arg8[%c1_41, %c1_42, %c0_43] : memref<18x18x128xf32, #tpu.memory_space<vmem>>, vector<16x16x128xf32>
    %c1_44 = arith.constant 1 : index
    %c2_45 = arith.constant 2 : index
    %c0_46 = arith.constant 0 : index
    %43 = vector.load %arg8[%c1_44, %c2_45, %c0_46] : memref<18x18x128xf32, #tpu.memory_space<vmem>>, vector<16x16x128xf32>
    %c2_47 = arith.constant 2 : index
    %c0_48 = arith.constant 0 : index
    %c0_49 = arith.constant 0 : index
    %44 = vector.load %arg8[%c2_47, %c0_48, %c0_49] : memref<18x18x128xf32, #tpu.memory_space<vmem>>, vector<16x16x128xf32>
    %c2_50 = arith.constant 2 : index
    %c1_51 = arith.constant 1 : index
    %c0_52 = arith.constant 0 : index
    %45 = vector.load %arg8[%c2_50, %c1_51, %c0_52] : memref<18x18x128xf32, #tpu.memory_space<vmem>>, vector<16x16x128xf32>
    %c2_53 = arith.constant 2 : index
    %c2_54 = arith.constant 2 : index
    %c0_55 = arith.constant 0 : index
    %46 = vector.load %arg8[%c2_53, %c2_54, %c0_55] : memref<18x18x128xf32, #tpu.memory_space<vmem>>, vector<16x16x128xf32>
    %47 = tpu.concatenate %38, %39, %40, %41, %42, %43, %44, %45, %46 in 2 : vector<16x16x128xf32>, vector<16x16x128xf32>, vector<16x16x128xf32>, vector<16x16x128xf32>, vector<16x16x128xf32>, vector<16x16x128xf32>, vector<16x16x128xf32>, vector<16x16x128xf32>, vector<16x16x128xf32> -> vector<16x16x1152xf32>
    %48 = vector.shape_cast %47 : vector<16x16x1152xf32> to vector<256x1152xf32>
    %49 = arith.truncf %48 : vector<256x1152xf32> to vector<256x1152xbf16>
    %c0_56 = arith.constant 0 : index
    %c0_57 = arith.constant 0 : index
    %50 = vector.load %arg3[%c0_56, %c0_57] : memref<1152x128xbf16, #tpu.memory_space<vmem>>, vector<1152x128xbf16>
    %cst_58 = arith.constant dense<0.000000e+00> : vector<256x128xf32>
    %51 = tpu.matmul %49, %50, %cst_58 {dimension_numbers = #tpu.dot_dimension_numbers<[1], [0], [0], [1], [0, 0, 1, 1], [], []>} : vector<256x1152xbf16>, vector<1152x128xbf16>, vector<256x128xf32> -> vector<256x128xf32>
    %52 = arith.addf %51, %27 : vector<256x128xf32>
    %cst_59 = arith.constant 0.000000e+00 : f32
    %53 = vector.broadcast %cst_59 : f32 to vector<256x128xf32>
    %54 = arith.maximumf %52, %53 : vector<256x128xf32>
    %55 = vector.shape_cast %54 : vector<256x128xf32> to vector<1x16x16x128xf32>
    %c0_60 = arith.constant 0 : index
    %c0_61 = arith.constant 0 : index
    %c0_62 = arith.constant 0 : index
    %c0_63 = arith.constant 0 : index
    %56 = vector.load %arg7[%c0_60, %c0_61, %c0_62, %c0_63] : memref<1x16x16x128xf32, #tpu.memory_space<vmem>>, vector<1x16x16x128xf32>
    tpu.vector_store %arg7[%c0_60, %c0_61, %c0_62, %c0_63], %55 {strides = array<i32>} : memref<1x16x16x128xf32, #tpu.memory_space<vmem>>, vector<1x16x16x128xf32>,
    return
  }
  func.func @transform_0(%arg0: i32) -> (i32, i32, i32, i32) {
    %c0_i32 = arith.constant 0 : i32
    %c0_i32_0 = arith.constant 0 : i32
    %c0_i32_1 = arith.constant 0 : i32
    %c0_i32_2 = arith.constant 0 : i32
    return %arg0, %c0_i32, %c0_i32_0, %c0_i32_1 : i32, i32, i32, i32
  }
  func.func @transform_1(%arg0: i32) -> (i32, i32) {
    %c0_i32 = arith.constant 0 : i32
    %c0_i32_0 = arith.constant 0 : i32
    %c0_i32_1 = arith.constant 0 : i32
    return %c0_i32, %c0_i32_0 : i32, i32
  }
  func.func @transform_2(%arg0: i32) -> (i32, i32) {
    %c0_i32 = arith.constant 0 : i32
    %c0_i32_0 = arith.constant 0 : i32
    %c0_i32_1 = arith.constant 0 : i32
    return %c0_i32, %c0_i32_0 : i32, i32
  }
  func.func @transform_3(%arg0: i32) -> (i32, i32) {
    %c0_i32 = arith.constant 0 : i32
    %c0_i32_0 = arith.constant 0 : i32
    %c0_i32_1 = arith.constant 0 : i32
    return %c0_i32, %c0_i32_0 : i32, i32
  }
  func.func @transform_4(%arg0: i32) -> (i32, i32) {
    %c0_i32 = arith.constant 0 : i32
    %c0_i32_0 = arith.constant 0 : i32
    %c0_i32_1 = arith.constant 0 : i32
    return %c0_i32, %c0_i32_0 : i32, i32
  }
  func.func @transform_5(%arg0: i32) -> (i32, i32) {
    %c0_i32 = arith.constant 0 : i32
    %c0_i32_0 = arith.constant 0 : i32
    %c0_i32_1 = arith.constant 0 : i32
    return %c0_i32, %c0_i32_0 : i32, i32
  }
  func.func @transform_6(%arg0: i32) -> (i32, i32, i32, i32) {
    %c0_i32 = arith.constant 0 : i32
    %c0_i32_0 = arith.constant 0 : i32
    %c0_i32_1 = arith.constant 0 : i32
    %c0_i32_2 = arith.constant 0 : i32
    return %arg0, %c0_i32, %c0_i32_0, %c0_i32_1 : i32, i32, i32, i32
  }
}

</mosaic_0001>

<llo_original>
// kernel: tpu_custom_call.1
$region0: #{tpu_custom_call.1}
  #allocation0 [shape = 'u32[]', space=smem, size = 0x4, offset = 0x4, fixed_abs, tag = 'smem constant byte address 0x4 - core index']
  #allocation1 [shape = 'u32[144,128]{1,0:T(1,128)}', space=vmem, size = 0x12000, scoped, tag = 'internal scratch']
  #allocation2 [shape = 'f32[18,18,128]{2,1,0:T(8,128)}', space=vmem, size = 0x36000, scoped, tag = 'scratch operand']
  %s0 = inlined_call_operand.vmem [shape: f32[2,18,18,128], index: 0, kind: input, shape index: {}]
  %s1 = inlined_call_operand.vmem [shape: bf16[1152,128], index: 1, kind: input, shape index: {}]
  %s2 = inlined_call_operand.vmem [shape: bf16[1152,128], index: 2, kind: input, shape index: {}]
  %s3 = inlined_call_operand.vmem [shape: bf16[128,128], index: 3, kind: input, shape index: {}]
  %s4 = inlined_call_operand.vmem [shape: f32[1,128], index: 4, kind: input, shape index: {}]
  %s5 = inlined_call_operand.vmem [shape: f32[1,128], index: 5, kind: input, shape index: {}]
  %s6 = inlined_call_operand.hbm [shape: f32[2,16,16,128], index: 6, kind: output, shape index: {}]
  %s7 = sld [smem:[#allocation0]]
  $region57: #{tpu_custom_call.1} parent=0
    _
  %s9 = ssub.s32 1, %s7
  %s10 = scalar_select 0, %s9, %s7
  $region1: #{tpu_custom_call.1} parent=0
    #allocation3 [shape = 'u8[262144]{0}', space=vmem, size = 0x40000, scoped, tag = 'output window, operand 0']
    #allocation4 [shape = 's32[2]{0}', space=sflag, size = 0x8, scoped, tag = 'scoped memory for tpu_custom_call.1']
    %11 = vsyncpa [#allocation4], 0
    %s12 = scalar_lea.sflag [#allocation4], 1
    %13 = vsyncpa %s12, 0
    loop: start=0, step=1, limit=4
    $region2: #{tpu_custom_call.1} parent=1 // loop_pre_header
      _
    $region3: #{tpu_custom_call.1} parent=1 // loop_header
      %s15 = sphi 0, %s19
      %p16 = scmp.ge.s32.totalorder %s15, 4
      %s25 = sphi 0, %s27
      %s28 = sphi 0, %s25
      %s29 = sphi 0, %s28
      %s45 = sphi 0, %s29
      %s49 = sphi 0, %s49
      %s51 = sphi 0, %s49
      %s52 = sphi 0, %s51
      %s66 = sphi 0, %s52
      %s70 = sphi 0, %s70
      %s72 = sphi 0, %s70
      %s73 = sphi 0, %s72
      %s87 = sphi 0, %s73
      %s91 = sphi 0, %s91
      %s93 = sphi 0, %s91
      %s94 = sphi 0, %s93
      %s108 = sphi 0, %s94
      %s112 = sphi 0, %s112
      %s114 = sphi 0, %s112
      %s115 = sphi 0, %s114
      %s129 = sphi 0, %s115
      %s133 = sphi 0, %s133
      %s135 = sphi 0, %s133
      %s136 = sphi 0, %s135
      %s150 = sphi 0, %s136
      %s156 = sphi 0, %s158
      %s159 = sphi 0, %s156
      %s160 = sphi 0, %s159
      %s176 = sphi 0, %s160
    $region4: #{tpu_custom_call.1} parent=1 // loop_header_branch
      %18 = sbr.rel (%p16) target = $region8
    $region5: #{tpu_custom_call.1} parent=1 // loop_body
      %s20 = ssub.s32 %s15, 1
      %s21 = ssub.s32 %s15, 2
      %s22 = sadd.s32 %s15, 1
      %s23 = ssub.s32 %s15, %s22
      %p24 = scmp.eq.s32.totalorder %s23, 0
      %s26 = sadd.s32 %s25, 1
      %s27 = scalar_select %p24, %s25, %s26
      %p30 = pneg %p24
      %p31 = scmp.eq.s32.totalorder %s15, 1
      %p32 = por %p30, %p31
      %p33 = scmp.ne.s32.totalorder %s25, %s28
      %p34 = scmp.eq.s32.totalorder %s15, 0
      %p35 = por %p33, %p34
      %p36 = scmp.ne.s32.totalorder %s25, %s28
      %p37 = scmp.eq.s32.totalorder %s20, 1
      %p38 = por %p36, %p37
      %p39 = scmp.ne.s32.totalorder %s28, %s29
      %p40 = scmp.eq.s32.totalorder %s20, 0
      %p41 = por %p39, %p40
      %p42 = scmp.ne.s32.totalorder %s28, %s29
      %p43 = scmp.eq.s32.totalorder %s21, 1
      %p44 = por %p42, %p43
      %p46 = scmp.ne.s32.totalorder %s29, %s45
      %p47 = scmp.eq.s32.totalorder %s21, 0
      %p48 = por %p46, %p47
      %s50 = sadd.s32 %s49, 1
      %p53 = scmp.eq.s32.totalorder %s15, 1
      %p54 = scmp.ne.s32.totalorder %s49, %s51
      %p55 = scmp.eq.s32.totalorder %s15, 0
      %p56 = por %p54, %p55
      %p57 = scmp.ne.s32.totalorder %s49, %s51
      %p58 = scmp.eq.s32.totalorder %s20, 1
      %p59 = por %p57, %p58
      %p60 = scmp.ne.s32.totalorder %s51, %s52
      %p61 = scmp.eq.s32.totalorder %s20, 0
      %p62 = por %p60, %p61
      %p63 = scmp.ne.s32.totalorder %s51, %s52
      %p64 = scmp.eq.s32.totalorder %s21, 1
      %p65 = por %p63, %p64
      %p67 = scmp.ne.s32.totalorder %s52, %s66
      %p68 = scmp.eq.s32.totalorder %s21, 0
      %p69 = por %p67, %p68
      %s71 = sadd.s32 %s70, 1
      %p74 = scmp.eq.s32.totalorder %s15, 1
      %p75 = scmp.ne.s32.totalorder %s70, %s72
      %p76 = scmp.eq.s32.totalorder %s15, 0
      %p77 = por %p75, %p76
      %p78 = scmp.ne.s32.totalorder %s70, %s72
      %p79 = scmp.eq.s32.totalorder %s20, 1
      %p80 = por %p78, %p79
      %p81 = scmp.ne.s32.totalorder %s72, %s73
      %p82 = scmp.eq.s32.totalorder %s20, 0
      %p83 = por %p81, %p82
      %p84 = scmp.ne.s32.totalorder %s72, %s73
      %p85 = scmp.eq.s32.totalorder %s21, 1
      %p86 = por %p84, %p85
      %p88 = scmp.ne.s32.totalorder %s73, %s87
      %p89 = scmp.eq.s32.totalorder %s21, 0
      %p90 = por %p88, %p89
      %s92 = sadd.s32 %s91, 1
      %p95 = scmp.eq.s32.totalorder %s15, 1
      %p96 = scmp.ne.s32.totalorder %s91, %s93
      %p97 = scmp.eq.s32.totalorder %s15, 0
      %p98 = por %p96, %p97
      %p99 = scmp.ne.s32.totalorder %s91, %s93
      %p100 = scmp.eq.s32.totalorder %s20, 1
      %p101 = por %p99, %p100
      %p102 = scmp.ne.s32.totalorder %s93, %s94
      %p103 = scmp.eq.s32.totalorder %s20, 0
      %p104 = por %p102, %p103
      %p105 = scmp.ne.s32.totalorder %s93, %s94
      %p106 = scmp.eq.s32.totalorder %s21, 1
      %p107 = por %p105, %p106
      %p109 = scmp.ne.s32.totalorder %s94, %s108
      %p110 = scmp.eq.s32.totalorder %s21, 0
      %p111 = por %p109, %p110
      %s113 = sadd.s32 %s112, 1
      %p116 = scmp.eq.s32.totalorder %s15, 1
      %p117 = scmp.ne.s32.totalorder %s112, %s114
      %p118 = scmp.eq.s32.totalorder %s15, 0
      %p119 = por %p117, %p118
      %p120 = scmp.ne.s32.totalorder %s112, %s114
      %p121 = scmp.eq.s32.totalorder %s20, 1
      %p122 = por %p120, %p121
      %p123 = scmp.ne.s32.totalorder %s114, %s115
      %p124 = scmp.eq.s32.totalorder %s20, 0
      %p125 = por %p123, %p124
      %p126 = scmp.ne.s32.totalorder %s114, %s115
      %p127 = scmp.eq.s32.totalorder %s21, 1
      %p128 = por %p126, %p127
      %p130 = scmp.ne.s32.totalorder %s115, %s129
      %p131 = scmp.eq.s32.totalorder %s21, 0
      %p132 = por %p130, %p131
      %s134 = sadd.s32 %s133, 1
      %p137 = scmp.eq.s32.totalorder %s15, 1
      %p138 = scmp.ne.s32.totalorder %s133, %s135
      %p139 = scmp.eq.s32.totalorder %s15, 0
      %p140 = por %p138, %p139
      %p141 = scmp.ne.s32.totalorder %s133, %s135
      %p142 = scmp.eq.s32.totalorder %s20, 1
      %p143 = por %p141, %p142
      %p144 = scmp.ne.s32.totalorder %s135, %s136
      %p145 = scmp.eq.s32.totalorder %s20, 0
      %p146 = por %p144, %p145
      %p147 = scmp.ne.s32.totalorder %s135, %s136
      %p148 = scmp.eq.s32.totalorder %s21, 1
      %p149 = por %p147, %p148
      %p151 = scmp.ne.s32.totalorder %s136, %s150
      %p152 = scmp.eq.s32.totalorder %s21, 0
      %p153 = por %p151, %p152
      %s154 = ssub.s32 %s15, %s22
      %p155 = scmp.eq.s32.totalorder %s154, 0
      %s157 = sadd.s32 %s156, 1
      %s158 = scalar_select %p155, %s156, %s157
      %p161 = pneg %p155
      %p162 = scmp.eq.s32.totalorder %s15, 1
      %p163 = por %p161, %p162
      %p164 = scmp.ne.s32.totalorder %s156, %s159
      %p165 = scmp.eq.s32.totalorder %s15, 0
      %p166 = por %p164, %p165
      %p167 = scmp.ne.s32.totalorder %s156, %s159
      %p168 = scmp.eq.s32.totalorder %s20, 1
      %p169 = por %p167, %p168
      %p170 = scmp.ne.s32.totalorder %s159, %s160
      %p171 = scmp.eq.s32.totalorder %s20, 0
      %p172 = por %p170, %p171
      %p173 = scmp.ne.s32.totalorder %s159, %s160
      %p174 = scmp.eq.s32.totalorder %s21, 1
      %p175 = por %p173, %p174
      %p177 = scmp.ne.s32.totalorder %s160, %s176
      %p178 = scmp.eq.s32.totalorder %s21, 0
      %p179 = por %p177, %p178
      %p180 = scmp.le.s32.totalorder 1, %s15
      %p181 = scmp.lt.s32.totalorder %s15, 3
      %p182 = pnand %p180, %p181
      %p183 = pneg %p182
      // Predicated region
      $region9: #{tpu_custom_call.1} parent=5 // pred_check
        _
      $region10: #{tpu_custom_call.1} parent=5 // pred_check_branch
        %185 = sbr.rel (%p182) target = $region12
      $region11: #{tpu_custom_call.1} parent=5 // pred_region
        %s186 = ssub.s32 %s15, 1
        // Predicated region
        $region13: #{tpu_custom_call.1} parent=11 // pred_check
          %p187 = pneg %p62
        $region14: #{tpu_custom_call.1} parent=11 // pred_check_branch
          %189 = sbr.rel (%p187) target = $region16
        $region15: #{tpu_custom_call.1} parent=11 // pred_region
          _
        $region16: #{tpu_custom_call.1} parent=11 // pred_fallthru
          _
        // Predicated region
        $region17: #{tpu_custom_call.1} parent=11 // pred_check
          %p190 = pneg %p83
        $region18: #{tpu_custom_call.1} parent=11 // pred_check_branch
          %192 = sbr.rel (%p190) target = $region20
        $region19: #{tpu_custom_call.1} parent=11 // pred_region
          _
        $region20: #{tpu_custom_call.1} parent=11 // pred_fallthru
          _
        // Predicated region
        $region21: #{tpu_custom_call.1} parent=11 // pred_check
          %p193 = pneg %p104
        $region22: #{tpu_custom_call.1} parent=11 // pred_check_branch
          %195 = sbr.rel (%p193) target = $region24
        $region23: #{tpu_custom_call.1} parent=11 // pred_region
          _
        $region24: #{tpu_custom_call.1} parent=11 // pred_fallthru
          _
        // Predicated region
        $region25: #{tpu_custom_call.1} parent=11 // pred_check
          %p196 = pneg %p125
        $region26: #{tpu_custom_call.1} parent=11 // pred_check_branch
          %198 = sbr.rel (%p196) target = $region28
        $region27: #{tpu_custom_call.1} parent=11 // pred_region
          _
        $region28: #{tpu_custom_call.1} parent=11 // pred_fallthru
          _
        // Predicated region
        $region29: #{tpu_custom_call.1} parent=11 // pred_check
          %p199 = pneg %p146
        $region30: #{tpu_custom_call.1} parent=11 // pred_check_branch
          %201 = sbr.rel (%p199) target = $region32
        $region31: #{tpu_custom_call.1} parent=11 // pred_region
          _
        $region32: #{tpu_custom_call.1} parent=11 // pred_fallthru
          _
      $region12: #{tpu_custom_call.1} parent=5 // pred_fallthru
        _
      %p202 = scmp.lt.s32.totalorder %s15, 2
      // Predicated region
      $region33: #{tpu_custom_call.1} parent=5 // pred_check
        %p203 = pneg %p202
      $region34: #{tpu_custom_call.1} parent=5 // pred_check_branch
        %205 = sbr.rel (%p203) target = $region36
      $region35: #{tpu_custom_call.1} parent=5 // pred_region
        // Predicated region
        $region37: #{tpu_custom_call.1} parent=35 // pred_check
          %p206 = pneg %p35
        $region38: #{tpu_custom_call.1} parent=35 // pred_check_branch
          %208 = sbr.rel (%p206) target = $region40
        $region39: #{tpu_custom_call.1} parent=35 // pred_region
          %p209 = scmp.lt.s32.totalorder %s15, 1
          %s210 = scalar_select %p209, %s15, 1
          %s211 = smul.addr %s210, 54
          %s212 = smul.addr %s211, 8
          %s213 = scalar_lea.vmem %s0, %s212
        $region40: #{tpu_custom_call.1} parent=35 // pred_fallthru
          _
      $region36: #{tpu_custom_call.1} parent=5 // pred_fallthru
        _
      %p214 = scmp.le.s32.totalorder 1, %s15
      %p215 = scmp.lt.s32.totalorder %s15, 3
      %p216 = pnand %p214, %p215
      %p217 = pneg %p216
      // Predicated region
      $region41: #{tpu_custom_call.1} parent=5 // pred_check
        _
      $region42: #{tpu_custom_call.1} parent=5 // pred_check_branch
        %219 = sbr.rel (%p216) target = $region44
      $region43: #{tpu_custom_call.1} parent=5 // pred_region
        %s220 = ssub.s32 %s15, 1
        %p221 = scmp.lt.s32.totalorder %s20, 1
        %s222 = scalar_select %p221, %s20, 1
        %s223 = smul.addr %s222, 54
        %s224 = smul.addr %s223, 8
        %s225 = scalar_lea.vmem %s0, %s224
        %p226 = pneg %p41
        %p227 = pneg %p38
        %p228 = pneg %p62
        %p229 = pneg %p59
        %p230 = pneg %p83
        %p231 = pneg %p80
        %p232 = pneg %p104
        %p233 = pneg %p101
        %p234 = pneg %p125
        %p235 = pneg %p122
        %p236 = pneg %p146
        %p237 = pneg %p143
        %p238 = pneg %p172
        %p239 = pneg %p169
        %s240 = sand.u32 %s159, 1
        %s241 = scalar_lea.sflag [#allocation4], %s240
        %s242 = sand.u32 %s159, 1
        %s243 = smul.addr %s242, 256
        %s244 = scalar_lea.vmem [#allocation3], %s243
        %p245 = scmp.lt.s32.totalorder %s20, 1
        %s246 = scalar_select %p245, %s20, 1
        %s247 = smul.addr %s246, 54
        %s248 = smul.addr %s247, 8
        %s249 = scalar_lea.vmem %s0, %s248
        %v251 = vld [vmem:[%s249] sm:$0xff]
        %v252 = vld [vmem:[%s249 + $0x8] sm:$0xff]
        %v253 = vld [vmem:[%s249 + $0x10] sm:$0x3]
        %v254 = vld [vmem:[%s249 + $0x18] sm:$0xff]
        %v255 = vld [vmem:[%s249 + $0x20] sm:$0xff]
        %v256 = vld [vmem:[%s249 + $0x28] sm:$0x3]
        %v257 = vld [vmem:[%s249 + $0x30] sm:$0xff]
        %v258 = vld [vmem:[%s249 + $0x38] sm:$0xff]
        %v259 = vld [vmem:[%s249 + $0x40] sm:$0x3]
        %v260 = vld [vmem:[%s249 + $0x48] sm:$0xff]
        %v261 = vld [vmem:[%s249 + $0x50] sm:$0xff]
        %v262 = vld [vmem:[%s249 + $0x58] sm:$0x3]
        %v263 = vld [vmem:[%s249 + $0x60] sm:$0xff]
        %v264 = vld [vmem:[%s249 + $0x68] sm:$0xff]
        %v265 = vld [vmem:[%s249 + $0x70] sm:$0x3]
        %v266 = vld [vmem:[%s249 + $0x78] sm:$0xff]
        %v267 = vld [vmem:[%s249 + $0x80] sm:$0xff]
        %v268 = vld [vmem:[%s249 + $0x88] sm:$0x3]
        %v269 = vld [vmem:[%s249 + $0x90] sm:$0xff]
        %v270 = vld [vmem:[%s249 + $0x98] sm:$0xff]
        %v271 = vld [vmem:[%s249 + $0xa0] sm:$0x3]
        %v272 = vld [vmem:[%s249 + $0xa8] sm:$0xff]
        %v273 = vld [vmem:[%s249 + $0xb0] sm:$0xff]
        %v274 = vld [vmem:[%s249 + $0xb8] sm:$0x3]
        %v275 = vld [vmem:[%s249 + $0xc0] sm:$0xff]
        %v276 = vld [vmem:[%s249 + $0xc8] sm:$0xff]
        %v277 = vld [vmem:[%s249 + $0xd0] sm:$0x3]
        %v278 = vld [vmem:[%s249 + $0xd8] sm:$0xff]
        %v279 = vld [vmem:[%s249 + $0xe0] sm:$0xff]
        %v280 = vld [vmem:[%s249 + $0xe8] sm:$0x3]
        %v281 = vld [vmem:[%s249 + $0xf0] sm:$0xff]
        %v282 = vld [vmem:[%s249 + $0xf8] sm:$0xff]
        %v283 = vld [vmem:[%s249 + $0x100] sm:$0x3]
        %v284 = vld [vmem:[%s249 + $0x108] sm:$0xff]
        %v285 = vld [vmem:[%s249 + $0x110] sm:$0xff]
        %v286 = vld [vmem:[%s249 + $0x118] sm:$0x3]
        %v287 = vld [vmem:[%s249 + $0x120] sm:$0xff]
        %v288 = vld [vmem:[%s249 + $0x128] sm:$0xff]
        %v289 = vld [vmem:[%s249 + $0x130] sm:$0x3]
        %v290 = vld [vmem:[%s249 + $0x138] sm:$0xff]
        %v291 = vld [vmem:[%s249 + $0x140] sm:$0xff]
        %v292 = vld [vmem:[%s249 + $0x148] sm:$0x3]
        %v293 = vld [vmem:[%s249 + $0x150] sm:$0xff]
        %v294 = vld [vmem:[%s249 + $0x158] sm:$0xff]
        %v295 = vld [vmem:[%s249 + $0x160] sm:$0x3]
        %v296 = vld [vmem:[%s249 + $0x168] sm:$0xff]
        %v297 = vld [vmem:[%s249 + $0x170] sm:$0xff]
        %v298 = vld [vmem:[%s249 + $0x178] sm:$0x3]
        %v299 = vld [vmem:[%s249 + $0x180] sm:$0xff]
        %v300 = vld [vmem:[%s249 + $0x188] sm:$0xff]
        %v301 = vld [vmem:[%s249 + $0x190] sm:$0x3]
        %v302 = vld [vmem:[%s249 + $0x198] sm:$0xff]
        %v303 = vld [vmem:[%s249 + $0x1a0] sm:$0xff]
        %v304 = vld [vmem:[%s249 + $0x1a8] sm:$0x3]
        %vm353 = vcmask 1046528
        %v354 = vrot.slane %v251, 1
        %v355 = vrot.slane %v252, 1
        %v356 = vsel %vm353, %v354, %v355
        %v357 = vrot.slane %v253, 1
        %v358 = vsel %vm353, %v355, %v357
        %v359 = vrot.slane %v254, 1
        %v360 = vrot.slane %v255, 1
        %v361 = vsel %vm353, %v359, %v360
        %v362 = vrot.slane %v256, 1
        %v363 = vsel %vm353, %v360, %v362
        %v364 = vrot.slane %v257, 1
        %v365 = vrot.slane %v258, 1
        %v366 = vsel %vm353, %v364, %v365
        %v367 = vrot.slane %v259, 1
        %v368 = vsel %vm353, %v365, %v367
        %v369 = vrot.slane %v260, 1
        %v370 = vrot.slane %v261, 1
        %v371 = vsel %vm353, %v369, %v370
        %v372 = vrot.slane %v262, 1
        %v373 = vsel %vm353, %v370, %v372
        %v374 = vrot.slane %v263, 1
        %v375 = vrot.slane %v264, 1
        %v376 = vsel %vm353, %v374, %v375
        %v377 = vrot.slane %v265, 1
        %v378 = vsel %vm353, %v375, %v377
        %v379 = vrot.slane %v266, 1
        %v380 = vrot.slane %v267, 1
        %v381 = vsel %vm353, %v379, %v380
        %v382 = vrot.slane %v268, 1
        %v383 = vsel %vm353, %v380, %v382
        %v384 = vrot.slane %v269, 1
        %v385 = vrot.slane %v270, 1
        %v386 = vsel %vm353, %v384, %v385
        %v387 = vrot.slane %v271, 1
        %v388 = vsel %vm353, %v385, %v387
        %v389 = vrot.slane %v272, 1
        %v390 = vrot.slane %v273, 1
        %v391 = vsel %vm353, %v389, %v390
        %v392 = vrot.slane %v274, 1
        %v393 = vsel %vm353, %v390, %v392
        %v394 = vrot.slane %v275, 1
        %v395 = vrot.slane %v276, 1
        %v396 = vsel %vm353, %v394, %v395
        %v397 = vrot.slane %v277, 1
        %v398 = vsel %vm353, %v395, %v397
        %v399 = vrot.slane %v278, 1
        %v400 = vrot.slane %v279, 1
        %v401 = vsel %vm353, %v399, %v400
        %v402 = vrot.slane %v280, 1
        %v403 = vsel %vm353, %v400, %v402
        %v404 = vrot.slane %v281, 1
        %v405 = vrot.slane %v282, 1
        %v406 = vsel %vm353, %v404, %v405
        %v407 = vrot.slane %v283, 1
        %v408 = vsel %vm353, %v405, %v407
        %v409 = vrot.slane %v284, 1
        %v410 = vrot.slane %v285, 1
        %v411 = vsel %vm353, %v409, %v410
        %v412 = vrot.slane %v286, 1
        %v413 = vsel %vm353, %v410, %v412
        %v414 = vrot.slane %v287, 1
        %v415 = vrot.slane %v288, 1
        %v416 = vsel %vm353, %v414, %v415
        %v417 = vrot.slane %v289, 1
        %v418 = vsel %vm353, %v415, %v417
        %v419 = vrot.slane %v290, 1
        %v420 = vrot.slane %v291, 1
        %v421 = vsel %vm353, %v419, %v420
        %v422 = vrot.slane %v292, 1
        %v423 = vsel %vm353, %v420, %v422
        %v424 = vrot.slane %v293, 1
        %v425 = vrot.slane %v294, 1
        %v426 = vsel %vm353, %v424, %v425
        %v427 = vrot.slane %v295, 1
        %v428 = vsel %vm353, %v425, %v427
        %v429 = vrot.slane %v296, 1
        %v430 = vrot.slane %v297, 1
        %v431 = vsel %vm353, %v429, %v430
        %v432 = vrot.slane %v298, 1
        %v433 = vsel %vm353, %v430, %v432
        %vm466 = vcmask 1045504
        %v467 = vrot.slane %v251, 2
        %v468 = vrot.slane %v252, 2
        %v469 = vsel %vm466, %v467, %v468
        %v470 = vrot.slane %v253, 2
        %v471 = vsel %vm466, %v468, %v470
        %v472 = vrot.slane %v254, 2
        %v473 = vrot.slane %v255, 2
        %v474 = vsel %vm466, %v472, %v473
        %v475 = vrot.slane %v256, 2
        %v476 = vsel %vm466, %v473, %v475
        %v477 = vrot.slane %v257, 2
        %v478 = vrot.slane %v258, 2
        %v479 = vsel %vm466, %v477, %v478
        %v480 = vrot.slane %v259, 2
        %v481 = vsel %vm466, %v478, %v480
        %v482 = vrot.slane %v260, 2
        %v483 = vrot.slane %v261, 2
        %v484 = vsel %vm466, %v482, %v483
        %v485 = vrot.slane %v262, 2
        %v486 = vsel %vm466, %v483, %v485
        %v487 = vrot.slane %v263, 2
        %v488 = vrot.slane %v264, 2
        %v489 = vsel %vm466, %v487, %v488
        %v490 = vrot.slane %v265, 2
        %v491 = vsel %vm466, %v488, %v490
        %v492 = vrot.slane %v266, 2
        %v493 = vrot.slane %v267, 2
        %v494 = vsel %vm466, %v492, %v493
        %v495 = vrot.slane %v268, 2
        %v496 = vsel %vm466, %v493, %v495
        %v497 = vrot.slane %v269, 2
        %v498 = vrot.slane %v270, 2
        %v499 = vsel %vm466, %v497, %v498
        %v500 = vrot.slane %v271, 2
        %v501 = vsel %vm466, %v498, %v500
        %v502 = vrot.slane %v272, 2
        %v503 = vrot.slane %v273, 2
        %v504 = vsel %vm466, %v502, %v503
        %v505 = vrot.slane %v274, 2
        %v506 = vsel %vm466, %v503, %v505
        %v507 = vrot.slane %v275, 2
        %v508 = vrot.slane %v276, 2
        %v509 = vsel %vm466, %v507, %v508
        %v510 = vrot.slane %v277, 2
        %v511 = vsel %vm466, %v508, %v510
        %v512 = vrot.slane %v278, 2
        %v513 = vrot.slane %v279, 2
        %v514 = vsel %vm466, %v512, %v513
        %v515 = vrot.slane %v280, 2
        %v516 = vsel %vm466, %v513, %v515
        %v517 = vrot.slane %v281, 2
        %v518 = vrot.slane %v282, 2
        %v519 = vsel %vm466, %v517, %v518
        %v520 = vrot.slane %v283, 2
        %v521 = vsel %vm466, %v518, %v520
        %v522 = vrot.slane %v284, 2
        %v523 = vrot.slane %v285, 2
        %v524 = vsel %vm466, %v522, %v523
        %v525 = vrot.slane %v286, 2
        %v526 = vsel %vm466, %v523, %v525
        %v527 = vrot.slane %v287, 2
        %v528 = vrot.slane %v288, 2
        %v529 = vsel %vm466, %v527, %v528
        %v530 = vrot.slane %v289, 2
        %v531 = vsel %vm466, %v528, %v530
        %v532 = vrot.slane %v290, 2
        %v533 = vrot.slane %v291, 2
        %v534 = vsel %vm466, %v532, %v533
        %v535 = vrot.slane %v292, 2
        %v536 = vsel %vm466, %v533, %v535
        %v537 = vrot.slane %v293, 2
        %v538 = vrot.slane %v294, 2
        %v539 = vsel %vm466, %v537, %v538
        %v540 = vrot.slane %v295, 2
        %v541 = vsel %vm466, %v538, %v540
        %v542 = vrot.slane %v296, 2
        %v543 = vrot.slane %v297, 2
        %v544 = vsel %vm466, %v542, %v543
        %v545 = vrot.slane %v298, 2
        %v546 = vsel %vm466, %v543, %v545
        %v582 = vrot.slane %v299, 1
        %v583 = vrot.slane %v300, 1
        %v584 = vsel %vm353, %v582, %v583
        %v585 = vrot.slane %v301, 1
        %v586 = vsel %vm353, %v583, %v585
        %v589 = vrot.slane %v299, 2
        %v590 = vrot.slane %v300, 2
        %v591 = vsel %vm466, %v589, %v590
        %v592 = vrot.slane %v301, 2
        %v593 = vsel %vm466, %v590, %v592
        %v599 = vrot.slane %v302, 1
        %v600 = vrot.slane %v303, 1
        %v601 = vsel %vm353, %v599, %v600
        %v602 = vrot.slane %v304, 1
        %v603 = vsel %vm353, %v600, %v602
        %v606 = vrot.slane %v302, 2
        %v607 = vrot.slane %v303, 2
        %v608 = vsel %vm466, %v606, %v607
        %v609 = vrot.slane %v304, 2
        %v610 = vsel %vm466, %v607, %v609
        %v613 = vpack.c.bf16 %v252, %v251
        %v614 = vpack.c.bf16 %v358, %v356
        %v615 = vpack.c.bf16 %v471, %v469
        %v616 = vpack.c.bf16 %v255, %v254
        %v617 = vpack.c.bf16 %v363, %v361
        %v618 = vpack.c.bf16 %v476, %v474
        %v619 = vpack.c.bf16 %v258, %v257
        %v620 = vpack.c.bf16 %v368, %v366
        %v621 = vpack.c.bf16 %v481, %v479
        %v622 = vpack.c.bf16 %v261, %v260
        %v623 = vpack.c.bf16 %v373, %v371
        %v624 = vpack.c.bf16 %v486, %v484
        %v625 = vpack.c.bf16 %v264, %v263
        %v626 = vpack.c.bf16 %v378, %v376
        %v627 = vpack.c.bf16 %v491, %v489
        %v628 = vpack.c.bf16 %v267, %v266
        %v629 = vpack.c.bf16 %v383, %v381
        %v630 = vpack.c.bf16 %v496, %v494
        %v631 = vpack.c.bf16 %v270, %v269
        %v632 = vpack.c.bf16 %v388, %v386
        %v633 = vpack.c.bf16 %v501, %v499
        %v634 = vpack.c.bf16 %v273, %v272
        %v635 = vpack.c.bf16 %v393, %v391
        %v636 = vpack.c.bf16 %v506, %v504
        %v637 = vpack.c.bf16 %v276, %v275
        %v638 = vpack.c.bf16 %v398, %v396
        %v639 = vpack.c.bf16 %v511, %v509
        %v640 = vpack.c.bf16 %v279, %v278
        %v641 = vpack.c.bf16 %v403, %v401
        %v642 = vpack.c.bf16 %v516, %v514
        %v643 = vpack.c.bf16 %v282, %v281
        %v644 = vpack.c.bf16 %v408, %v406
        %v645 = vpack.c.bf16 %v521, %v519
        %v646 = vpack.c.bf16 %v285, %v284
        %v647 = vpack.c.bf16 %v413, %v411
        %v648 = vpack.c.bf16 %v526, %v524
        %v649 = vpack.c.bf16 %v288, %v287
        %v650 = vpack.c.bf16 %v418, %v416
        %v651 = vpack.c.bf16 %v531, %v529
        %v652 = vpack.c.bf16 %v291, %v290
        %v653 = vpack.c.bf16 %v423, %v421
        %v654 = vpack.c.bf16 %v536, %v534
        %v655 = vpack.c.bf16 %v294, %v293
        %v656 = vpack.c.bf16 %v428, %v426
        %v657 = vpack.c.bf16 %v541, %v539
        %v658 = vpack.c.bf16 %v297, %v296
        %v659 = vpack.c.bf16 %v433, %v431
        %v660 = vpack.c.bf16 %v546, %v544
        %v661 = vpack.c.bf16 %v300, %v299
        %v662 = vpack.c.bf16 %v586, %v584
        %v663 = vpack.c.bf16 %v593, %v591
        %v664 = vpack.c.bf16 %v303, %v302
        %v665 = vpack.c.bf16 %v603, %v601
        %v666 = vpack.c.bf16 %v610, %v608
        %v667 = vld [vmem:[%s1] sm:$0xf]
        %v668 = vld [vmem:[%s1 + $0x4] sm:$0xf]
        %v669 = vld [vmem:[%s1 + $0x8] sm:$0xf]
        %v670 = vld [vmem:[%s1 + $0xc] sm:$0xf]
        %v671 = vld [vmem:[%s1 + $0x10] sm:$0xf]
        %v672 = vld [vmem:[%s1 + $0x14] sm:$0xf]
        %v673 = vld [vmem:[%s1 + $0x18] sm:$0xf]
        %v674 = vld [vmem:[%s1 + $0x1c] sm:$0xf]
        %v675 = vld [vmem:[%s1 + $0x20] sm:$0xf]
        %v676 = vld [vmem:[%s1 + $0x24] sm:$0xf]
        %v677 = vld [vmem:[%s1 + $0x28] sm:$0xf]
        %v678 = vld [vmem:[%s1 + $0x2c] sm:$0xf]
        %v679 = vld [vmem:[%s1 + $0x30] sm:$0xf]
        %v680 = vld [vmem:[%s1 + $0x34] sm:$0xf]
        %v681 = vld [vmem:[%s1 + $0x38] sm:$0xf]
        %v682 = vld [vmem:[%s1 + $0x3c] sm:$0xf]
        %v683 = vld [vmem:[%s1 + $0x40] sm:$0xf]
        %v684 = vld [vmem:[%s1 + $0x44] sm:$0xf]
        %v685 = vld [vmem:[%s1 + $0x48] sm:$0xf]
        %v686 = vld [vmem:[%s1 + $0x4c] sm:$0xf]
        %v687 = vld [vmem:[%s1 + $0x50] sm:$0xf]
        %v688 = vld [vmem:[%s1 + $0x54] sm:$0xf]
        %v689 = vld [vmem:[%s1 + $0x58] sm:$0xf]
        %v690 = vld [vmem:[%s1 + $0x5c] sm:$0xf]
        %v691 = vld [vmem:[%s1 + $0x60] sm:$0xf]
        %v692 = vld [vmem:[%s1 + $0x64] sm:$0xf]
        %v693 = vld [vmem:[%s1 + $0x68] sm:$0xf]
        %v694 = vld [vmem:[%s1 + $0x6c] sm:$0xf]
        %v695 = vld [vmem:[%s1 + $0x70] sm:$0xf]
        %v696 = vld [vmem:[%s1 + $0x74] sm:$0xf]
        %v697 = vld [vmem:[%s1 + $0x78] sm:$0xf]
        %v698 = vld [vmem:[%s1 + $0x7c] sm:$0xf]
        %v699 = vld [vmem:[%s1 + $0x80] sm:$0xf]
        %v700 = vld [vmem:[%s1 + $0x84] sm:$0xf]
        %v701 = vld [vmem:[%s1 + $0x88] sm:$0xf]
        %v702 = vld [vmem:[%s1 + $0x8c] sm:$0xf]
        %v703 = vld [vmem:[%s1 + $0x90] sm:$0xf]
        %v704 = vld [vmem:[%s1 + $0x94] sm:$0xf]
        %v705 = vld [vmem:[%s1 + $0x98] sm:$0xf]
        %v706 = vld [vmem:[%s1 + $0x9c] sm:$0xf]
        %v707 = vld [vmem:[%s1 + $0xa0] sm:$0xf]
        %v708 = vld [vmem:[%s1 + $0xa4] sm:$0xf]
        %v709 = vld [vmem:[%s1 + $0xa8] sm:$0xf]
        %v710 = vld [vmem:[%s1 + $0xac] sm:$0xf]
        %v711 = vld [vmem:[%s1 + $0xb0] sm:$0xf]
        %v712 = vld [vmem:[%s1 + $0xb4] sm:$0xf]
        %v713 = vld [vmem:[%s1 + $0xb8] sm:$0xf]
        %v714 = vld [vmem:[%s1 + $0xbc] sm:$0xf]
        %v715 = vld [vmem:[%s1 + $0xc0] sm:$0xf]
        %v716 = vld [vmem:[%s1 + $0xc4] sm:$0xf]
        %v717 = vld [vmem:[%s1 + $0xc8] sm:$0xf]
        %v718 = vld [vmem:[%s1 + $0xcc] sm:$0xf]
        %v719 = vld [vmem:[%s1 + $0xd0] sm:$0xf]
        %v720 = vld [vmem:[%s1 + $0xd4] sm:$0xf]
        %v721 = vld [vmem:[%s1 + $0xd8] sm:$0xf]
        %v722 = vld [vmem:[%s1 + $0xdc] sm:$0xf]
        %v723 = vld [vmem:[%s1 + $0xe0] sm:$0xf]
        %v724 = vld [vmem:[%s1 + $0xe4] sm:$0xf]
        %v725 = vld [vmem:[%s1 + $0xe8] sm:$0xf]
        %v726 = vld [vmem:[%s1 + $0xec] sm:$0xf]
        %v727 = vld [vmem:[%s1 + $0xf0] sm:$0xf]
        %v728 = vld [vmem:[%s1 + $0xf4] sm:$0xf]
        %v729 = vld [vmem:[%s1 + $0xf8] sm:$0xf]
        %v730 = vld [vmem:[%s1 + $0xfc] sm:$0xf]
        %v731 = vld [vmem:[%s1 + $0x100] sm:$0xf]
        %v732 = vld [vmem:[%s1 + $0x104] sm:$0xf]
        %v733 = vld [vmem:[%s1 + $0x108] sm:$0xf]
        %v734 = vld [vmem:[%s1 + $0x10c] sm:$0xf]
        %v735 = vld [vmem:[%s1 + $0x110] sm:$0xf]
        %v736 = vld [vmem:[%s1 + $0x114] sm:$0xf]
        %v737 = vld [vmem:[%s1 + $0x118] sm:$0xf]
        %v738 = vld [vmem:[%s1 + $0x11c] sm:$0xf]
        %v739 = vld [vmem:[%s1 + $0x120] sm:$0xf]
        %v740 = vld [vmem:[%s1 + $0x124] sm:$0xf]
        %v741 = vld [vmem:[%s1 + $0x128] sm:$0xf]
        %v742 = vld [vmem:[%s1 + $0x12c] sm:$0xf]
        %v743 = vld [vmem:[%s1 + $0x130] sm:$0xf]
        %v744 = vld [vmem:[%s1 + $0x134] sm:$0xf]
        %v745 = vld [vmem:[%s1 + $0x138] sm:$0xf]
        %v746 = vld [vmem:[%s1 + $0x13c] sm:$0xf]
        %v747 = vld [vmem:[%s1 + $0x140] sm:$0xf]
        %v748 = vld [vmem:[%s1 + $0x144] sm:$0xf]
        %v749 = vld [vmem:[%s1 + $0x148] sm:$0xf]
        %v750 = vld [vmem:[%s1 + $0x14c] sm:$0xf]
        %v751 = vld [vmem:[%s1 + $0x150] sm:$0xf]
        %v752 = vld [vmem:[%s1 + $0x154] sm:$0xf]
        %v753 = vld [vmem:[%s1 + $0x158] sm:$0xf]
        %v754 = vld [vmem:[%s1 + $0x15c] sm:$0xf]
        %v755 = vld [vmem:[%s1 + $0x160] sm:$0xf]
        %v756 = vld [vmem:[%s1 + $0x164] sm:$0xf]
        %v757 = vld [vmem:[%s1 + $0x168] sm:$0xf]
        %v758 = vld [vmem:[%s1 + $0x16c] sm:$0xf]
        %v759 = vld [vmem:[%s1 + $0x170] sm:$0xf]
        %v760 = vld [vmem:[%s1 + $0x174] sm:$0xf]
        %v761 = vld [vmem:[%s1 + $0x178] sm:$0xf]
        %v762 = vld [vmem:[%s1 + $0x17c] sm:$0xf]
        %v763 = vld [vmem:[%s1 + $0x180] sm:$0xf]
        %v764 = vld [vmem:[%s1 + $0x184] sm:$0xf]
        %v765 = vld [vmem:[%s1 + $0x188] sm:$0xf]
        %v766 = vld [vmem:[%s1 + $0x18c] sm:$0xf]
        %v767 = vld [vmem:[%s1 + $0x190] sm:$0xf]
        %v768 = vld [vmem:[%s1 + $0x194] sm:$0xf]
        %v769 = vld [vmem:[%s1 + $0x198] sm:$0xf]
        %v770 = vld [vmem:[%s1 + $0x19c] sm:$0xf]
        %v771 = vld [vmem:[%s1 + $0x1a0] sm:$0xf]
        %v772 = vld [vmem:[%s1 + $0x1a4] sm:$0xf]
        %v773 = vld [vmem:[%s1 + $0x1a8] sm:$0xf]
        %v774 = vld [vmem:[%s1 + $0x1ac] sm:$0xf]
        %v775 = vld [vmem:[%s1 + $0x1b0] sm:$0xf]
        %v776 = vld [vmem:[%s1 + $0x1b4] sm:$0xf]
        %v777 = vld [vmem:[%s1 + $0x1b8] sm:$0xf]
        %v778 = vld [vmem:[%s1 + $0x1bc] sm:$0xf]
        %v779 = vld [vmem:[%s1 + $0x1c0] sm:$0xf]
        %v780 = vld [vmem:[%s1 + $0x1c4] sm:$0xf]
        %v781 = vld [vmem:[%s1 + $0x1c8] sm:$0xf]
        %v782 = vld [vmem:[%s1 + $0x1cc] sm:$0xf]
        %v783 = vld [vmem:[%s1 + $0x1d0] sm:$0xf]
        %v784 = vld [vmem:[%s1 + $0x1d4] sm:$0xf]
        %v785 = vld [vmem:[%s1 + $0x1d8] sm:$0xf]
        %v786 = vld [vmem:[%s1 + $0x1dc] sm:$0xf]
        %v787 = vld [vmem:[%s1 + $0x1e0] sm:$0xf]
        %v788 = vld [vmem:[%s1 + $0x1e4] sm:$0xf]
        %v789 = vld [vmem:[%s1 + $0x1e8] sm:$0xf]
        %v790 = vld [vmem:[%s1 + $0x1ec] sm:$0xf]
        %v791 = vld [vmem:[%s1 + $0x1f0] sm:$0xf]
        %v792 = vld [vmem:[%s1 + $0x1f4] sm:$0xf]
        %v793 = vld [vmem:[%s1 + $0x1f8] sm:$0xf]
        %v794 = vld [vmem:[%s1 + $0x1fc] sm:$0xf]
        %v795 = vld [vmem:[%s1 + $0x200] sm:$0xf]
        %v796 = vld [vmem:[%s1 + $0x204] sm:$0xf]
        %v797 = vld [vmem:[%s1 + $0x208] sm:$0xf]
        %v798 = vld [vmem:[%s1 + $0x20c] sm:$0xf]
        %v799 = vld [vmem:[%s1 + $0x210] sm:$0xf]
        %v800 = vld [vmem:[%s1 + $0x214] sm:$0xf]
        %v801 = vld [vmem:[%s1 + $0x218] sm:$0xf]
        %v802 = vld [vmem:[%s1 + $0x21c] sm:$0xf]
        %v803 = vld [vmem:[%s1 + $0x220] sm:$0xf]
        %v804 = vld [vmem:[%s1 + $0x224] sm:$0xf]
        %v805 = vld [vmem:[%s1 + $0x228] sm:$0xf]
        %v806 = vld [vmem:[%s1 + $0x22c] sm:$0xf]
        %v807 = vld [vmem:[%s1 + $0x230] sm:$0xf]
        %v808 = vld [vmem:[%s1 + $0x234] sm:$0xf]
        %v809 = vld [vmem:[%s1 + $0x238] sm:$0xf]
        %v810 = vld [vmem:[%s1 + $0x23c] sm:$0xf]
        %v955 = vunpack.c.l.b16 %v667
        %v956 = vunpack.c.l.b16 %v668
        %v957 = vunpack.c.l.b16 %v669
        %v958 = vunpack.c.l.b16 %v670
        %v959 = vunpack.c.l.b16 %v671
        %v960 = vunpack.c.l.b16 %v672
        %v961 = vunpack.c.l.b16 %v673
        %v962 = vunpack.c.l.b16 %v674
        %v963 = vunpack.c.l.b16 %v675
        %v964 = vunpack.c.l.b16 %v676
        %v965 = vunpack.c.l.b16 %v677
        %v966 = vunpack.c.l.b16 %v678
        %v967 = vunpack.c.l.b16 %v679
        %v968 = vunpack.c.l.b16 %v680
        %v969 = vunpack.c.l.b16 %v681
        %v970 = vunpack.c.l.b16 %v682
        %v971 = vunpack.c.l.b16 %v683
        %v972 = vunpack.c.l.b16 %v684
        %v973 = vunpack.c.l.b16 %v685
        %v974 = vunpack.c.l.b16 %v686
        %v975 = vunpack.c.l.b16 %v687
        %v976 = vunpack.c.l.b16 %v688
        %v977 = vunpack.c.l.b16 %v689
        %v978 = vunpack.c.l.b16 %v690
        %v979 = vunpack.c.l.b16 %v691
        %v980 = vunpack.c.l.b16 %v692
        %v981 = vunpack.c.l.b16 %v693
        %v982 = vunpack.c.l.b16 %v694
        %v983 = vunpack.c.l.b16 %v695
        %v984 = vunpack.c.l.b16 %v696
        %v985 = vunpack.c.l.b16 %v697
        %v986 = vunpack.c.l.b16 %v698
        %v987 = vunpack.c.l.b16 %v699
        %v988 = vunpack.c.l.b16 %v700
        %v989 = vunpack.c.l.b16 %v701
        %v990 = vunpack.c.l.b16 %v702
        %v991 = vunpack.c.l.b16 %v703
        %v992 = vunpack.c.l.b16 %v704
        %v993 = vunpack.c.l.b16 %v705
        %v994 = vunpack.c.l.b16 %v706
        %v995 = vunpack.c.l.b16 %v707
        %v996 = vunpack.c.l.b16 %v708
        %v997 = vunpack.c.l.b16 %v709
        %v998 = vunpack.c.l.b16 %v710
        %v999 = vunpack.c.l.b16 %v711
        %v1000 = vunpack.c.l.b16 %v712
        %v1001 = vunpack.c.l.b16 %v713
        %v1002 = vunpack.c.l.b16 %v714
        %v1003 = vunpack.c.l.b16 %v715
        %v1004 = vunpack.c.l.b16 %v716
        %v1005 = vunpack.c.l.b16 %v717
        %v1006 = vunpack.c.l.b16 %v718
        %v1007 = vunpack.c.l.b16 %v719
        %v1008 = vunpack.c.l.b16 %v720
        %v1009 = vunpack.c.l.b16 %v721
        %v1010 = vunpack.c.l.b16 %v722
        %v1011 = vunpack.c.l.b16 %v723
        %v1012 = vunpack.c.l.b16 %v724
        %v1013 = vunpack.c.l.b16 %v725
        %v1014 = vunpack.c.l.b16 %v726
        %v1015 = vunpack.c.l.b16 %v727
        %v1016 = vunpack.c.l.b16 %v728
        %v1017 = vunpack.c.l.b16 %v729
        %v1018 = vunpack.c.l.b16 %v730
        %v1019 = vunpack.c.l.b16 %v731
        %v1020 = vunpack.c.l.b16 %v732
        %v1021 = vunpack.c.l.b16 %v733
        %v1022 = vunpack.c.l.b16 %v734
        %v1023 = vunpack.c.l.b16 %v735
        %v1024 = vunpack.c.l.b16 %v736
        %v1025 = vunpack.c.l.b16 %v737
        %v1026 = vunpack.c.l.b16 %v738
        %v1027 = vunpack.c.l.b16 %v739
        %v1028 = vunpack.c.l.b16 %v740
        %v1029 = vunpack.c.l.b16 %v741
        %v1030 = vunpack.c.l.b16 %v742
        %v1031 = vunpack.c.l.b16 %v743
        %v1032 = vunpack.c.l.b16 %v744
        %v1033 = vunpack.c.l.b16 %v745
        %v1034 = vunpack.c.l.b16 %v746
        %v1035 = vunpack.c.l.b16 %v747
        %v1036 = vunpack.c.l.b16 %v748
        %v1037 = vunpack.c.l.b16 %v749
        %v1038 = vunpack.c.l.b16 %v750
        %v1039 = vunpack.c.l.b16 %v751
        %v1040 = vunpack.c.l.b16 %v752
        %v1041 = vunpack.c.l.b16 %v753
        %v1042 = vunpack.c.l.b16 %v754
        %v1043 = vunpack.c.l.b16 %v755
        %v1044 = vunpack.c.l.b16 %v756
        %v1045 = vunpack.c.l.b16 %v757
        %v1046 = vunpack.c.l.b16 %v758
        %v1047 = vunpack.c.l.b16 %v759
        %v1048 = vunpack.c.l.b16 %v760
        %v1049 = vunpack.c.l.b16 %v761
        %v1050 = vunpack.c.l.b16 %v762
        %v1051 = vunpack.c.l.b16 %v763
        %v1052 = vunpack.c.l.b16 %v764
        %v1053 = vunpack.c.l.b16 %v765
        %v1054 = vunpack.c.l.b16 %v766
        %v1055 = vunpack.c.l.b16 %v767
        %v1056 = vunpack.c.l.b16 %v768
        %v1057 = vunpack.c.l.b16 %v769
        %v1058 = vunpack.c.l.b16 %v770
        %v1059 = vunpack.c.l.b16 %v771
        %v1060 = vunpack.c.l.b16 %v772
        %v1061 = vunpack.c.l.b16 %v773
        %v1062 = vunpack.c.l.b16 %v774
        %v1063 = vunpack.c.l.b16 %v775
        %v1064 = vunpack.c.l.b16 %v776
        %v1065 = vunpack.c.l.b16 %v777
        %v1066 = vunpack.c.l.b16 %v778
        %v1067 = vunpack.c.l.b16 %v779
        %v1068 = vunpack.c.l.b16 %v780
        %v1069 = vunpack.c.l.b16 %v781
        %v1070 = vunpack.c.l.b16 %v782
        %v1071 = vunpack.c.l.b16 %v783
        %v1072 = vunpack.c.l.b16 %v784
        %v1073 = vunpack.c.l.b16 %v785
        %v1074 = vunpack.c.l.b16 %v786
        %v1075 = vunpack.c.l.b16 %v787
        %v1076 = vunpack.c.l.b16 %v788
        %v1077 = vunpack.c.l.b16 %v789
        %v1078 = vunpack.c.l.b16 %v790
        %v1079 = vunpack.c.l.b16 %v791
        %v1080 = vunpack.c.l.b16 %v792
        %v1081 = vunpack.c.l.b16 %v793
        %v1082 = vunpack.c.l.b16 %v794
        %v1083 = vunpack.c.l.b16 %v795
        %v1084 = vunpack.c.l.b16 %v796
        %v1085 = vunpack.c.l.b16 %v797
        %v1086 = vunpack.c.l.b16 %v798
        %v1087 = vunpack.c.l.b16 %v799
        %v1088 = vunpack.c.l.b16 %v800
        %v1089 = vunpack.c.l.b16 %v801
        %v1090 = vunpack.c.l.b16 %v802
        %v1091 = vunpack.c.l.b16 %v803
        %v1092 = vunpack.c.l.b16 %v804
        %v1093 = vunpack.c.l.b16 %v805
        %v1094 = vunpack.c.l.b16 %v806
        %v1095 = vunpack.c.l.b16 %v807
        %v1096 = vunpack.c.l.b16 %v808
        %v1097 = vunpack.c.l.b16 %v809
        %v1098 = vunpack.c.l.b16 %v810
        %v1099 = vpack.c.b16 %v956, %v955
        %v1100 = vpack.c.b16 %v958, %v957
        %v1101 = vpack.c.b16 %v960, %v959
        %v1102 = vpack.c.b16 %v962, %v961
        %v1103 = vpack.c.b16 %v964, %v963
        %v1104 = vpack.c.b16 %v966, %v965
        %v1105 = vpack.c.b16 %v968, %v967
        %v1106 = vpack.c.b16 %v970, %v969
        %v1107 = vpack.c.b16 %v972, %v971
        %v1108 = vpack.c.b16 %v974, %v973
        %v1109 = vpack.c.b16 %v976, %v975
        %v1110 = vpack.c.b16 %v978, %v977
        %v1111 = vpack.c.b16 %v980, %v979
        %v1112 = vpack.c.b16 %v982, %v981
        %v1113 = vpack.c.b16 %v984, %v983
        %v1114 = vpack.c.b16 %v986, %v985
        %v1115 = vpack.c.b16 %v988, %v987
        %v1116 = vpack.c.b16 %v990, %v989
        %v1117 = vpack.c.b16 %v992, %v991
        %v1118 = vpack.c.b16 %v994, %v993
        %v1119 = vpack.c.b16 %v996, %v995
        %v1120 = vpack.c.b16 %v998, %v997
        %v1121 = vpack.c.b16 %v1000, %v999
        %v1122 = vpack.c.b16 %v1002, %v1001
        %v1123 = vpack.c.b16 %v1004, %v1003
        %v1124 = vpack.c.b16 %v1006, %v1005
        %v1125 = vpack.c.b16 %v1008, %v1007
        %v1126 = vpack.c.b16 %v1010, %v1009
        %v1127 = vpack.c.b16 %v1012, %v1011
        %v1128 = vpack.c.b16 %v1014, %v1013
        %v1129 = vpack.c.b16 %v1016, %v1015
        %v1130 = vpack.c.b16 %v1018, %v1017
        %v1131 = vpack.c.b16 %v1020, %v1019
        %v1132 = vpack.c.b16 %v1022, %v1021
        %v1133 = vpack.c.b16 %v1024, %v1023
        %v1134 = vpack.c.b16 %v1026, %v1025
        %v1135 = vpack.c.b16 %v1028, %v1027
        %v1136 = vpack.c.b16 %v1030, %v1029
        %v1137 = vpack.c.b16 %v1032, %v1031
        %v1138 = vpack.c.b16 %v1034, %v1033
        %v1139 = vpack.c.b16 %v1036, %v1035
        %v1140 = vpack.c.b16 %v1038, %v1037
        %v1141 = vpack.c.b16 %v1040, %v1039
        %v1142 = vpack.c.b16 %v1042, %v1041
        %v1143 = vpack.c.b16 %v1044, %v1043
        %v1144 = vpack.c.b16 %v1046, %v1045
        %v1145 = vpack.c.b16 %v1048, %v1047
        %v1146 = vpack.c.b16 %v1050, %v1049
        %v1147 = vpack.c.b16 %v1052, %v1051
        %v1148 = vpack.c.b16 %v1054, %v1053
        %v1149 = vpack.c.b16 %v1056, %v1055
        %v1150 = vpack.c.b16 %v1058, %v1057
        %v1151 = vpack.c.b16 %v1060, %v1059
        %v1152 = vpack.c.b16 %v1062, %v1061
        %v1153 = vpack.c.b16 %v1064, %v1063
        %v1154 = vpack.c.b16 %v1066, %v1065
        %v1155 = vpack.c.b16 %v1068, %v1067
        %v1156 = vpack.c.b16 %v1070, %v1069
        %v1157 = vpack.c.b16 %v1072, %v1071
        %v1158 = vpack.c.b16 %v1074, %v1073
        %v1159 = vpack.c.b16 %v1076, %v1075
        %v1160 = vpack.c.b16 %v1078, %v1077
        %v1161 = vpack.c.b16 %v1080, %v1079
        %v1162 = vpack.c.b16 %v1082, %v1081
        %v1163 = vpack.c.b16 %v1084, %v1083
        %v1164 = vpack.c.b16 %v1086, %v1085
        %v1165 = vpack.c.b16 %v1088, %v1087
        %v1166 = vpack.c.b16 %v1090, %v1089
        %v1167 = vpack.c.b16 %v1092, %v1091
        %v1168 = vpack.c.b16 %v1094, %v1093
        %v1169 = vpack.c.b16 %v1096, %v1095
        %v1170 = vpack.c.b16 %v1098, %v1097
        %1243 = vmatprep.subr.bf16.mxu0 0
        %1244 = vmatpush1.bf16.msra.mxu0 %v1099
        %1245 = vmatprep.subr.bf16.mxu0 0
        %1246 = vmatpush1.bf16.msra.mxu0 %v1100
        %1247 = vmatprep.subr.bf16.mxu0 0
        %1248 = vmatpush1.bf16.msra.mxu0 %v1101
        %1249 = vmatprep.subr.bf16.mxu0 0
        %1250 = vmatpush1.bf16.msra.mxu0 %v1102
        %1251 = vmatprep.subr.bf16.mxu0 0
        %1252 = vmatpush1.bf16.msra.mxu0 %v1103
        %1253 = vmatprep.subr.bf16.mxu0 0
        %1254 = vmatpush1.bf16.msra.mxu0 %v1104
        %1255 = vmatprep.subr.bf16.mxu0 0
        %1256 = vmatpush1.bf16.msra.mxu0 %v1105
        %1257 = vmatprep.subr.bf16.mxu0 0
        %1258 = vmatpush1.bf16.msra.mxu0 %v1106
        %1259 = vmatprep.subr.bf16.mxu0 0
        %1260 = vmatpush1.bf16.msra.mxu0 %v1107
        %1261 = vmatprep.subr.bf16.mxu0 0
        %1262 = vmatpush1.bf16.msra.mxu0 %v1108
        %1263 = vmatprep.subr.bf16.mxu0 0
        %1264 = vmatpush1.bf16.msra.mxu0 %v1109
        %1265 = vmatprep.subr.bf16.mxu0 0
        %1266 = vmatpush1.bf16.msra.mxu0 %v1110
        %1267 = vmatprep.subr.bf16.mxu0 0
        %1268 = vmatpush1.bf16.msra.mxu0 %v1111
        %1269 = vmatprep.subr.bf16.mxu0 0
        %1270 = vmatpush1.bf16.msra.mxu0 %v1112
        %1271 = vmatprep.subr.bf16.mxu0 0
        %1272 = vmatpush1.bf16.msra.mxu0 %v1113
        %1273 = vmatprep.subr.bf16.mxu0 0
        %1274 = vmatpush1.bf16.msra.mxu0 %v1114
        %1275 = vmatprep.mubr.bf16.mxu0 %v614
        %1276 = vmatmul.mubr.bf16.gmra.mrb[0].mxu0 %v613
        %v1277 = vpop.f32.mrb[0].mxu0
        %v1278 = vadd.f32 0.0, %v1277
        %v1279 = vpop.f32.mrb[0].mxu0
        %v1280 = vpop.f32.mrb[0].mxu0
        %v1281 = vadd.f32 0.0, %v1280
        %v1282 = vpop.f32.mrb[0].mxu0
        %1283 = vmatprep.mubr.bf16.mxu0 %v617
        %1284 = vmatmul.mubr.bf16.gmra.mrb[0].mxu0 %v616
        %v1285 = vpop.f32.mrb[0].mxu0
        %v1286 = vadd.f32 0.0, %v1285
        %v1287 = vpop.f32.mrb[0].mxu0
        %v1288 = vpop.f32.mrb[0].mxu0
        %v1289 = vadd.f32 0.0, %v1288
        %v1290 = vpop.f32.mrb[0].mxu0
        %1291 = vmatprep.mubr.bf16.mxu0 %v620
        %1292 = vmatmul.mubr.bf16.gmra.mrb[0].mxu0 %v619
        %v1293 = vpop.f32.mrb[0].mxu0
        %v1294 = vadd.f32 0.0, %v1293
        %v1295 = vpop.f32.mrb[0].mxu0
        %v1296 = vpop.f32.mrb[0].mxu0
        %v1297 = vadd.f32 0.0, %v1296
        %v1298 = vpop.f32.mrb[0].mxu0
        %1299 = vmatprep.mubr.bf16.mxu0 %v623
        %1300 = vmatmul.mubr.bf16.gmra.mrb[0].mxu0 %v622
        %v1301 = vpop.f32.mrb[0].mxu0
        %v1302 = vadd.f32 0.0, %v1301
        %v1303 = vpop.f32.mrb[0].mxu0
        %v1304 = vpop.f32.mrb[0].mxu0
        %v1305 = vadd.f32 0.0, %v1304
        %v1306 = vpop.f32.mrb[0].mxu0
        %1307 = vmatprep.mubr.bf16.mxu0 %v626
        %1308 = vmatmul.mubr.bf16.gmra.mrb[0].mxu0 %v625
        %v1309 = vpop.f32.mrb[0].mxu0
        %v1310 = vadd.f32 0.0, %v1309
        %v1311 = vpop.f32.mrb[0].mxu0
        %v1312 = vpop.f32.mrb[0].mxu0
        %v1313 = vadd.f32 0.0, %v1312
        %v1314 = vpop.f32.mrb[0].mxu0
        %1315 = vmatprep.mubr.bf16.mxu0 %v629
        %1316 = vmatmul.mubr.bf16.gmra.mrb[0].mxu0 %v628
        %v1317 = vpop.f32.mrb[0].mxu0
        %v1318 = vadd.f32 0.0, %v1317
        %v1319 = vpop.f32.mrb[0].mxu0
        %v1320 = vpop.f32.mrb[0].mxu0
        %v1321 = vadd.f32 0.0, %v1320
        %v1322 = vpop.f32.mrb[0].mxu0
        %1323 = vmatprep.mubr.bf16.mxu0 %v632
        %1324 = vmatmul.mubr.bf16.gmra.mrb[0].mxu0 %v631
        %v1325 = vpop.f32.mrb[0].mxu0
        %v1326 = vadd.f32 0.0, %v1325
        %v1327 = vpop.f32.mrb[0].mxu0
        %v1328 = vpop.f32.mrb[0].mxu0
        %v1329 = vadd.f32 0.0, %v1328
        %v1330 = vpop.f32.mrb[0].mxu0
        %1331 = vmatprep.mubr.bf16.mxu0 %v635
        %1332 = vmatmul.mubr.bf16.gmra.mrb[0].mxu0 %v634
        %v1333 = vpop.f32.mrb[0].mxu0
        %v1334 = vadd.f32 0.0, %v1333
        %v1335 = vpop.f32.mrb[0].mxu0
        %v1336 = vpop.f32.mrb[0].mxu0
        %v1337 = vadd.f32 0.0, %v1336
        %v1338 = vpop.f32.mrb[0].mxu0
        %1339 = vmatprep.mubr.bf16.mxu0 %v638
        %1340 = vmatmul.mubr.bf16.gmra.mrb[0].mxu0 %v637
        %v1341 = vpop.f32.mrb[0].mxu0
        %v1342 = vadd.f32 0.0, %v1341
        %v1343 = vpop.f32.mrb[0].mxu0
        %v1344 = vpop.f32.mrb[0].mxu0
        %v1345 = vadd.f32 0.0, %v1344
        %v1346 = vpop.f32.mrb[0].mxu0
        %1347 = vmatprep.mubr.bf16.mxu0 %v641
        %1348 = vmatmul.mubr.bf16.gmra.mrb[0].mxu0 %v640
        %v1349 = vpop.f32.mrb[0].mxu0
        %v1350 = vadd.f32 0.0, %v1349
        %v1351 = vpop.f32.mrb[0].mxu0
        %v1352 = vpop.f32.mrb[0].mxu0
        %v1353 = vadd.f32 0.0, %v1352
        %v1354 = vpop.f32.mrb[0].mxu0
        %1355 = vmatprep.mubr.bf16.mxu0 %v644
        %1356 = vmatmul.mubr.bf16.gmra.mrb[0].mxu0 %v643
        %v1357 = vpop.f32.mrb[0].mxu0
        %v1358 = vadd.f32 0.0, %v1357
        %v1359 = vpop.f32.mrb[0].mxu0
        %v1360 = vpop.f32.mrb[0].mxu0
        %v1361 = vadd.f32 0.0, %v1360
        %v1362 = vpop.f32.mrb[0].mxu0
        %1363 = vmatprep.mubr.bf16.mxu0 %v647
        %1364 = vmatmul.mubr.bf16.gmra.mrb[0].mxu0 %v646
        %v1365 = vpop.f32.mrb[0].mxu0
        %v1366 = vadd.f32 0.0, %v1365
        %v1367 = vpop.f32.mrb[0].mxu0
        %v1368 = vpop.f32.mrb[0].mxu0
        %v1369 = vadd.f32 0.0, %v1368
        %v1370 = vpop.f32.mrb[0].mxu0
        %1371 = vmatprep.mubr.bf16.mxu0 %v650
        %1372 = vmatmul.mubr.bf16.gmra.mrb[0].mxu0 %v649
        %v1373 = vpop.f32.mrb[0].mxu0
        %v1374 = vadd.f32 0.0, %v1373
        %v1375 = vpop.f32.mrb[0].mxu0
        %v1376 = vpop.f32.mrb[0].mxu0
        %v1377 = vadd.f32 0.0, %v1376
        %v1378 = vpop.f32.mrb[0].mxu0
        %1379 = vmatprep.mubr.bf16.mxu0 %v653
        %1380 = vmatmul.mubr.bf16.gmra.mrb[0].mxu0 %v652
        %v1381 = vpop.f32.mrb[0].mxu0
        %v1382 = vadd.f32 0.0, %v1381
        %v1383 = vpop.f32.mrb[0].mxu0
        %v1384 = vpop.f32.mrb[0].mxu0
        %v1385 = vadd.f32 0.0, %v1384
        %v1386 = vpop.f32.mrb[0].mxu0
        %1387 = vmatprep.mubr.bf16.mxu0 %v656
        %1388 = vmatmul.mubr.bf16.gmra.mrb[0].mxu0 %v655
        %v1389 = vpop.f32.mrb[0].mxu0
        %v1390 = vadd.f32 0.0, %v1389
        %v1391 = vpop.f32.mrb[0].mxu0
        %v1392 = vpop.f32.mrb[0].mxu0
        %v1393 = vadd.f32 0.0, %v1392
        %v1394 = vpop.f32.mrb[0].mxu0
        %1395 = vmatprep.mubr.bf16.mxu0 %v659
        %1396 = vmatmul.mubr.bf16.gmra.mrb[0].mxu0 %v658
        %v1397 = vpop.f32.mrb[0].mxu0
        %v1398 = vadd.f32 0.0, %v1397
        %v1399 = vpop.f32.mrb[0].mxu0
        %v1400 = vpop.f32.mrb[0].mxu0
        %v1401 = vadd.f32 0.0, %v1400
        %v1402 = vpop.f32.mrb[0].mxu0
        %1403 = vdwg.mxu0
        %1404 = vmatprep.subr.bf16.mxu0 0
        %1405 = vmatpush1.bf16.msra.mxu0 %v1115
        %1406 = vmatprep.subr.bf16.mxu0 0
        %1407 = vmatpush1.bf16.msra.mxu0 %v1116
        %1408 = vmatprep.subr.bf16.mxu0 0
        %1409 = vmatpush1.bf16.msra.mxu0 %v1117
        %1410 = vmatprep.subr.bf16.mxu0 0
        %1411 = vmatpush1.bf16.msra.mxu0 %v1118
        %1412 = vmatprep.subr.bf16.mxu0 0
        %1413 = vmatpush1.bf16.msra.mxu0 %v1119
        %1414 = vmatprep.subr.bf16.mxu0 0
        %1415 = vmatpush1.bf16.msra.mxu0 %v1120
        %1416 = vmatprep.subr.bf16.mxu0 0
        %1417 = vmatpush1.bf16.msra.mxu0 %v1121
        %1418 = vmatprep.subr.bf16.mxu0 0
        %1419 = vmatpush1.bf16.msra.mxu0 %v1122
        %1420 = vmatprep.subr.bf16.mxu0 0
        %1421 = vmatpush1.bf16.msra.mxu0 %v1123
        %1422 = vmatprep.subr.bf16.mxu0 0
        %1423 = vmatpush1.bf16.msra.mxu0 %v1124
        %1424 = vmatprep.subr.bf16.mxu0 0
        %1425 = vmatpush1.bf16.msra.mxu0 %v1125
        %1426 = vmatprep.subr.bf16.mxu0 0
        %1427 = vmatpush1.bf16.msra.mxu0 %v1126
        %1428 = vmatprep.subr.bf16.mxu0 0
        %1429 = vmatpush1.bf16.msra.mxu0 %v1127
        %1430 = vmatprep.subr.bf16.mxu0 0
        %1431 = vmatpush1.bf16.msra.mxu0 %v1128
        %1432 = vmatprep.subr.bf16.mxu0 0
        %1433 = vmatpush1.bf16.msra.mxu0 %v1129
        %1434 = vmatprep.subr.bf16.mxu0 0
        %1435 = vmatpush1.bf16.msra.mxu0 %v1130
        %1436 = vmatprep.mubr.bf16.mxu0 %v616
        %1437 = vmatmul.mubr.bf16.gmra.mrb[0].mxu0 %v615
        %v1438 = vpop.f32.mrb[0].mxu0
        %v1439 = vadd.f32 %v1278, %v1438
        %v1440 = vpop.f32.mrb[0].mxu0
        %v1441 = vpop.f32.mrb[0].mxu0
        %v1442 = vadd.f32 %v1281, %v1441
        %v1443 = vpop.f32.mrb[0].mxu0
        %1444 = vmatprep.mubr.bf16.mxu0 %v619
        %1445 = vmatmul.mubr.bf16.gmra.mrb[0].mxu0 %v618
        %v1446 = vpop.f32.mrb[0].mxu0
        %v1447 = vadd.f32 %v1286, %v1446
        %v1448 = vpop.f32.mrb[0].mxu0
        %v1449 = vpop.f32.mrb[0].mxu0
        %v1450 = vadd.f32 %v1289, %v1449
        %v1451 = vpop.f32.mrb[0].mxu0
        %1452 = vmatprep.mubr.bf16.mxu0 %v622
        %1453 = vmatmul.mubr.bf16.gmra.mrb[0].mxu0 %v621
        %v1454 = vpop.f32.mrb[0].mxu0
        %v1455 = vadd.f32 %v1294, %v1454
        %v1456 = vpop.f32.mrb[0].mxu0
        %v1457 = vpop.f32.mrb[0].mxu0
        %v1458 = vadd.f32 %v1297, %v1457
        %v1459 = vpop.f32.mrb[0].mxu0
        %1460 = vmatprep.mubr.bf16.mxu0 %v625
        %1461 = vmatmul.mubr.bf16.gmra.mrb[0].mxu0 %v624
        %v1462 = vpop.f32.mrb[0].mxu0
        %v1463 = vadd.f32 %v1302, %v1462
        %v1464 = vpop.f32.mrb[0].mxu0
        %v1465 = vpop.f32.mrb[0].mxu0
        %v1466 = vadd.f32 %v1305, %v1465
        %v1467 = vpop.f32.mrb[0].mxu0
        %1468 = vmatprep.mubr.bf16.mxu0 %v628
        %1469 = vmatmul.mubr.bf16.gmra.mrb[0].mxu0 %v627
        %v1470 = vpop.f32.mrb[0].mxu0
        %v1471 = vadd.f32 %v1310, %v1470
        %v1472 = vpop.f32.mrb[0].mxu0
        %v1473 = vpop.f32.mrb[0].mxu0
        %v1474 = vadd.f32 %v1313, %v1473
        %v1475 = vpop.f32.mrb[0].mxu0
        %1476 = vmatprep.mubr.bf16.mxu0 %v631
        %1477 = vmatmul.mubr.bf16.gmra.mrb[0].mxu0 %v630
        %v1478 = vpop.f32.mrb[0].mxu0
        %v1479 = vadd.f32 %v1318, %v1478
        %v1480 = vpop.f32.mrb[0].mxu0
        %v1481 = vpop.f32.mrb[0].mxu0
        %v1482 = vadd.f32 %v1321, %v1481
        %v1483 = vpop.f32.mrb[0].mxu0
        %1484 = vmatprep.mubr.bf16.mxu0 %v634
        %1485 = vmatmul.mubr.bf16.gmra.mrb[0].mxu0 %v633
        %v1486 = vpop.f32.mrb[0].mxu0
        %v1487 = vadd.f32 %v1326, %v1486
        %v1488 = vpop.f32.mrb[0].mxu0
        %v1489 = vpop.f32.mrb[0].mxu0
        %v1490 = vadd.f32 %v1329, %v1489
        %v1491 = vpop.f32.mrb[0].mxu0
        %1492 = vmatprep.mubr.bf16.mxu0 %v637
        %1493 = vmatmul.mubr.bf16.gmra.mrb[0].mxu0 %v636
        %v1494 = vpop.f32.mrb[0].mxu0
        %v1495 = vadd.f32 %v1334, %v1494
        %v1496 = vpop.f32.mrb[0].mxu0
        %v1497 = vpop.f32.mrb[0].mxu0
        %v1498 = vadd.f32 %v1337, %v1497
        %v1499 = vpop.f32.mrb[0].mxu0
        %1500 = vmatprep.mubr.bf16.mxu0 %v640
        %1501 = vmatmul.mubr.bf16.gmra.mrb[0].mxu0 %v639
        %v1502 = vpop.f32.mrb[0].mxu0
        %v1503 = vadd.f32 %v1342, %v1502
        %v1504 = vpop.f32.mrb[0].mxu0
        %v1505 = vpop.f32.mrb[0].mxu0
        %v1506 = vadd.f32 %v1345, %v1505
        %v1507 = vpop.f32.mrb[0].mxu0
        %1508 = vmatprep.mubr.bf16.mxu0 %v643
        %1509 = vmatmul.mubr.bf16.gmra.mrb[0].mxu0 %v642
        %v1510 = vpop.f32.mrb[0].mxu0
        %v1511 = vadd.f32 %v1350, %v1510
        %v1512 = vpop.f32.mrb[0].mxu0
        %v1513 = vpop.f32.mrb[0].mxu0
        %v1514 = vadd.f32 %v1353, %v1513
        %v1515 = vpop.f32.mrb[0].mxu0
        %1516 = vmatprep.mubr.bf16.mxu0 %v646
        %1517 = vmatmul.mubr.bf16.gmra.mrb[0].mxu0 %v645
        %v1518 = vpop.f32.mrb[0].mxu0
        %v1519 = vadd.f32 %v1358, %v1518
        %v1520 = vpop.f32.mrb[0].mxu0
        %v1521 = vpop.f32.mrb[0].mxu0
        %v1522 = vadd.f32 %v1361, %v1521
        %v1523 = vpop.f32.mrb[0].mxu0
        %1524 = vmatprep.mubr.bf16.mxu0 %v649
        %1525 = vmatmul.mubr.bf16.gmra.mrb[0].mxu0 %v648
        %v1526 = vpop.f32.mrb[0].mxu0
        %v1527 = vadd.f32 %v1366, %v1526
        %v1528 = vpop.f32.mrb[0].mxu0
        %v1529 = vpop.f32.mrb[0].mxu0
        %v1530 = vadd.f32 %v1369, %v1529
        %v1531 = vpop.f32.mrb[0].mxu0
        %1532 = vmatprep.mubr.bf16.mxu0 %v652
        %1533 = vmatmul.mubr.bf16.gmra.mrb[0].mxu0 %v651
        %v1534 = vpop.f32.mrb[0].mxu0
        %v1535 = vadd.f32 %v1374, %v1534
        %v1536 = vpop.f32.mrb[0].mxu0
        %v1537 = vpop.f32.mrb[0].mxu0
        %v1538 = vadd.f32 %v1377, %v1537
        %v1539 = vpop.f32.mrb[0].mxu0
        %1540 = vmatprep.mubr.bf16.mxu0 %v655
        %1541 = vmatmul.mubr.bf16.gmra.mrb[0].mxu0 %v654
        %v1542 = vpop.f32.mrb[0].mxu0
        %v1543 = vadd.f32 %v1382, %v1542
        %v1544 = vpop.f32.mrb[0].mxu0
        %v1545 = vpop.f32.mrb[0].mxu0
        %v1546 = vadd.f32 %v1385, %v1545
        %v1547 = vpop.f32.mrb[0].mxu0
        %1548 = vmatprep.mubr.bf16.mxu0 %v658
        %1549 = vmatmul.mubr.bf16.gmra.mrb[0].mxu0 %v657
        %v1550 = vpop.f32.mrb[0].mxu0
        %v1551 = vadd.f32 %v1390, %v1550
        %v1552 = vpop.f32.mrb[0].mxu0
        %v1553 = vpop.f32.mrb[0].mxu0
        %v1554 = vadd.f32 %v1393, %v1553
        %v1555 = vpop.f32.mrb[0].mxu0
        %1556 = vmatprep.mubr.bf16.mxu0 %v661
        %1557 = vmatmul.mubr.bf16.gmra.mrb[0].mxu0 %v660
        %v1558 = vpop.f32.mrb[0].mxu0
        %v1559 = vadd.f32 %v1398, %v1558
        %v1560 = vpop.f32.mrb[0].mxu0
        %v1561 = vpop.f32.mrb[0].mxu0
        %v1562 = vadd.f32 %v1401, %v1561
        %v1563 = vpop.f32.mrb[0].mxu0
        %1564 = vdwg.mxu0
        %1565 = vmatprep.subr.bf16.mxu0 0
        %1566 = vmatpush1.bf16.msra.mxu0 %v1131
        %1567 = vmatprep.subr.bf16.mxu0 0
        %1568 = vmatpush1.bf16.msra.mxu0 %v1132
        %1569 = vmatprep.subr.bf16.mxu0 0
        %1570 = vmatpush1.bf16.msra.mxu0 %v1133
        %1571 = vmatprep.subr.bf16.mxu0 0
        %1572 = vmatpush1.bf16.msra.mxu0 %v1134
        %1573 = vmatprep.subr.bf16.mxu0 0
        %1574 = vmatpush1.bf16.msra.mxu0 %v1135
        %1575 = vmatprep.subr.bf16.mxu0 0
        %1576 = vmatpush1.bf16.msra.mxu0 %v1136
        %1577 = vmatprep.subr.bf16.mxu0 0
        %1578 = vmatpush1.bf16.msra.mxu0 %v1137
        %1579 = vmatprep.subr.bf16.mxu0 0
        %1580 = vmatpush1.bf16.msra.mxu0 %v1138
        %1581 = vmatprep.subr.bf16.mxu0 0
        %1582 = vmatpush1.bf16.msra.mxu0 %v1139
        %1583 = vmatprep.subr.bf16.mxu0 0
        %1584 = vmatpush1.bf16.msra.mxu0 %v1140
        %1585 = vmatprep.subr.bf16.mxu0 0
        %1586 = vmatpush1.bf16.msra.mxu0 %v1141
        %1587 = vmatprep.subr.bf16.mxu0 0
        %1588 = vmatpush1.bf16.msra.mxu0 %v1142
        %1589 = vmatprep.subr.bf16.mxu0 0
        %1590 = vmatpush1.bf16.msra.mxu0 %v1143
        %1591 = vmatprep.subr.bf16.mxu0 0
        %1592 = vmatpush1.bf16.msra.mxu0 %v1144
        %1593 = vmatprep.subr.bf16.mxu0 0
        %1594 = vmatpush1.bf16.msra.mxu0 %v1145
        %1595 = vmatprep.subr.bf16.mxu0 0
        %1596 = vmatpush1.bf16.msra.mxu0 %v1146
        %1597 = vmatprep.mubr.bf16.mxu0 %v618
        %1598 = vmatmul.mubr.bf16.gmra.mrb[0].mxu0 %v617
        %v1599 = vpop.f32.mrb[0].mxu0
        %v1600 = vadd.f32 %v1439, %v1599
        %v1601 = vpop.f32.mrb[0].mxu0
        %v1602 = vpop.f32.mrb[0].mxu0
        %v1603 = vadd.f32 %v1442, %v1602
        %v1604 = vpop.f32.mrb[0].mxu0
        %1605 = vmatprep.mubr.bf16.mxu0 %v621
        %1606 = vmatmul.mubr.bf16.gmra.mrb[0].mxu0 %v620
        %v1607 = vpop.f32.mrb[0].mxu0
        %v1608 = vadd.f32 %v1447, %v1607
        %v1609 = vpop.f32.mrb[0].mxu0
        %v1610 = vpop.f32.mrb[0].mxu0
        %v1611 = vadd.f32 %v1450, %v1610
        %v1612 = vpop.f32.mrb[0].mxu0
        %1613 = vmatprep.mubr.bf16.mxu0 %v624
        %1614 = vmatmul.mubr.bf16.gmra.mrb[0].mxu0 %v623
        %v1615 = vpop.f32.mrb[0].mxu0
        %v1616 = vadd.f32 %v1455, %v1615
        %v1617 = vpop.f32.mrb[0].mxu0
        %v1618 = vpop.f32.mrb[0].mxu0
        %v1619 = vadd.f32 %v1458, %v1618
        %v1620 = vpop.f32.mrb[0].mxu0
        %1621 = vmatprep.mubr.bf16.mxu0 %v627
        %1622 = vmatmul.mubr.bf16.gmra.mrb[0].mxu0 %v626
        %v1623 = vpop.f32.mrb[0].mxu0
        %v1624 = vadd.f32 %v1463, %v1623
        %v1625 = vpop.f32.mrb[0].mxu0
        %v1626 = vpop.f32.mrb[0].mxu0
        %v1627 = vadd.f32 %v1466, %v1626
        %v1628 = vpop.f32.mrb[0].mxu0
        %1629 = vmatprep.mubr.bf16.mxu0 %v630
        %1630 = vmatmul.mubr.bf16.gmra.mrb[0].mxu0 %v629
        %v1631 = vpop.f32.mrb[0].mxu0
        %v1632 = vadd.f32 %v1471, %v1631
        %v1633 = vpop.f32.mrb[0].mxu0
        %v1634 = vpop.f32.mrb[0].mxu0
        %v1635 = vadd.f32 %v1474, %v1634
        %v1636 = vpop.f32.mrb[0].mxu0
        %1637 = vmatprep.mubr.bf16.mxu0 %v633
        %1638 = vmatmul.mubr.bf16.gmra.mrb[0].mxu0 %v632
        %v1639 = vpop.f32.mrb[0].mxu0
        %v1640 = vadd.f32 %v1479, %v1639
        %v1641 = vpop.f32.mrb[0].mxu0
        %v1642 = vpop.f32.mrb[0].mxu0
        %v1643 = vadd.f32 %v1482, %v1642
        %v1644 = vpop.f32.mrb[0].mxu0
        %1645 = vmatprep.mubr.bf16.mxu0 %v636
        %1646 = vmatmul.mubr.bf16.gmra.mrb[0].mxu0 %v635
        %v1647 = vpop.f32.mrb[0].mxu0
        %v1648 = vadd.f32 %v1487, %v1647
        %v1649 = vpop.f32.mrb[0].mxu0
        %v1650 = vpop.f32.mrb[0].mxu0
        %v1651 = vadd.f32 %v1490, %v1650
        %v1652 = vpop.f32.mrb[0].mxu0
        %1653 = vmatprep.mubr.bf16.mxu0 %v639
        %1654 = vmatmul.mubr.bf16.gmra.mrb[0].mxu0 %v638
        %v1655 = vpop.f32.mrb[0].mxu0
        %v1656 = vadd.f32 %v1495, %v1655
        %v1657 = vpop.f32.mrb[0].mxu0
        %v1658 = vpop.f32.mrb[0].mxu0
        %v1659 = vadd.f32 %v1498, %v1658
        %v1660 = vpop.f32.mrb[0].mxu0
        %1661 = vmatprep.mubr.bf16.mxu0 %v642
        %1662 = vmatmul.mubr.bf16.gmra.mrb[0].mxu0 %v641
        %v1663 = vpop.f32.mrb[0].mxu0
        %v1664 = vadd.f32 %v1503, %v1663
        %v1665 = vpop.f32.mrb[0].mxu0
        %v1666 = vpop.f32.mrb[0].mxu0
        %v1667 = vadd.f32 %v1506, %v1666
        %v1668 = vpop.f32.mrb[0].mxu0
        %1669 = vmatprep.mubr.bf16.mxu0 %v645
        %1670 = vmatmul.mubr.bf16.gmra.mrb[0].mxu0 %v644
        %v1671 = vpop.f32.mrb[0].mxu0
        %v1672 = vadd.f32 %v1511, %v1671
        %v1673 = vpop.f32.mrb[0].mxu0
        %v1674 = vpop.f32.mrb[0].mxu0
        %v1675 = vadd.f32 %v1514, %v1674
        %v1676 = vpop.f32.mrb[0].mxu0
        %1677 = vmatprep.mubr.bf16.mxu0 %v648
        %1678 = vmatmul.mubr.bf16.gmra.mrb[0].mxu0 %v647
        %v1679 = vpop.f32.mrb[0].mxu0
        %v1680 = vadd.f32 %v1519, %v1679
        %v1681 = vpop.f32.mrb[0].mxu0
        %v1682 = vpop.f32.mrb[0].mxu0
        %v1683 = vadd.f32 %v1522, %v1682
        %v1684 = vpop.f32.mrb[0].mxu0
        %1685 = vmatprep.mubr.bf16.mxu0 %v651
        %1686 = vmatmul.mubr.bf16.gmra.mrb[0].mxu0 %v650
        %v1687 = vpop.f32.mrb[0].mxu0
        %v1688 = vadd.f32 %v1527, %v1687
        %v1689 = vpop.f32.mrb[0].mxu0
        %v1690 = vpop.f32.mrb[0].mxu0
        %v1691 = vadd.f32 %v1530, %v1690
        %v1692 = vpop.f32.mrb[0].mxu0
        %1693 = vmatprep.mubr.bf16.mxu0 %v654
        %1694 = vmatmul.mubr.bf16.gmra.mrb[0].mxu0 %v653
        %v1695 = vpop.f32.mrb[0].mxu0
        %v1696 = vadd.f32 %v1535, %v1695
        %v1697 = vpop.f32.mrb[0].mxu0
        %v1698 = vpop.f32.mrb[0].mxu0
        %v1699 = vadd.f32 %v1538, %v1698
        %v1700 = vpop.f32.mrb[0].mxu0
        %1701 = vmatprep.mubr.bf16.mxu0 %v657
        %1702 = vmatmul.mubr.bf16.gmra.mrb[0].mxu0 %v656
        %v1703 = vpop.f32.mrb[0].mxu0
        %v1704 = vadd.f32 %v1543, %v1703
        %v1705 = vpop.f32.mrb[0].mxu0
        %v1706 = vpop.f32.mrb[0].mxu0
        %v1707 = vadd.f32 %v1546, %v1706
        %v1708 = vpop.f32.mrb[0].mxu0
        %1709 = vmatprep.mubr.bf16.mxu0 %v660
        %1710 = vmatmul.mubr.bf16.gmra.mrb[0].mxu0 %v659
        %v1711 = vpop.f32.mrb[0].mxu0
        %v1712 = vadd.f32 %v1551, %v1711
        %v1713 = vpop.f32.mrb[0].mxu0
        %v1714 = vpop.f32.mrb[0].mxu0
        %v1715 = vadd.f32 %v1554, %v1714
        %v1716 = vpop.f32.mrb[0].mxu0
        %1717 = vmatprep.mubr.bf16.mxu0 %v663
        %1718 = vmatmul.mubr.bf16.gmra.mrb[0].mxu0 %v662
        %v1719 = vpop.f32.mrb[0].mxu0
        %v1720 = vadd.f32 %v1559, %v1719
        %v1721 = vpop.f32.mrb[0].mxu0
        %v1722 = vpop.f32.mrb[0].mxu0
        %v1723 = vadd.f32 %v1562, %v1722
        %v1724 = vpop.f32.mrb[0].mxu0
        %1725 = vdwg.mxu0
        %1726 = vmatprep.subr.bf16.mxu0 0
        %1727 = vmatpush1.bf16.msra.mxu0 %v1147
        %1728 = vmatprep.subr.bf16.mxu0 0
        %1729 = vmatpush1.bf16.msra.mxu0 %v1148
        %1730 = vmatprep.subr.bf16.mxu0 0
        %1731 = vmatpush1.bf16.msra.mxu0 %v1149
        %1732 = vmatprep.subr.bf16.mxu0 0
        %1733 = vmatpush1.bf16.msra.mxu0 %v1150
        %1734 = vmatprep.subr.bf16.mxu0 0
        %1735 = vmatpush1.bf16.msra.mxu0 %v1151
        %1736 = vmatprep.subr.bf16.mxu0 0
        %1737 = vmatpush1.bf16.msra.mxu0 %v1152
        %1738 = vmatprep.subr.bf16.mxu0 0
        %1739 = vmatpush1.bf16.msra.mxu0 %v1153
        %1740 = vmatprep.subr.bf16.mxu0 0
        %1741 = vmatpush1.bf16.msra.mxu0 %v1154
        %1742 = vmatprep.subr.bf16.mxu0 0
        %1743 = vmatpush1.bf16.msra.mxu0 %v1155
        %1744 = vmatprep.subr.bf16.mxu0 0
        %1745 = vmatpush1.bf16.msra.mxu0 %v1156
        %1746 = vmatprep.subr.bf16.mxu0 0
        %1747 = vmatpush1.bf16.msra.mxu0 %v1157
        %1748 = vmatprep.subr.bf16.mxu0 0
        %1749 = vmatpush1.bf16.msra.mxu0 %v1158
        %1750 = vmatprep.subr.bf16.mxu0 0
        %1751 = vmatpush1.bf16.msra.mxu0 %v1159
        %1752 = vmatprep.subr.bf16.mxu0 0
        %1753 = vmatpush1.bf16.msra.mxu0 %v1160
        %1754 = vmatprep.subr.bf16.mxu0 0
        %1755 = vmatpush1.bf16.msra.mxu0 %v1161
        %1756 = vmatprep.subr.bf16.mxu0 0
        %1757 = vmatpush1.bf16.msra.mxu0 %v1162
        %1758 = vmatprep.mubr.bf16.mxu0 %v620
        %1759 = vmatmul.mubr.bf16.gmra.mrb[0].mxu0 %v619
        %v1760 = vpop.f32.mrb[0].mxu0
        %v1761 = vadd.f32 %v1600, %v1760
        %v1762 = vpop.f32.mrb[0].mxu0
        %v1763 = vpop.f32.mrb[0].mxu0
        %v1764 = vadd.f32 %v1603, %v1763
        %v1765 = vpop.f32.mrb[0].mxu0
        %1766 = vmatprep.mubr.bf16.mxu0 %v623
        %1767 = vmatmul.mubr.bf16.gmra.mrb[0].mxu0 %v622
        %v1768 = vpop.f32.mrb[0].mxu0
        %v1769 = vadd.f32 %v1608, %v1768
        %v1770 = vpop.f32.mrb[0].mxu0
        %v1771 = vpop.f32.mrb[0].mxu0
        %v1772 = vadd.f32 %v1611, %v1771
        %v1773 = vpop.f32.mrb[0].mxu0
        %1774 = vmatprep.mubr.bf16.mxu0 %v626
        %1775 = vmatmul.mubr.bf16.gmra.mrb[0].mxu0 %v625
        %v1776 = vpop.f32.mrb[0].mxu0
        %v1777 = vadd.f32 %v1616, %v1776
        %v1778 = vpop.f32.mrb[0].mxu0
        %v1779 = vpop.f32.mrb[0].mxu0
        %v1780 = vadd.f32 %v1619, %v1779
        %v1781 = vpop.f32.mrb[0].mxu0
        %1782 = vmatprep.mubr.bf16.mxu0 %v629
        %1783 = vmatmul.mubr.bf16.gmra.mrb[0].mxu0 %v628
        %v1784 = vpop.f32.mrb[0].mxu0
        %v1785 = vadd.f32 %v1624, %v1784
        %v1786 = vpop.f32.mrb[0].mxu0
        %v1787 = vpop.f32.mrb[0].mxu0
        %v1788 = vadd.f32 %v1627, %v1787
        %v1789 = vpop.f32.mrb[0].mxu0
        %1790 = vmatprep.mubr.bf16.mxu0 %v632
        %1791 = vmatmul.mubr.bf16.gmra.mrb[0].mxu0 %v631
        %v1792 = vpop.f32.mrb[0].mxu0
        %v1793 = vadd.f32 %v1632, %v1792
        %v1794 = vpop.f32.mrb[0].mxu0
        %v1795 = vpop.f32.mrb[0].mxu0
        %v1796 = vadd.f32 %v1635, %v1795
        %v1797 = vpop.f32.mrb[0].mxu0
        %1798 = vmatprep.mubr.bf16.mxu0 %v635
        %1799 = vmatmul.mubr.bf16.gmra.mrb[0].mxu0 %v634
        %v1800 = vpop.f32.mrb[0].mxu0
        %v1801 = vadd.f32 %v1640, %v1800
        %v1802 = vpop.f32.mrb[0].mxu0
        %v1803 = vpop.f32.mrb[0].mxu0
        %v1804 = vadd.f32 %v1643, %v1803
        %v1805 = vpop.f32.mrb[0].mxu0
        %1806 = vmatprep.mubr.bf16.mxu0 %v638
        %1807 = vmatmul.mubr.bf16.gmra.mrb[0].mxu0 %v637
        %v1808 = vpop.f32.mrb[0].mxu0
        %v1809 = vadd.f32 %v1648, %v1808
        %v1810 = vpop.f32.mrb[0].mxu0
        %v1811 = vpop.f32.mrb[0].mxu0
        %v1812 = vadd.f32 %v1651, %v1811
        %v1813 = vpop.f32.mrb[0].mxu0
        %1814 = vmatprep.mubr.bf16.mxu0 %v641
        %1815 = vmatmul.mubr.bf16.gmra.mrb[0].mxu0 %v640
        %v1816 = vpop.f32.mrb[0].mxu0
        %v1817 = vadd.f32 %v1656, %v1816
        %v1818 = vpop.f32.mrb[0].mxu0
        %v1819 = vpop.f32.mrb[0].mxu0
        %v1820 = vadd.f32 %v1659, %v1819
        %v1821 = vpop.f32.mrb[0].mxu0
        %1822 = vmatprep.mubr.bf16.mxu0 %v644
        %1823 = vmatmul.mubr.bf16.gmra.mrb[0].mxu0 %v643
        %v1824 = vpop.f32.mrb[0].mxu0
        %v1825 = vadd.f32 %v1664, %v1824
        %v1826 = vpop.f32.mrb[0].mxu0
        %v1827 = vpop.f32.mrb[0].mxu0
        %v1828 = vadd.f32 %v1667, %v1827
        %v1829 = vpop.f32.mrb[0].mxu0
        %1830 = vmatprep.mubr.bf16.mxu0 %v647
        %1831 = vmatmul.mubr.bf16.gmra.mrb[0].mxu0 %v646
        %v1832 = vpop.f32.mrb[0].mxu0
        %v1833 = vadd.f32 %v1672, %v1832
        %v1834 = vpop.f32.mrb[0].mxu0
        %v1835 = vpop.f32.mrb[0].mxu0
        %v1836 = vadd.f32 %v1675, %v1835
        %v1837 = vpop.f32.mrb[0].mxu0
        %1838 = vmatprep.mubr.bf16.mxu0 %v650
        %1839 = vmatmul.mubr.bf16.gmra.mrb[0].mxu0 %v649
        %v1840 = vpop.f32.mrb[0].mxu0
        %v1841 = vadd.f32 %v1680, %v1840
        %v1842 = vpop.f32.mrb[0].mxu0
        %v1843 = vpop.f32.mrb[0].mxu0
        %v1844 = vadd.f32 %v1683, %v1843
        %v1845 = vpop.f32.mrb[0].mxu0
        %1846 = vmatprep.mubr.bf16.mxu0 %v653
        %1847 = vmatmul.mubr.bf16.gmra.mrb[0].mxu0 %v652
        %v1848 = vpop.f32.mrb[0].mxu0
        %v1849 = vadd.f32 %v1688, %v1848
        %v1850 = vpop.f32.mrb[0].mxu0
        %v1851 = vpop.f32.mrb[0].mxu0
        %v1852 = vadd.f32 %v1691, %v1851
        %v1853 = vpop.f32.mrb[0].mxu0
        %1854 = vmatprep.mubr.bf16.mxu0 %v656
        %1855 = vmatmul.mubr.bf16.gmra.mrb[0].mxu0 %v655
        %v1856 = vpop.f32.mrb[0].mxu0
        %v1857 = vadd.f32 %v1696, %v1856
        %v1858 = vpop.f32.mrb[0].mxu0
        %v1859 = vpop.f32.mrb[0].mxu0
        %v1860 = vadd.f32 %v1699, %v1859
        %v1861 = vpop.f32.mrb[0].mxu0
        %1862 = vmatprep.mubr.bf16.mxu0 %v659
        %1863 = vmatmul.mubr.bf16.gmra.mrb[0].mxu0 %v658
        %v1864 = vpop.f32.mrb[0].mxu0
        %v1865 = vadd.f32 %v1704, %v1864
        %v1866 = vpop.f32.mrb[0].mxu0
        %v1867 = vpop.f32.mrb[0].mxu0
        %v1868 = vadd.f32 %v1707, %v1867
        %v1869 = vpop.f32.mrb[0].mxu0
        %1870 = vmatprep.mubr.bf16.mxu0 %v662
        %1871 = vmatmul.mubr.bf16.gmra.mrb[0].mxu0 %v661
        %v1872 = vpop.f32.mrb[0].mxu0
        %v1873 = vadd.f32 %v1712, %v1872
        %v1874 = vpop.f32.mrb[0].mxu0
        %v1875 = vpop.f32.mrb[0].mxu0
        %v1876 = vadd.f32 %v1715, %v1875
        %v1877 = vpop.f32.mrb[0].mxu0
        %1878 = vmatprep.mubr.bf16.mxu0 %v665
        %1879 = vmatmul.mubr.bf16.gmra.mrb[0].mxu0 %v664
        %v1880 = vpop.f32.mrb[0].mxu0
        %v1881 = vadd.f32 %v1720, %v1880
        %v1882 = vpop.f32.mrb[0].mxu0
        %v1883 = vpop.f32.mrb[0].mxu0
        %v1884 = vadd.f32 %v1723, %v1883
        %v1885 = vpop.f32.mrb[0].mxu0
        %1886 = vdwg.mxu0
        %1887 = vmatprep.subr.bf16.mxu0 0
        %1888 = vmatpush1.bf16.msra.mxu0 %v1163
        %1889 = vmatprep.subr.bf16.mxu0 0
        %1890 = vmatpush1.bf16.msra.mxu0 %v1164
        %1891 = vmatprep.subr.bf16.mxu0 0
        %1892 = vmatpush1.bf16.msra.mxu0 %v1165
        %1893 = vmatprep.subr.bf16.mxu0 0
        %1894 = vmatpush1.bf16.msra.mxu0 %v1166
        %1895 = vmatprep.subr.bf16.mxu0 0
        %1896 = vmatpush1.bf16.msra.mxu0 %v1167
        %1897 = vmatprep.subr.bf16.mxu0 0
        %1898 = vmatpush1.bf16.msra.mxu0 %v1168
        %1899 = vmatprep.subr.bf16.mxu0 0
        %1900 = vmatpush1.bf16.msra.mxu0 %v1169
        %1901 = vmatprep.subr.bf16.mxu0 0
        %1902 = vmatpush1.bf16.msra.mxu0 %v1170
        %1903 = vmatprep.subr.bf16.mxu0 0
        %1904 = vmatpush1.bf16.msra.mxu0 0
        %1905 = vmatprep.subr.bf16.mxu0 0
        %1906 = vmatpush1.bf16.msra.mxu0 0
        %1907 = vmatprep.subr.bf16.mxu0 0
        %1908 = vmatpush1.bf16.msra.mxu0 0
        %1909 = vmatprep.subr.bf16.mxu0 0
        %1910 = vmatpush1.bf16.msra.mxu0 0
        %1911 = vmatprep.subr.bf16.mxu0 0
        %1912 = vmatpush1.bf16.msra.mxu0 0
        %1913 = vmatprep.subr.bf16.mxu0 0
        %1914 = vmatpush1.bf16.msra.mxu0 0
        %1915 = vmatprep.subr.bf16.mxu0 0
        %1916 = vmatpush1.bf16.msra.mxu0 0
        %1917 = vmatprep.subr.bf16.mxu0 0
        %1918 = vmatpush1.bf16.msra.mxu0 0
        %1919 = vmatprep.mubr.bf16.mxu0 0
        %1920 = vmatmul.mubr.bf16.gmra.mrb[0].mxu0 %v621
        %v1921 = vpop.f32.mrb[0].mxu0
        %v1922 = vadd.f32 %v1761, %v1921
        %v1923 = vpop.f32.mrb[0].mxu0
        %v1924 = vpop.f32.mrb[0].mxu0
        %v1925 = vadd.f32 %v1764, %v1924
        %v1926 = vpop.f32.mrb[0].mxu0
        %1927 = vmatprep.mubr.bf16.mxu0 0
        %1928 = vmatmul.mubr.bf16.gmra.mrb[0].mxu0 %v624
        %v1929 = vpop.f32.mrb[0].mxu0
        %v1930 = vadd.f32 %v1769, %v1929
        %v1931 = vpop.f32.mrb[0].mxu0
        %v1932 = vpop.f32.mrb[0].mxu0
        %v1933 = vadd.f32 %v1772, %v1932
        %v1934 = vpop.f32.mrb[0].mxu0
        %1935 = vmatprep.mubr.bf16.mxu0 0
        %1936 = vmatmul.mubr.bf16.gmra.mrb[0].mxu0 %v627
        %v1937 = vpop.f32.mrb[0].mxu0
        %v1938 = vadd.f32 %v1777, %v1937
        %v1939 = vpop.f32.mrb[0].mxu0
        %v1940 = vpop.f32.mrb[0].mxu0
        %v1941 = vadd.f32 %v1780, %v1940
        %v1942 = vpop.f32.mrb[0].mxu0
        %1943 = vmatprep.mubr.bf16.mxu0 0
        %1944 = vmatmul.mubr.bf16.gmra.mrb[0].mxu0 %v630
        %v1945 = vpop.f32.mrb[0].mxu0
        %v1946 = vadd.f32 %v1785, %v1945
        %v1947 = vpop.f32.mrb[0].mxu0
        %v1948 = vpop.f32.mrb[0].mxu0
        %v1949 = vadd.f32 %v1788, %v1948
        %v1950 = vpop.f32.mrb[0].mxu0
        %1951 = vmatprep.mubr.bf16.mxu0 0
        %1952 = vmatmul.mubr.bf16.gmra.mrb[0].mxu0 %v633
        %v1953 = vpop.f32.mrb[0].mxu0
        %v1954 = vadd.f32 %v1793, %v1953
        %v1955 = vpop.f32.mrb[0].mxu0
        %v1956 = vpop.f32.mrb[0].mxu0
        %v1957 = vadd.f32 %v1796, %v1956
        %v1958 = vpop.f32.mrb[0].mxu0
        %1959 = vmatprep.mubr.bf16.mxu0 0
        %1960 = vmatmul.mubr.bf16.gmra.mrb[0].mxu0 %v636
        %v1961 = vpop.f32.mrb[0].mxu0
        %v1962 = vadd.f32 %v1801, %v1961
        %v1963 = vpop.f32.mrb[0].mxu0
        %v1964 = vpop.f32.mrb[0].mxu0
        %v1965 = vadd.f32 %v1804, %v1964
        %v1966 = vpop.f32.mrb[0].mxu0
        %1967 = vmatprep.mubr.bf16.mxu0 0
        %1968 = vmatmul.mubr.bf16.gmra.mrb[0].mxu0 %v639
        %v1969 = vpop.f32.mrb[0].mxu0
        %v1970 = vadd.f32 %v1809, %v1969
        %v1971 = vpop.f32.mrb[0].mxu0
        %v1972 = vpop.f32.mrb[0].mxu0
        %v1973 = vadd.f32 %v1812, %v1972
        %v1974 = vpop.f32.mrb[0].mxu0
        %1975 = vmatprep.mubr.bf16.mxu0 0
        %1976 = vmatmul.mubr.bf16.gmra.mrb[0].mxu0 %v642
        %v1977 = vpop.f32.mrb[0].mxu0
        %v1978 = vadd.f32 %v1817, %v1977
        %v1979 = vpop.f32.mrb[0].mxu0
        %v1980 = vpop.f32.mrb[0].mxu0
        %v1981 = vadd.f32 %v1820, %v1980
        %v1982 = vpop.f32.mrb[0].mxu0
        %1983 = vmatprep.mubr.bf16.mxu0 0
        %1984 = vmatmul.mubr.bf16.gmra.mrb[0].mxu0 %v645
        %v1985 = vpop.f32.mrb[0].mxu0
        %v1986 = vadd.f32 %v1825, %v1985
        %v1987 = vpop.f32.mrb[0].mxu0
        %v1988 = vpop.f32.mrb[0].mxu0
        %v1989 = vadd.f32 %v1828, %v1988
        %v1990 = vpop.f32.mrb[0].mxu0
        %1991 = vmatprep.mubr.bf16.mxu0 0
        %1992 = vmatmul.mubr.bf16.gmra.mrb[0].mxu0 %v648
        %v1993 = vpop.f32.mrb[0].mxu0
        %v1994 = vadd.f32 %v1833, %v1993
        %v1995 = vpop.f32.mrb[0].mxu0
        %v1996 = vpop.f32.mrb[0].mxu0
        %v1997 = vadd.f32 %v1836, %v1996
        %v1998 = vpop.f32.mrb[0].mxu0
        %1999 = vmatprep.mubr.bf16.mxu0 0
        %2000 = vmatmul.mubr.bf16.gmra.mrb[0].mxu0 %v651
        %v2001 = vpop.f32.mrb[0].mxu0
        %v2002 = vadd.f32 %v1841, %v2001
        %v2003 = vpop.f32.mrb[0].mxu0
        %v2004 = vpop.f32.mrb[0].mxu0
        %v2005 = vadd.f32 %v1844, %v2004
        %v2006 = vpop.f32.mrb[0].mxu0
        %2007 = vmatprep.mubr.bf16.mxu0 0
        %2008 = vmatmul.mubr.bf16.gmra.mrb[0].mxu0 %v654
        %v2009 = vpop.f32.mrb[0].mxu0
        %v2010 = vadd.f32 %v1849, %v2009
        %v2011 = vpop.f32.mrb[0].mxu0
        %v2012 = vpop.f32.mrb[0].mxu0
        %v2013 = vadd.f32 %v1852, %v2012
        %v2014 = vpop.f32.mrb[0].mxu0
        %2015 = vmatprep.mubr.bf16.mxu0 0
        %2016 = vmatmul.mubr.bf16.gmra.mrb[0].mxu0 %v657
        %v2017 = vpop.f32.mrb[0].mxu0
        %v2018 = vadd.f32 %v1857, %v2017
        %v2019 = vpop.f32.mrb[0].mxu0
        %v2020 = vpop.f32.mrb[0].mxu0
        %v2021 = vadd.f32 %v1860, %v2020
        %v2022 = vpop.f32.mrb[0].mxu0
        %2023 = vmatprep.mubr.bf16.mxu0 0
        %2024 = vmatmul.mubr.bf16.gmra.mrb[0].mxu0 %v660
        %v2025 = vpop.f32.mrb[0].mxu0
        %v2026 = vadd.f32 %v1865, %v2025
        %v2027 = vpop.f32.mrb[0].mxu0
        %v2028 = vpop.f32.mrb[0].mxu0
        %v2029 = vadd.f32 %v1868, %v2028
        %v2030 = vpop.f32.mrb[0].mxu0
        %2031 = vmatprep.mubr.bf16.mxu0 0
        %2032 = vmatmul.mubr.bf16.gmra.mrb[0].mxu0 %v663
        %v2033 = vpop.f32.mrb[0].mxu0
        %v2034 = vadd.f32 %v1873, %v2033
        %v2035 = vpop.f32.mrb[0].mxu0
        %v2036 = vpop.f32.mrb[0].mxu0
        %v2037 = vadd.f32 %v1876, %v2036
        %v2038 = vpop.f32.mrb[0].mxu0
        %2039 = vmatprep.mubr.bf16.mxu0 0
        %2040 = vmatmul.mubr.bf16.gmra.mrb[0].mxu0 %v666
        %v2041 = vpop.f32.mrb[0].mxu0
        %v2042 = vadd.f32 %v1881, %v2041
        %v2043 = vpop.f32.mrb[0].mxu0
        %v2044 = vpop.f32.mrb[0].mxu0
        %v2045 = vadd.f32 %v1884, %v2044
        %v2046 = vpop.f32.mrb[0].mxu0
        %2047 = vdwg.mxu0
        %v2048 = vmax.f32 %v1922, 0.0
        %v2049 = vmax.f32 %v1925, 0.0
        %v2050 = vmax.f32 %v1930, 0.0
        %v2051 = vmax.f32 %v1933, 0.0
        %v2052 = vmax.f32 %v1938, 0.0
        %v2053 = vmax.f32 %v1941, 0.0
        %v2054 = vmax.f32 %v1946, 0.0
        %v2055 = vmax.f32 %v1949, 0.0
        %v2056 = vmax.f32 %v1954, 0.0
        %v2057 = vmax.f32 %v1957, 0.0
        %v2058 = vmax.f32 %v1962, 0.0
        %v2059 = vmax.f32 %v1965, 0.0
        %v2060 = vmax.f32 %v1970, 0.0
        %v2061 = vmax.f32 %v1973, 0.0
        %v2062 = vmax.f32 %v1978, 0.0
        %v2063 = vmax.f32 %v1981, 0.0
        %v2064 = vmax.f32 %v1986, 0.0
        %v2065 = vmax.f32 %v1989, 0.0
        %v2066 = vmax.f32 %v1994, 0.0
        %v2067 = vmax.f32 %v1997, 0.0
        %v2068 = vmax.f32 %v2002, 0.0
        %v2069 = vmax.f32 %v2005, 0.0
        %v2070 = vmax.f32 %v2010, 0.0
        %v2071 = vmax.f32 %v2013, 0.0
        %v2072 = vmax.f32 %v2018, 0.0
        %v2073 = vmax.f32 %v2021, 0.0
        %v2074 = vmax.f32 %v2026, 0.0
        %v2075 = vmax.f32 %v2029, 0.0
        %v2076 = vmax.f32 %v2034, 0.0
        %v2077 = vmax.f32 %v2037, 0.0
        %v2078 = vmax.f32 %v2042, 0.0
        %v2079 = vmax.f32 %v2045, 0.0
        %v2080 = vld [vmem:[%s3] sm:$0xf]
        %v2081 = vld [vmem:[%s3 + $0x4] sm:$0xf]
        %v2082 = vld [vmem:[%s3 + $0x8] sm:$0xf]
        %v2083 = vld [vmem:[%s3 + $0xc] sm:$0xf]
        %v2084 = vld [vmem:[%s3 + $0x10] sm:$0xf]
        %v2085 = vld [vmem:[%s3 + $0x14] sm:$0xf]
        %v2086 = vld [vmem:[%s3 + $0x18] sm:$0xf]
        %v2087 = vld [vmem:[%s3 + $0x1c] sm:$0xf]
        %v2088 = vld [vmem:[%s3 + $0x20] sm:$0xf]
        %v2089 = vld [vmem:[%s3 + $0x24] sm:$0xf]
        %v2090 = vld [vmem:[%s3 + $0x28] sm:$0xf]
        %v2091 = vld [vmem:[%s3 + $0x2c] sm:$0xf]
        %v2092 = vld [vmem:[%s3 + $0x30] sm:$0xf]
        %v2093 = vld [vmem:[%s3 + $0x34] sm:$0xf]
        %v2094 = vld [vmem:[%s3 + $0x38] sm:$0xf]
        %v2095 = vld [vmem:[%s3 + $0x3c] sm:$0xf]
        %v2112 = vunpack.c.l.b16 %v2080
        %v2113 = vunpack.c.l.b16 %v2081
        %v2114 = vunpack.c.l.b16 %v2082
        %v2115 = vunpack.c.l.b16 %v2083
        %v2116 = vunpack.c.l.b16 %v2084
        %v2117 = vunpack.c.l.b16 %v2085
        %v2118 = vunpack.c.l.b16 %v2086
        %v2119 = vunpack.c.l.b16 %v2087
        %v2120 = vunpack.c.l.b16 %v2088
        %v2121 = vunpack.c.l.b16 %v2089
        %v2122 = vunpack.c.l.b16 %v2090
        %v2123 = vunpack.c.l.b16 %v2091
        %v2124 = vunpack.c.l.b16 %v2092
        %v2125 = vunpack.c.l.b16 %v2093
        %v2126 = vunpack.c.l.b16 %v2094
        %v2127 = vunpack.c.l.b16 %v2095
        %v2128 = vpack.c.b16 %v2113, %v2112
        %v2129 = vpack.c.b16 %v2115, %v2114
        %v2130 = vpack.c.b16 %v2117, %v2116
        %v2131 = vpack.c.b16 %v2119, %v2118
        %v2132 = vpack.c.b16 %v2121, %v2120
        %v2133 = vpack.c.b16 %v2123, %v2122
        %v2134 = vpack.c.b16 %v2125, %v2124
        %v2135 = vpack.c.b16 %v2127, %v2126
        %2144 = vmatprep.subr.bf16.mxu0 0
        %2145 = vmatpush1.bf16.msra.mxu0 %v2128
        %2146 = vmatprep.subr.bf16.mxu0 0
        %2147 = vmatpush1.bf16.msra.mxu0 %v2129
        %2148 = vmatprep.subr.bf16.mxu0 0
        %2149 = vmatpush1.bf16.msra.mxu0 %v2130
        %2150 = vmatprep.subr.bf16.mxu0 0
        %2151 = vmatpush1.bf16.msra.mxu0 %v2131
        %2152 = vmatprep.subr.bf16.mxu0 0
        %2153 = vmatpush1.bf16.msra.mxu0 %v2132
        %2154 = vmatprep.subr.bf16.mxu0 0
        %2155 = vmatpush1.bf16.msra.mxu0 %v2133
        %2156 = vmatprep.subr.bf16.mxu0 0
        %2157 = vmatpush1.bf16.msra.mxu0 %v2134
        %2158 = vmatprep.subr.bf16.mxu0 0
        %2159 = vmatpush1.bf16.msra.mxu0 %v2135
        %2160 = vmatprep.subr.bf16.mxu0 0
        %2161 = vmatpush1.bf16.msra.mxu0 0
        %2162 = vmatprep.subr.bf16.mxu0 0
        %2163 = vmatpush1.bf16.msra.mxu0 0
        %2164 = vmatprep.subr.bf16.mxu0 0
        %2165 = vmatpush1.bf16.msra.mxu0 0
        %2166 = vmatprep.subr.bf16.mxu0 0
        %2167 = vmatpush1.bf16.msra.mxu0 0
        %2168 = vmatprep.subr.bf16.mxu0 0
        %2169 = vmatpush1.bf16.msra.mxu0 0
        %2170 = vmatprep.subr.bf16.mxu0 0
        %2171 = vmatpush1.bf16.msra.mxu0 0
        %2172 = vmatprep.subr.bf16.mxu0 0
        %2173 = vmatpush1.bf16.msra.mxu0 0
        %2174 = vmatprep.subr.bf16.mxu0 0
        %2175 = vmatpush1.bf16.msra.mxu0 0
        %2176 = vmatprep.mubr.bf16.mxu0 0
        %2177 = vmatmul.mubr.bf16.gmra.mrb[0].mxu0 %v617
        %v2178 = vpop.f32.mrb[0].mxu0
        %v2179 = vadd.f32 0.0, %v2178
        %v2180 = vpop.f32.mrb[0].mxu0
        %v2181 = vpop.f32.mrb[0].mxu0
        %v2182 = vadd.f32 0.0, %v2181
        %v2183 = vpop.f32.mrb[0].mxu0
        %2184 = vmatprep.mubr.bf16.mxu0 0
        %2185 = vmatmul.mubr.bf16.gmra.mrb[0].mxu0 %v620
        %v2186 = vpop.f32.mrb[0].mxu0
        %v2187 = vadd.f32 0.0, %v2186
        %v2188 = vpop.f32.mrb[0].mxu0
        %v2189 = vpop.f32.mrb[0].mxu0
        %v2190 = vadd.f32 0.0, %v2189
        %v2191 = vpop.f32.mrb[0].mxu0
        %2192 = vmatprep.mubr.bf16.mxu0 0
        %2193 = vmatmul.mubr.bf16.gmra.mrb[0].mxu0 %v623
        %v2194 = vpop.f32.mrb[0].mxu0
        %v2195 = vadd.f32 0.0, %v2194
        %v2196 = vpop.f32.mrb[0].mxu0
        %v2197 = vpop.f32.mrb[0].mxu0
        %v2198 = vadd.f32 0.0, %v2197
        %v2199 = vpop.f32.mrb[0].mxu0
        %2200 = vmatprep.mubr.bf16.mxu0 0
        %2201 = vmatmul.mubr.bf16.gmra.mrb[0].mxu0 %v626
        %v2202 = vpop.f32.mrb[0].mxu0
        %v2203 = vadd.f32 0.0, %v2202
        %v2204 = vpop.f32.mrb[0].mxu0
        %v2205 = vpop.f32.mrb[0].mxu0
        %v2206 = vadd.f32 0.0, %v2205
        %v2207 = vpop.f32.mrb[0].mxu0
        %2208 = vmatprep.mubr.bf16.mxu0 0
        %2209 = vmatmul.mubr.bf16.gmra.mrb[0].mxu0 %v629
        %v2210 = vpop.f32.mrb[0].mxu0
        %v2211 = vadd.f32 0.0, %v2210
        %v2212 = vpop.f32.mrb[0].mxu0
        %v2213 = vpop.f32.mrb[0].mxu0
        %v2214 = vadd.f32 0.0, %v2213
        %v2215 = vpop.f32.mrb[0].mxu0
        %2216 = vmatprep.mubr.bf16.mxu0 0
        %2217 = vmatmul.mubr.bf16.gmra.mrb[0].mxu0 %v632
        %v2218 = vpop.f32.mrb[0].mxu0
        %v2219 = vadd.f32 0.0, %v2218
        %v2220 = vpop.f32.mrb[0].mxu0
        %v2221 = vpop.f32.mrb[0].mxu0
        %v2222 = vadd.f32 0.0, %v2221
        %v2223 = vpop.f32.mrb[0].mxu0
        %2224 = vmatprep.mubr.bf16.mxu0 0
        %2225 = vmatmul.mubr.bf16.gmra.mrb[0].mxu0 %v635
        %v2226 = vpop.f32.mrb[0].mxu0
        %v2227 = vadd.f32 0.0, %v2226
        %v2228 = vpop.f32.mrb[0].mxu0
        %v2229 = vpop.f32.mrb[0].mxu0
        %v2230 = vadd.f32 0.0, %v2229
        %v2231 = vpop.f32.mrb[0].mxu0
        %2232 = vmatprep.mubr.bf16.mxu0 0
        %2233 = vmatmul.mubr.bf16.gmra.mrb[0].mxu0 %v638
        %v2234 = vpop.f32.mrb[0].mxu0
        %v2235 = vadd.f32 0.0, %v2234
        %v2236 = vpop.f32.mrb[0].mxu0
        %v2237 = vpop.f32.mrb[0].mxu0
        %v2238 = vadd.f32 0.0, %v2237
        %v2239 = vpop.f32.mrb[0].mxu0
        %2240 = vmatprep.mubr.bf16.mxu0 0
        %2241 = vmatmul.mubr.bf16.gmra.mrb[0].mxu0 %v641
        %v2242 = vpop.f32.mrb[0].mxu0
        %v2243 = vadd.f32 0.0, %v2242
        %v2244 = vpop.f32.mrb[0].mxu0
        %v2245 = vpop.f32.mrb[0].mxu0
        %v2246 = vadd.f32 0.0, %v2245
        %v2247 = vpop.f32.mrb[0].mxu0
        %2248 = vmatprep.mubr.bf16.mxu0 0
        %2249 = vmatmul.mubr.bf16.gmra.mrb[0].mxu0 %v644
        %v2250 = vpop.f32.mrb[0].mxu0
        %v2251 = vadd.f32 0.0, %v2250
        %v2252 = vpop.f32.mrb[0].mxu0
        %v2253 = vpop.f32.mrb[0].mxu0
        %v2254 = vadd.f32 0.0, %v2253
        %v2255 = vpop.f32.mrb[0].mxu0
        %2256 = vmatprep.mubr.bf16.mxu0 0
        %2257 = vmatmul.mubr.bf16.gmra.mrb[0].mxu0 %v647
        %v2258 = vpop.f32.mrb[0].mxu0
        %v2259 = vadd.f32 0.0, %v2258
        %v2260 = vpop.f32.mrb[0].mxu0
        %v2261 = vpop.f32.mrb[0].mxu0
        %v2262 = vadd.f32 0.0, %v2261
        %v2263 = vpop.f32.mrb[0].mxu0
        %2264 = vmatprep.mubr.bf16.mxu0 0
        %2265 = vmatmul.mubr.bf16.gmra.mrb[0].mxu0 %v650
        %v2266 = vpop.f32.mrb[0].mxu0
        %v2267 = vadd.f32 0.0, %v2266
        %v2268 = vpop.f32.mrb[0].mxu0
        %v2269 = vpop.f32.mrb[0].mxu0
        %v2270 = vadd.f32 0.0, %v2269
        %v2271 = vpop.f32.mrb[0].mxu0
        %2272 = vmatprep.mubr.bf16.mxu0 0
        %2273 = vmatmul.mubr.bf16.gmra.mrb[0].mxu0 %v653
        %v2274 = vpop.f32.mrb[0].mxu0
        %v2275 = vadd.f32 0.0, %v2274
        %v2276 = vpop.f32.mrb[0].mxu0
        %v2277 = vpop.f32.mrb[0].mxu0
        %v2278 = vadd.f32 0.0, %v2277
        %v2279 = vpop.f32.mrb[0].mxu0
        %2280 = vmatprep.mubr.bf16.mxu0 0
        %2281 = vmatmul.mubr.bf16.gmra.mrb[0].mxu0 %v656
        %v2282 = vpop.f32.mrb[0].mxu0
        %v2283 = vadd.f32 0.0, %v2282
        %v2284 = vpop.f32.mrb[0].mxu0
        %v2285 = vpop.f32.mrb[0].mxu0
        %v2286 = vadd.f32 0.0, %v2285
        %v2287 = vpop.f32.mrb[0].mxu0
        %2288 = vmatprep.mubr.bf16.mxu0 0
        %2289 = vmatmul.mubr.bf16.gmra.mrb[0].mxu0 %v659
        %v2290 = vpop.f32.mrb[0].mxu0
        %v2291 = vadd.f32 0.0, %v2290
        %v2292 = vpop.f32.mrb[0].mxu0
        %v2293 = vpop.f32.mrb[0].mxu0
        %v2294 = vadd.f32 0.0, %v2293
        %v2295 = vpop.f32.mrb[0].mxu0
        %2296 = vmatprep.mubr.bf16.mxu0 0
        %2297 = vmatmul.mubr.bf16.gmra.mrb[0].mxu0 %v662
        %v2298 = vpop.f32.mrb[0].mxu0
        %v2299 = vadd.f32 0.0, %v2298
        %v2300 = vpop.f32.mrb[0].mxu0
        %v2301 = vpop.f32.mrb[0].mxu0
        %v2302 = vadd.f32 0.0, %v2301
        %v2303 = vpop.f32.mrb[0].mxu0
        %2304 = vdwg.mxu0
        %v2305 = vld [vmem:[%s4] sm:$0x1]
        %v2307 = vlaneseq
        %v2308 = vshrl.u32 %v2307, 7
        %v2309 = vsub.s32 0, %v2308
        %v2310 = vrot.slane %v2305, %v2309
        %v2312 = vmul.f32 %v2179, %v2310
        %v2313 = vmul.f32 %v2182, %v2310
        %v2314 = vmul.f32 %v2187, %v2310
        %v2315 = vmul.f32 %v2190, %v2310
        %v2316 = vmul.f32 %v2195, %v2310
        %v2317 = vmul.f32 %v2198, %v2310
        %v2318 = vmul.f32 %v2203, %v2310
        %v2319 = vmul.f32 %v2206, %v2310
        %v2320 = vmul.f32 %v2211, %v2310
        %v2321 = vmul.f32 %v2214, %v2310
        %v2322 = vmul.f32 %v2219, %v2310
        %v2323 = vmul.f32 %v2222, %v2310
        %v2324 = vmul.f32 %v2227, %v2310
        %v2325 = vmul.f32 %v2230, %v2310
        %v2326 = vmul.f32 %v2235, %v2310
        %v2327 = vmul.f32 %v2238, %v2310
        %v2328 = vmul.f32 %v2243, %v2310
        %v2329 = vmul.f32 %v2246, %v2310
        %v2330 = vmul.f32 %v2251, %v2310
        %v2331 = vmul.f32 %v2254, %v2310
        %v2332 = vmul.f32 %v2259, %v2310
        %v2333 = vmul.f32 %v2262, %v2310
        %v2334 = vmul.f32 %v2267, %v2310
        %v2335 = vmul.f32 %v2270, %v2310
        %v2336 = vmul.f32 %v2275, %v2310
        %v2337 = vmul.f32 %v2278, %v2310
        %v2338 = vmul.f32 %v2283, %v2310
        %v2339 = vmul.f32 %v2286, %v2310
        %v2340 = vmul.f32 %v2291, %v2310
        %v2341 = vmul.f32 %v2294, %v2310
        %v2342 = vmul.f32 %v2299, %v2310
        %v2343 = vmul.f32 %v2302, %v2310
        %v2344 = vld [vmem:[%s5] sm:$0x1]
        %v2346 = vlaneseq
        %v2347 = vshrl.u32 %v2346, 7
        %v2348 = vsub.s32 0, %v2347
        %v2349 = vrot.slane %v2344, %v2348
        %v2351 = vadd.f32 %v2312, %v2349
        %v2352 = vadd.f32 %v2313, %v2349
        %v2353 = vadd.f32 %v2314, %v2349
        %v2354 = vadd.f32 %v2315, %v2349
        %v2355 = vadd.f32 %v2316, %v2349
        %v2356 = vadd.f32 %v2317, %v2349
        %v2357 = vadd.f32 %v2318, %v2349
        %v2358 = vadd.f32 %v2319, %v2349
        %v2359 = vadd.f32 %v2320, %v2349
        %v2360 = vadd.f32 %v2321, %v2349
        %v2361 = vadd.f32 %v2322, %v2349
        %v2362 = vadd.f32 %v2323, %v2349
        %v2363 = vadd.f32 %v2324, %v2349
        %v2364 = vadd.f32 %v2325, %v2349
        %v2365 = vadd.f32 %v2326, %v2349
        %v2366 = vadd.f32 %v2327, %v2349
        %v2367 = vadd.f32 %v2328, %v2349
        %v2368 = vadd.f32 %v2329, %v2349
        %v2369 = vadd.f32 %v2330, %v2349
        %v2370 = vadd.f32 %v2331, %v2349
        %v2371 = vadd.f32 %v2332, %v2349
        %v2372 = vadd.f32 %v2333, %v2349
        %v2373 = vadd.f32 %v2334, %v2349
        %v2374 = vadd.f32 %v2335, %v2349
        %v2375 = vadd.f32 %v2336, %v2349
        %v2376 = vadd.f32 %v2337, %v2349
        %v2377 = vadd.f32 %v2338, %v2349
        %v2378 = vadd.f32 %v2339, %v2349
        %v2379 = vadd.f32 %v2340, %v2349
        %v2380 = vadd.f32 %v2341, %v2349
        %v2381 = vadd.f32 %v2342, %v2349
        %v2382 = vadd.f32 %v2343, %v2349
        %2383 = vst [vmem:[#allocation2] sm:$0xff] 0.0
        %2384 = vst [vmem:[#allocation2 + $0x8] sm:$0xff] 0.0
        %2385 = vst [vmem:[#allocation2 + $0x10] sm:$0x3] 0.0
        %s2386 = scalar_lea.vmem [#allocation2], 408
        %2387 = vst [vmem:[%s2386] sm:$0xff] 0.0
        %2388 = vst [vmem:[%s2386 + $0x8] sm:$0xff] 0.0
        %2389 = vst [vmem:[%s2386 + $0x10] sm:$0x3] 0.0
        %2390 = vst [vmem:[#allocation2] sm:$0x1] 0.0
        %2391 = vst [vmem:[#allocation2 + $0x18] sm:$0x1] 0.0
        %2392 = vst [vmem:[#allocation2 + $0x30] sm:$0x1] 0.0
        %2393 = vst [vmem:[#allocation2 + $0x48] sm:$0x1] 0.0
        %2394 = vst [vmem:[#allocation2 + $0x60] sm:$0x1] 0.0
        %2395 = vst [vmem:[#allocation2 + $0x78] sm:$0x1] 0.0
        %2396 = vst [vmem:[#allocation2 + $0x90] sm:$0x1] 0.0
        %2397 = vst [vmem:[#allocation2 + $0xa8] sm:$0x1] 0.0
        %2398 = vst [vmem:[#allocation2 + $0xc0] sm:$0x1] 0.0
        %2399 = vst [vmem:[#allocation2 + $0xd8] sm:$0x1] 0.0
        %2400 = vst [vmem:[#allocation2 + $0xf0] sm:$0x1] 0.0
        %2401 = vst [vmem:[#allocation2 + $0x108] sm:$0x1] 0.0
        %2402 = vst [vmem:[#allocation2 + $0x120] sm:$0x1] 0.0
        %2403 = vst [vmem:[#allocation2 + $0x138] sm:$0x1] 0.0
        %2404 = vst [vmem:[#allocation2 + $0x150] sm:$0x1] 0.0
        %2405 = vst [vmem:[#allocation2 + $0x168] sm:$0x1] 0.0
        %2406 = vst [vmem:[#allocation2 + $0x180] sm:$0x1] 0.0
        %2407 = vst [vmem:[#allocation2 + $0x198] sm:$0x1] 0.0
        %2408 = vst [vmem:[#allocation2 + $0x11] sm:$0x1] 0.0
        %2409 = vst [vmem:[#allocation2 + $0x29] sm:$0x1] 0.0
        %2410 = vst [vmem:[#allocation2 + $0x41] sm:$0x1] 0.0
        %2411 = vst [vmem:[#allocation2 + $0x59] sm:$0x1] 0.0
        %2412 = vst [vmem:[#allocation2 + $0x71] sm:$0x1] 0.0
        %2413 = vst [vmem:[#allocation2 + $0x89] sm:$0x1] 0.0
        %2414 = vst [vmem:[#allocation2 + $0xa1] sm:$0x1] 0.0
        %2415 = vst [vmem:[#allocation2 + $0xb9] sm:$0x1] 0.0
        %2416 = vst [vmem:[#allocation2 + $0xd1] sm:$0x1] 0.0
        %2417 = vst [vmem:[#allocation2 + $0xe9] sm:$0x1] 0.0
        %2418 = vst [vmem:[#allocation2 + $0x101] sm:$0x1] 0.0
        %2419 = vst [vmem:[#allocation2 + $0x119] sm:$0x1] 0.0
        %2420 = vst [vmem:[#allocation2 + $0x131] sm:$0x1] 0.0
        %2421 = vst [vmem:[#allocation2 + $0x149] sm:$0x1] 0.0
        %2422 = vst [vmem:[#allocation2 + $0x161] sm:$0x1] 0.0
        %2423 = vst [vmem:[#allocation2 + $0x179] sm:$0x1] 0.0
        %2424 = vst [vmem:[#allocation2 + $0x191] sm:$0x1] 0.0
        %2425 = vst [vmem:[#allocation2 + $0x1a9] sm:$0x1] 0.0
        %s2426 = scalar_lea.vmem [#allocation2], 24
        %2427 = vst [vmem:[%s2426 + $0x1] sm:$0xff] %v2048
        %2428 = vst [vmem:[%s2426 + $0x9] sm:$0xff] %v2049
        %2429 = vst [vmem:[%s2426 + $0x19] sm:$0xff] %v2050
        %2430 = vst [vmem:[%s2426 + $0x21] sm:$0xff] %v2051
        %2431 = vst [vmem:[%s2426 + $0x31] sm:$0xff] %v2052
        %2432 = vst [vmem:[%s2426 + $0x39] sm:$0xff] %v2053
        %2433 = vst [vmem:[%s2426 + $0x49] sm:$0xff] %v2054
        %2434 = vst [vmem:[%s2426 + $0x51] sm:$0xff] %v2055
        %2435 = vst [vmem:[%s2426 + $0x61] sm:$0xff] %v2056
        %2436 = vst [vmem:[%s2426 + $0x69] sm:$0xff] %v2057
        %2437 = vst [vmem:[%s2426 + $0x79] sm:$0xff] %v2058
        %2438 = vst [vmem:[%s2426 + $0x81] sm:$0xff] %v2059
        %2439 = vst [vmem:[%s2426 + $0x91] sm:$0xff] %v2060
        %2440 = vst [vmem:[%s2426 + $0x99] sm:$0xff] %v2061
        %2441 = vst [vmem:[%s2426 + $0xa9] sm:$0xff] %v2062
        %2442 = vst [vmem:[%s2426 + $0xb1] sm:$0xff] %v2063
        %2443 = vst [vmem:[%s2426 + $0xc1] sm:$0xff] %v2064
        %2444 = vst [vmem:[%s2426 + $0xc9] sm:$0xff] %v2065
        %2445 = vst [vmem:[%s2426 + $0xd9] sm:$0xff] %v2066
        %2446 = vst [vmem:[%s2426 + $0xe1] sm:$0xff] %v2067
        %2447 = vst [vmem:[%s2426 + $0xf1] sm:$0xff] %v2068
        %2448 = vst [vmem:[%s2426 + $0xf9] sm:$0xff] %v2069
        %2449 = vst [vmem:[%s2426 + $0x109] sm:$0xff] %v2070
        %2450 = vst [vmem:[%s2426 + $0x111] sm:$0xff] %v2071
        %2451 = vst [vmem:[%s2426 + $0x121] sm:$0xff] %v2072
        %2452 = vst [vmem:[%s2426 + $0x129] sm:$0xff] %v2073
        %2453 = vst [vmem:[%s2426 + $0x139] sm:$0xff] %v2074
        %2454 = vst [vmem:[%s2426 + $0x141] sm:$0xff] %v2075
        %2455 = vst [vmem:[%s2426 + $0x151] sm:$0xff] %v2076
        %2456 = vst [vmem:[%s2426 + $0x159] sm:$0xff] %v2077
        %2457 = vst [vmem:[%s2426 + $0x169] sm:$0xff] %v2078
        %2458 = vst [vmem:[%s2426 + $0x171] sm:$0xff] %v2079
        %v2459 = vld [vmem:[#allocation2] sm:$0xff]
        %v2460 = vld [vmem:[#allocation2 + $0x8] sm:$0xff]
        %v2461 = vld [vmem:[#allocation2 + $0x18] sm:$0xff]
        %v2462 = vld [vmem:[#allocation2 + $0x20] sm:$0xff]
        %v2463 = vld [vmem:[#allocation2 + $0x30] sm:$0xff]
        %v2464 = vld [vmem:[#allocation2 + $0x38] sm:$0xff]
        %v2465 = vld [vmem:[#allocation2 + $0x48] sm:$0xff]
        %v2466 = vld [vmem:[#allocation2 + $0x50] sm:$0xff]
        %v2467 = vld [vmem:[#allocation2 + $0x60] sm:$0xff]
        %v2468 = vld [vmem:[#allocation2 + $0x68] sm:$0xff]
        %v2469 = vld [vmem:[#allocation2 + $0x78] sm:$0xff]
        %v2470 = vld [vmem:[#allocation2 + $0x80] sm:$0xff]
        %v2471 = vld [vmem:[#allocation2 + $0x90] sm:$0xff]
        %v2472 = vld [vmem:[#allocation2 + $0x98] sm:$0xff]
        %v2473 = vld [vmem:[#allocation2 + $0xa8] sm:$0xff]
        %v2474 = vld [vmem:[#allocation2 + $0xb0] sm:$0xff]
        %v2475 = vld [vmem:[#allocation2 + $0xc0] sm:$0xff]
        %v2476 = vld [vmem:[#allocation2 + $0xc8] sm:$0xff]
        %v2477 = vld [vmem:[#allocation2 + $0xd8] sm:$0xff]
        %v2478 = vld [vmem:[#allocation2 + $0xe0] sm:$0xff]
        %v2479 = vld [vmem:[#allocation2 + $0xf0] sm:$0xff]
        %v2480 = vld [vmem:[#allocation2 + $0xf8] sm:$0xff]
        %v2481 = vld [vmem:[#allocation2 + $0x108] sm:$0xff]
        %v2482 = vld [vmem:[#allocation2 + $0x110] sm:$0xff]
        %v2483 = vld [vmem:[#allocation2 + $0x120] sm:$0xff]
        %v2484 = vld [vmem:[#allocation2 + $0x128] sm:$0xff]
        %v2485 = vld [vmem:[#allocation2 + $0x138] sm:$0xff]
        %v2486 = vld [vmem:[#allocation2 + $0x140] sm:$0xff]
        %v2487 = vld [vmem:[#allocation2 + $0x150] sm:$0xff]
        %v2488 = vld [vmem:[#allocation2 + $0x158] sm:$0xff]
        %v2489 = vld [vmem:[#allocation2 + $0x168] sm:$0xff]
        %v2490 = vld [vmem:[#allocation2 + $0x170] sm:$0xff]
        %v2491 = vld [vmem:[#allocation2 + $0x1] sm:$0xff]
        %v2492 = vld [vmem:[#allocation2 + $0x9] sm:$0xff]
        %v2493 = vld [vmem:[#allocation2 + $0x19] sm:$0xff]
        %v2494 = vld [vmem:[#allocation2 + $0x21] sm:$0xff]
        %v2495 = vld [vmem:[#allocation2 + $0x31] sm:$0xff]
        %v2496 = vld [vmem:[#allocation2 + $0x39] sm:$0xff]
        %v2497 = vld [vmem:[#allocation2 + $0x49] sm:$0xff]
        %v2498 = vld [vmem:[#allocation2 + $0x51] sm:$0xff]
        %v2499 = vld [vmem:[#allocation2 + $0x61] sm:$0xff]
        %v2500 = vld [vmem:[#allocation2 + $0x69] sm:$0xff]
        %v2501 = vld [vmem:[#allocation2 + $0x79] sm:$0xff]
        %v2502 = vld [vmem:[#allocation2 + $0x81] sm:$0xff]
        %v2503 = vld [vmem:[#allocation2 + $0x91] sm:$0xff]
        %v2504 = vld [vmem:[#allocation2 + $0x99] sm:$0xff]
        %v2505 = vld [vmem:[#allocation2 + $0xa9] sm:$0xff]
        %v2506 = vld [vmem:[#allocation2 + $0xb1] sm:$0xff]
        %v2507 = vld [vmem:[#allocation2 + $0xc1] sm:$0xff]
        %v2508 = vld [vmem:[#allocation2 + $0xc9] sm:$0xff]
        %v2509 = vld [vmem:[#allocation2 + $0xd9] sm:$0xff]
        %v2510 = vld [vmem:[#allocation2 + $0xe1] sm:$0xff]
        %v2511 = vld [vmem:[#allocation2 + $0xf1] sm:$0xff]
        %v2512 = vld [vmem:[#allocation2 + $0xf9] sm:$0xff]
        %v2513 = vld [vmem:[#allocation2 + $0x109] sm:$0xff]
        %v2514 = vld [vmem:[#allocation2 + $0x111] sm:$0xff]
        %v2515 = vld [vmem:[#allocation2 + $0x121] sm:$0xff]
        %v2516 = vld [vmem:[#allocation2 + $0x129] sm:$0xff]
        %v2517 = vld [vmem:[#allocation2 + $0x139] sm:$0xff]
        %v2518 = vld [vmem:[#allocation2 + $0x141] sm:$0xff]
        %v2519 = vld [vmem:[#allocation2 + $0x151] sm:$0xff]
        %v2520 = vld [vmem:[#allocation2 + $0x159] sm:$0xff]
        %v2521 = vld [vmem:[#allocation2 + $0x169] sm:$0xff]
        %v2522 = vld [vmem:[#allocation2 + $0x171] sm:$0xff]
        %v2523 = vld [vmem:[#allocation2 + $0x2] sm:$0xff]
        %v2524 = vld [vmem:[#allocation2 + $0xa] sm:$0xff]
        %v2525 = vld [vmem:[#allocation2 + $0x1a] sm:$0xff]
        %v2526 = vld [vmem:[#allocation2 + $0x22] sm:$0xff]
        %v2527 = vld [vmem:[#allocation2 + $0x32] sm:$0xff]
        %v2528 = vld [vmem:[#allocation2 + $0x3a] sm:$0xff]
        %v2529 = vld [vmem:[#allocation2 + $0x4a] sm:$0xff]
        %v2530 = vld [vmem:[#allocation2 + $0x52] sm:$0xff]
        %v2531 = vld [vmem:[#allocation2 + $0x62] sm:$0xff]
        %v2532 = vld [vmem:[#allocation2 + $0x6a] sm:$0xff]
        %v2533 = vld [vmem:[#allocation2 + $0x7a] sm:$0xff]
        %v2534 = vld [vmem:[#allocation2 + $0x82] sm:$0xff]
        %v2535 = vld [vmem:[#allocation2 + $0x92] sm:$0xff]
        %v2536 = vld [vmem:[#allocation2 + $0x9a] sm:$0xff]
        %v2537 = vld [vmem:[#allocation2 + $0xaa] sm:$0xff]
        %v2538 = vld [vmem:[#allocation2 + $0xb2] sm:$0xff]
        %v2539 = vld [vmem:[#allocation2 + $0xc2] sm:$0xff]
        %v2540 = vld [vmem:[#allocation2 + $0xca] sm:$0xff]
        %v2541 = vld [vmem:[#allocation2 + $0xda] sm:$0xff]
        %v2542 = vld [vmem:[#allocation2 + $0xe2] sm:$0xff]
        %v2543 = vld [vmem:[#allocation2 + $0xf2] sm:$0xff]
        %v2544 = vld [vmem:[#allocation2 + $0xfa] sm:$0xff]
        %v2545 = vld [vmem:[#allocation2 + $0x10a] sm:$0xff]
        %v2546 = vld [vmem:[#allocation2 + $0x112] sm:$0xff]
        %v2547 = vld [vmem:[#allocation2 + $0x122] sm:$0xff]
        %v2548 = vld [vmem:[#allocation2 + $0x12a] sm:$0xff]
        %v2549 = vld [vmem:[#allocation2 + $0x13a] sm:$0xff]
        %v2550 = vld [vmem:[#allocation2 + $0x142] sm:$0xff]
        %v2551 = vld [vmem:[#allocation2 + $0x152] sm:$0xff]
        %v2552 = vld [vmem:[#allocation2 + $0x15a] sm:$0xff]
        %v2553 = vld [vmem:[#allocation2 + $0x16a] sm:$0xff]
        %v2554 = vld [vmem:[#allocation2 + $0x172] sm:$0xff]
        %v2555 = vld [vmem:[%s2426] sm:$0xff]
        %v2556 = vld [vmem:[%s2426 + $0x8] sm:$0xff]
        %v2557 = vld [vmem:[%s2426 + $0x18] sm:$0xff]
        %v2558 = vld [vmem:[%s2426 + $0x20] sm:$0xff]
        %v2559 = vld [vmem:[%s2426 + $0x30] sm:$0xff]
        %v2560 = vld [vmem:[%s2426 + $0x38] sm:$0xff]
        %v2561 = vld [vmem:[%s2426 + $0x48] sm:$0xff]
        %v2562 = vld [vmem:[%s2426 + $0x50] sm:$0xff]
        %v2563 = vld [vmem:[%s2426 + $0x60] sm:$0xff]
        %v2564 = vld [vmem:[%s2426 + $0x68] sm:$0xff]
        %v2565 = vld [vmem:[%s2426 + $0x78] sm:$0xff]
        %v2566 = vld [vmem:[%s2426 + $0x80] sm:$0xff]
        %v2567 = vld [vmem:[%s2426 + $0x90] sm:$0xff]
        %v2568 = vld [vmem:[%s2426 + $0x98] sm:$0xff]
        %v2569 = vld [vmem:[%s2426 + $0xa8] sm:$0xff]
        %v2570 = vld [vmem:[%s2426 + $0xb0] sm:$0xff]
        %v2571 = vld [vmem:[%s2426 + $0xc0] sm:$0xff]
        %v2572 = vld [vmem:[%s2426 + $0xc8] sm:$0xff]
        %v2573 = vld [vmem:[%s2426 + $0xd8] sm:$0xff]
        %v2574 = vld [vmem:[%s2426 + $0xe0] sm:$0xff]
        %v2575 = vld [vmem:[%s2426 + $0xf0] sm:$0xff]
        %v2576 = vld [vmem:[%s2426 + $0xf8] sm:$0xff]
        %v2577 = vld [vmem:[%s2426 + $0x108] sm:$0xff]
        %v2578 = vld [vmem:[%s2426 + $0x110] sm:$0xff]
        %v2579 = vld [vmem:[%s2426 + $0x120] sm:$0xff]
        %v2580 = vld [vmem:[%s2426 + $0x128] sm:$0xff]
        %v2581 = vld [vmem:[%s2426 + $0x138] sm:$0xff]
        %v2582 = vld [vmem:[%s2426 + $0x140] sm:$0xff]
        %v2583 = vld [vmem:[%s2426 + $0x150] sm:$0xff]
        %v2584 = vld [vmem:[%s2426 + $0x158] sm:$0xff]
        %v2585 = vld [vmem:[%s2426 + $0x168] sm:$0xff]
        %v2586 = vld [vmem:[%s2426 + $0x170] sm:$0xff]
        %v2587 = vld [vmem:[%s2426 + $0x1] sm:$0xff]
        %v2588 = vld [vmem:[%s2426 + $0x9] sm:$0xff]
        %v2589 = vld [vmem:[%s2426 + $0x19] sm:$0xff]
        %v2590 = vld [vmem:[%s2426 + $0x21] sm:$0xff]
        %v2591 = vld [vmem:[%s2426 + $0x31] sm:$0xff]
        %v2592 = vld [vmem:[%s2426 + $0x39] sm:$0xff]
        %v2593 = vld [vmem:[%s2426 + $0x49] sm:$0xff]
        %v2594 = vld [vmem:[%s2426 + $0x51] sm:$0xff]
        %v2595 = vld [vmem:[%s2426 + $0x61] sm:$0xff]
        %v2596 = vld [vmem:[%s2426 + $0x69] sm:$0xff]
        %v2597 = vld [vmem:[%s2426 + $0x79] sm:$0xff]
        %v2598 = vld [vmem:[%s2426 + $0x81] sm:$0xff]
        %v2599 = vld [vmem:[%s2426 + $0x91] sm:$0xff]
        %v2600 = vld [vmem:[%s2426 + $0x99] sm:$0xff]
        %v2601 = vld [vmem:[%s2426 + $0xa9] sm:$0xff]
        %v2602 = vld [vmem:[%s2426 + $0xb1] sm:$0xff]
        %v2603 = vld [vmem:[%s2426 + $0xc1] sm:$0xff]
        %v2604 = vld [vmem:[%s2426 + $0xc9] sm:$0xff]
        %v2605 = vld [vmem:[%s2426 + $0xd9] sm:$0xff]
        %v2606 = vld [vmem:[%s2426 + $0xe1] sm:$0xff]
        %v2607 = vld [vmem:[%s2426 + $0xf1] sm:$0xff]
        %v2608 = vld [vmem:[%s2426 + $0xf9] sm:$0xff]
        %v2609 = vld [vmem:[%s2426 + $0x109] sm:$0xff]
        %v2610 = vld [vmem:[%s2426 + $0x111] sm:$0xff]
        %v2611 = vld [vmem:[%s2426 + $0x121] sm:$0xff]
        %v2612 = vld [vmem:[%s2426 + $0x129] sm:$0xff]
        %v2613 = vld [vmem:[%s2426 + $0x139] sm:$0xff]
        %v2614 = vld [vmem:[%s2426 + $0x141] sm:$0xff]
        %v2615 = vld [vmem:[%s2426 + $0x151] sm:$0xff]
        %v2616 = vld [vmem:[%s2426 + $0x159] sm:$0xff]
        %v2617 = vld [vmem:[%s2426 + $0x169] sm:$0xff]
        %v2618 = vld [vmem:[%s2426 + $0x171] sm:$0xff]
        %v2619 = vld [vmem:[%s2426 + $0x2] sm:$0xff]
        %v2620 = vld [vmem:[%s2426 + $0xa] sm:$0xff]
        %v2621 = vld [vmem:[%s2426 + $0x1a] sm:$0xff]
        %v2622 = vld [vmem:[%s2426 + $0x22] sm:$0xff]
        %v2623 = vld [vmem:[%s2426 + $0x32] sm:$0xff]
        %v2624 = vld [vmem:[%s2426 + $0x3a] sm:$0xff]
        %v2625 = vld [vmem:[%s2426 + $0x4a] sm:$0xff]
        %v2626 = vld [vmem:[%s2426 + $0x52] sm:$0xff]
        %v2627 = vld [vmem:[%s2426 + $0x62] sm:$0xff]
        %v2628 = vld [vmem:[%s2426 + $0x6a] sm:$0xff]
        %v2629 = vld [vmem:[%s2426 + $0x7a] sm:$0xff]
        %v2630 = vld [vmem:[%s2426 + $0x82] sm:$0xff]
        %v2631 = vld [vmem:[%s2426 + $0x92] sm:$0xff]
        %v2632 = vld [vmem:[%s2426 + $0x9a] sm:$0xff]
        %v2633 = vld [vmem:[%s2426 + $0xaa] sm:$0xff]
        %v2634 = vld [vmem:[%s2426 + $0xb2] sm:$0xff]
        %v2635 = vld [vmem:[%s2426 + $0xc2] sm:$0xff]
        %v2636 = vld [vmem:[%s2426 + $0xca] sm:$0xff]
        %v2637 = vld [vmem:[%s2426 + $0xda] sm:$0xff]
        %v2638 = vld [vmem:[%s2426 + $0xe2] sm:$0xff]
        %v2639 = vld [vmem:[%s2426 + $0xf2] sm:$0xff]
        %v2640 = vld [vmem:[%s2426 + $0xfa] sm:$0xff]
        %v2641 = vld [vmem:[%s2426 + $0x10a] sm:$0xff]
        %v2642 = vld [vmem:[%s2426 + $0x112] sm:$0xff]
        %v2643 = vld [vmem:[%s2426 + $0x122] sm:$0xff]
        %v2644 = vld [vmem:[%s2426 + $0x12a] sm:$0xff]
        %v2645 = vld [vmem:[%s2426 + $0x13a] sm:$0xff]
        %v2646 = vld [vmem:[%s2426 + $0x142] sm:$0xff]
        %v2647 = vld [vmem:[%s2426 + $0x152] sm:$0xff]
        %v2648 = vld [vmem:[%s2426 + $0x15a] sm:$0xff]
        %v2649 = vld [vmem:[%s2426 + $0x16a] sm:$0xff]
        %v2650 = vld [vmem:[%s2426 + $0x172] sm:$0xff]
        %s2651 = scalar_lea.vmem [#allocation2], 48
        %v2652 = vld [vmem:[%s2651] sm:$0xff]
        %v2653 = vld [vmem:[%s2651 + $0x8] sm:$0xff]
        %v2654 = vld [vmem:[%s2651 + $0x18] sm:$0xff]
        %v2655 = vld [vmem:[%s2651 + $0x20] sm:$0xff]
        %v2656 = vld [vmem:[%s2651 + $0x30] sm:$0xff]
        %v2657 = vld [vmem:[%s2651 + $0x38] sm:$0xff]
        %v2658 = vld [vmem:[%s2651 + $0x48] sm:$0xff]
        %v2659 = vld [vmem:[%s2651 + $0x50] sm:$0xff]
        %v2660 = vld [vmem:[%s2651 + $0x60] sm:$0xff]
        %v2661 = vld [vmem:[%s2651 + $0x68] sm:$0xff]
        %v2662 = vld [vmem:[%s2651 + $0x78] sm:$0xff]
        %v2663 = vld [vmem:[%s2651 + $0x80] sm:$0xff]
        %v2664 = vld [vmem:[%s2651 + $0x90] sm:$0xff]
        %v2665 = vld [vmem:[%s2651 + $0x98] sm:$0xff]
        %v2666 = vld [vmem:[%s2651 + $0xa8] sm:$0xff]
        %v2667 = vld [vmem:[%s2651 + $0xb0] sm:$0xff]
        %v2668 = vld [vmem:[%s2651 + $0xc0] sm:$0xff]
        %v2669 = vld [vmem:[%s2651 + $0xc8] sm:$0xff]
        %v2670 = vld [vmem:[%s2651 + $0xd8] sm:$0xff]
        %v2671 = vld [vmem:[%s2651 + $0xe0] sm:$0xff]
        %v2672 = vld [vmem:[%s2651 + $0xf0] sm:$0xff]
        %v2673 = vld [vmem:[%s2651 + $0xf8] sm:$0xff]
        %v2674 = vld [vmem:[%s2651 + $0x108] sm:$0xff]
        %v2675 = vld [vmem:[%s2651 + $0x110] sm:$0xff]
        %v2676 = vld [vmem:[%s2651 + $0x120] sm:$0xff]
        %v2677 = vld [vmem:[%s2651 + $0x128] sm:$0xff]
        %v2678 = vld [vmem:[%s2651 + $0x138] sm:$0xff]
        %v2679 = vld [vmem:[%s2651 + $0x140] sm:$0xff]
        %v2680 = vld [vmem:[%s2651 + $0x150] sm:$0xff]
        %v2681 = vld [vmem:[%s2651 + $0x158] sm:$0xff]
        %v2682 = vld [vmem:[%s2651 + $0x168] sm:$0xff]
        %v2683 = vld [vmem:[%s2651 + $0x170] sm:$0xff]
        %v2684 = vld [vmem:[%s2651 + $0x1] sm:$0xff]
        %v2685 = vld [vmem:[%s2651 + $0x9] sm:$0xff]
        %v2686 = vld [vmem:[%s2651 + $0x19] sm:$0xff]
        %v2687 = vld [vmem:[%s2651 + $0x21] sm:$0xff]
        %v2688 = vld [vmem:[%s2651 + $0x31] sm:$0xff]
        %v2689 = vld [vmem:[%s2651 + $0x39] sm:$0xff]
        %v2690 = vld [vmem:[%s2651 + $0x49] sm:$0xff]
        %v2691 = vld [vmem:[%s2651 + $0x51] sm:$0xff]
        %v2692 = vld [vmem:[%s2651 + $0x61] sm:$0xff]
        %v2693 = vld [vmem:[%s2651 + $0x69] sm:$0xff]
        %v2694 = vld [vmem:[%s2651 + $0x79] sm:$0xff]
        %v2695 = vld [vmem:[%s2651 + $0x81] sm:$0xff]
        %v2696 = vld [vmem:[%s2651 + $0x91] sm:$0xff]
        %v2697 = vld [vmem:[%s2651 + $0x99] sm:$0xff]
        %v2698 = vld [vmem:[%s2651 + $0xa9] sm:$0xff]
        %v2699 = vld [vmem:[%s2651 + $0xb1] sm:$0xff]
        %v2700 = vld [vmem:[%s2651 + $0xc1] sm:$0xff]
        %v2701 = vld [vmem:[%s2651 + $0xc9] sm:$0xff]
        %v2702 = vld [vmem:[%s2651 + $0xd9] sm:$0xff]
        %v2703 = vld [vmem:[%s2651 + $0xe1] sm:$0xff]
        %v2704 = vld [vmem:[%s2651 + $0xf1] sm:$0xff]
        %v2705 = vld [vmem:[%s2651 + $0xf9] sm:$0xff]
        %v2706 = vld [vmem:[%s2651 + $0x109] sm:$0xff]
        %v2707 = vld [vmem:[%s2651 + $0x111] sm:$0xff]
        %v2708 = vld [vmem:[%s2651 + $0x121] sm:$0xff]
        %v2709 = vld [vmem:[%s2651 + $0x129] sm:$0xff]
        %v2710 = vld [vmem:[%s2651 + $0x139] sm:$0xff]
        %v2711 = vld [vmem:[%s2651 + $0x141] sm:$0xff]
        %v2712 = vld [vmem:[%s2651 + $0x151] sm:$0xff]
        %v2713 = vld [vmem:[%s2651 + $0x159] sm:$0xff]
        %v2714 = vld [vmem:[%s2651 + $0x169] sm:$0xff]
        %v2715 = vld [vmem:[%s2651 + $0x171] sm:$0xff]
        %v2716 = vld [vmem:[%s2651 + $0x2] sm:$0xff]
        %v2717 = vld [vmem:[%s2651 + $0xa] sm:$0xff]
        %v2718 = vld [vmem:[%s2651 + $0x1a] sm:$0xff]
        %v2719 = vld [vmem:[%s2651 + $0x22] sm:$0xff]
        %v2720 = vld [vmem:[%s2651 + $0x32] sm:$0xff]
        %v2721 = vld [vmem:[%s2651 + $0x3a] sm:$0xff]
        %v2722 = vld [vmem:[%s2651 + $0x4a] sm:$0xff]
        %v2723 = vld [vmem:[%s2651 + $0x52] sm:$0xff]
        %v2724 = vld [vmem:[%s2651 + $0x62] sm:$0xff]
        %v2725 = vld [vmem:[%s2651 + $0x6a] sm:$0xff]
        %v2726 = vld [vmem:[%s2651 + $0x7a] sm:$0xff]
        %v2727 = vld [vmem:[%s2651 + $0x82] sm:$0xff]
        %v2728 = vld [vmem:[%s2651 + $0x92] sm:$0xff]
        %v2729 = vld [vmem:[%s2651 + $0x9a] sm:$0xff]
        %v2730 = vld [vmem:[%s2651 + $0xaa] sm:$0xff]
        %v2731 = vld [vmem:[%s2651 + $0xb2] sm:$0xff]
        %v2732 = vld [vmem:[%s2651 + $0xc2] sm:$0xff]
        %v2733 = vld [vmem:[%s2651 + $0xca] sm:$0xff]
        %v2734 = vld [vmem:[%s2651 + $0xda] sm:$0xff]
        %v2735 = vld [vmem:[%s2651 + $0xe2] sm:$0xff]
        %v2736 = vld [vmem:[%s2651 + $0xf2] sm:$0xff]
        %v2737 = vld [vmem:[%s2651 + $0xfa] sm:$0xff]
        %v2738 = vld [vmem:[%s2651 + $0x10a] sm:$0xff]
        %v2739 = vld [vmem:[%s2651 + $0x112] sm:$0xff]
        %v2740 = vld [vmem:[%s2651 + $0x122] sm:$0xff]
        %v2741 = vld [vmem:[%s2651 + $0x12a] sm:$0xff]
        %v2742 = vld [vmem:[%s2651 + $0x13a] sm:$0xff]
        %v2743 = vld [vmem:[%s2651 + $0x142] sm:$0xff]
        %v2744 = vld [vmem:[%s2651 + $0x152] sm:$0xff]
        %v2745 = vld [vmem:[%s2651 + $0x15a] sm:$0xff]
        %v2746 = vld [vmem:[%s2651 + $0x16a] sm:$0xff]
        %v2747 = vld [vmem:[%s2651 + $0x172] sm:$0xff]
        %v2748 = vpack.c.bf16 %v2460, %v2459
        %v2749 = vpack.c.bf16 %v2492, %v2491
        %v2750 = vpack.c.bf16 %v2524, %v2523
        %v2751 = vpack.c.bf16 %v2556, %v2555
        %v2752 = vpack.c.bf16 %v2588, %v2587
        %v2753 = vpack.c.bf16 %v2620, %v2619
        %v2754 = vpack.c.bf16 %v2653, %v2652
        %v2755 = vpack.c.bf16 %v2685, %v2684
        %v2756 = vpack.c.bf16 %v2717, %v2716
        %v2757 = vpack.c.bf16 %v2462, %v2461
        %v2758 = vpack.c.bf16 %v2494, %v2493
        %v2759 = vpack.c.bf16 %v2526, %v2525
        %v2760 = vpack.c.bf16 %v2558, %v2557
        %v2761 = vpack.c.bf16 %v2590, %v2589
        %v2762 = vpack.c.bf16 %v2622, %v2621
        %v2763 = vpack.c.bf16 %v2655, %v2654
        %v2764 = vpack.c.bf16 %v2687, %v2686
        %v2765 = vpack.c.bf16 %v2719, %v2718
        %v2766 = vpack.c.bf16 %v2464, %v2463
        %v2767 = vpack.c.bf16 %v2496, %v2495
        %v2768 = vpack.c.bf16 %v2528, %v2527
        %v2769 = vpack.c.bf16 %v2560, %v2559
        %v2770 = vpack.c.bf16 %v2592, %v2591
        %v2771 = vpack.c.bf16 %v2624, %v2623
        %v2772 = vpack.c.bf16 %v2657, %v2656
        %v2773 = vpack.c.bf16 %v2689, %v2688
        %v2774 = vpack.c.bf16 %v2721, %v2720
        %v2775 = vpack.c.bf16 %v2466, %v2465
        %v2776 = vpack.c.bf16 %v2498, %v2497
        %v2777 = vpack.c.bf16 %v2530, %v2529
        %v2778 = vpack.c.bf16 %v2562, %v2561
        %v2779 = vpack.c.bf16 %v2594, %v2593
        %v2780 = vpack.c.bf16 %v2626, %v2625
        %v2781 = vpack.c.bf16 %v2659, %v2658
        %v2782 = vpack.c.bf16 %v2691, %v2690
        %v2783 = vpack.c.bf16 %v2723, %v2722
        %v2784 = vpack.c.bf16 %v2468, %v2467
        %v2785 = vpack.c.bf16 %v2500, %v2499
        %v2786 = vpack.c.bf16 %v2532, %v2531
        %v2787 = vpack.c.bf16 %v2564, %v2563
        %v2788 = vpack.c.bf16 %v2596, %v2595
        %v2789 = vpack.c.bf16 %v2628, %v2627
        %v2790 = vpack.c.bf16 %v2661, %v2660
        %v2791 = vpack.c.bf16 %v2693, %v2692
        %v2792 = vpack.c.bf16 %v2725, %v2724
        %v2793 = vpack.c.bf16 %v2470, %v2469
        %v2794 = vpack.c.bf16 %v2502, %v2501
        %v2795 = vpack.c.bf16 %v2534, %v2533
        %v2796 = vpack.c.bf16 %v2566, %v2565
        %v2797 = vpack.c.bf16 %v2598, %v2597
        %v2798 = vpack.c.bf16 %v2630, %v2629
        %v2799 = vpack.c.bf16 %v2663, %v2662
        %v2800 = vpack.c.bf16 %v2695, %v2694
        %v2801 = vpack.c.bf16 %v2727, %v2726
        %v2802 = vpack.c.bf16 %v2472, %v2471
        %v2803 = vpack.c.bf16 %v2504, %v2503
        %v2804 = vpack.c.bf16 %v2536, %v2535
        %v2805 = vpack.c.bf16 %v2568, %v2567
        %v2806 = vpack.c.bf16 %v2600, %v2599
        %v2807 = vpack.c.bf16 %v2632, %v2631
        %v2808 = vpack.c.bf16 %v2665, %v2664
        %v2809 = vpack.c.bf16 %v2697, %v2696
        %v2810 = vpack.c.bf16 %v2729, %v2728
        %v2811 = vpack.c.bf16 %v2474, %v2473
        %v2812 = vpack.c.bf16 %v2506, %v2505
        %v2813 = vpack.c.bf16 %v2538, %v2537
        %v2814 = vpack.c.bf16 %v2570, %v2569
        %v2815 = vpack.c.bf16 %v2602, %v2601
        %v2816 = vpack.c.bf16 %v2634, %v2633
        %v2817 = vpack.c.bf16 %v2667, %v2666
        %v2818 = vpack.c.bf16 %v2699, %v2698
        %v2819 = vpack.c.bf16 %v2731, %v2730
        %v2820 = vpack.c.bf16 %v2476, %v2475
        %v2821 = vpack.c.bf16 %v2508, %v2507
        %v2822 = vpack.c.bf16 %v2540, %v2539
        %v2823 = vpack.c.bf16 %v2572, %v2571
        %v2824 = vpack.c.bf16 %v2604, %v2603
        %v2825 = vpack.c.bf16 %v2636, %v2635
        %v2826 = vpack.c.bf16 %v2669, %v2668
        %v2827 = vpack.c.bf16 %v2701, %v2700
        %v2828 = vpack.c.bf16 %v2733, %v2732
        %v2829 = vpack.c.bf16 %v2478, %v2477
        %v2830 = vpack.c.bf16 %v2510, %v2509
        %v2831 = vpack.c.bf16 %v2542, %v2541
        %v2832 = vpack.c.bf16 %v2574, %v2573
        %v2833 = vpack.c.bf16 %v2606, %v2605
        %v2834 = vpack.c.bf16 %v2638, %v2637
        %v2835 = vpack.c.bf16 %v2671, %v2670
        %v2836 = vpack.c.bf16 %v2703, %v2702
        %v2837 = vpack.c.bf16 %v2735, %v2734
        %v2838 = vpack.c.bf16 %v2480, %v2479
        %v2839 = vpack.c.bf16 %v2512, %v2511
        %v2840 = vpack.c.bf16 %v2544, %v2543
        %v2841 = vpack.c.bf16 %v2576, %v2575
        %v2842 = vpack.c.bf16 %v2608, %v2607
        %v2843 = vpack.c.bf16 %v2640, %v2639
        %v2844 = vpack.c.bf16 %v2673, %v2672
        %v2845 = vpack.c.bf16 %v2705, %v2704
        %v2846 = vpack.c.bf16 %v2737, %v2736
        %v2847 = vpack.c.bf16 %v2482, %v2481
        %v2848 = vpack.c.bf16 %v2514, %v2513
        %v2849 = vpack.c.bf16 %v2546, %v2545
        %v2850 = vpack.c.bf16 %v2578, %v2577
        %v2851 = vpack.c.bf16 %v2610, %v2609
        %v2852 = vpack.c.bf16 %v2642, %v2641
        %v2853 = vpack.c.bf16 %v2675, %v2674
        %v2854 = vpack.c.bf16 %v2707, %v2706
        %v2855 = vpack.c.bf16 %v2739, %v2738
        %v2856 = vpack.c.bf16 %v2484, %v2483
        %v2857 = vpack.c.bf16 %v2516, %v2515
        %v2858 = vpack.c.bf16 %v2548, %v2547
        %v2859 = vpack.c.bf16 %v2580, %v2579
        %v2860 = vpack.c.bf16 %v2612, %v2611
        %v2861 = vpack.c.bf16 %v2644, %v2643
        %v2862 = vpack.c.bf16 %v2677, %v2676
        %v2863 = vpack.c.bf16 %v2709, %v2708
        %v2864 = vpack.c.bf16 %v2741, %v2740
        %v2865 = vpack.c.bf16 %v2486, %v2485
        %v2866 = vpack.c.bf16 %v2518, %v2517
        %v2867 = vpack.c.bf16 %v2550, %v2549
        %v2868 = vpack.c.bf16 %v2582, %v2581
        %v2869 = vpack.c.bf16 %v2614, %v2613
        %v2870 = vpack.c.bf16 %v2646, %v2645
        %v2871 = vpack.c.bf16 %v2679, %v2678
        %v2872 = vpack.c.bf16 %v2711, %v2710
        %v2873 = vpack.c.bf16 %v2743, %v2742
        %v2874 = vpack.c.bf16 %v2488, %v2487
        %v2875 = vpack.c.bf16 %v2520, %v2519
        %v2876 = vpack.c.bf16 %v2552, %v2551
        %v2877 = vpack.c.bf16 %v2584, %v2583
        %v2878 = vpack.c.bf16 %v2616, %v2615
        %v2879 = vpack.c.bf16 %v2648, %v2647
        %v2880 = vpack.c.bf16 %v2681, %v2680
        %v2881 = vpack.c.bf16 %v2713, %v2712
        %v2882 = vpack.c.bf16 %v2745, %v2744
        %v2883 = vpack.c.bf16 %v2490, %v2489
        %v2884 = vpack.c.bf16 %v2522, %v2521
        %v2885 = vpack.c.bf16 %v2554, %v2553
        %v2886 = vpack.c.bf16 %v2586, %v2585
        %v2887 = vpack.c.bf16 %v2618, %v2617
        %v2888 = vpack.c.bf16 %v2650, %v2649
        %v2889 = vpack.c.bf16 %v2683, %v2682
        %v2890 = vpack.c.bf16 %v2715, %v2714
        %v2891 = vpack.c.bf16 %v2747, %v2746
        %v2892 = vld [vmem:[%s2] sm:$0xf]
        %v2893 = vld [vmem:[%s2 + $0x4] sm:$0xf]
        %v2894 = vld [vmem:[%s2 + $0x8] sm:$0xf]
        %v2895 = vld [vmem:[%s2 + $0xc] sm:$0xf]
        %v2896 = vld [vmem:[%s2 + $0x10] sm:$0xf]
        %v2897 = vld [vmem:[%s2 + $0x14] sm:$0xf]
        %v2898 = vld [vmem:[%s2 + $0x18] sm:$0xf]
        %v2899 = vld [vmem:[%s2 + $0x1c] sm:$0xf]
        %v2900 = vld [vmem:[%s2 + $0x20] sm:$0xf]
        %v2901 = vld [vmem:[%s2 + $0x24] sm:$0xf]
        %v2902 = vld [vmem:[%s2 + $0x28] sm:$0xf]
        %v2903 = vld [vmem:[%s2 + $0x2c] sm:$0xf]
        %v2904 = vld [vmem:[%s2 + $0x30] sm:$0xf]
        %v2905 = vld [vmem:[%s2 + $0x34] sm:$0xf]
        %v2906 = vld [vmem:[%s2 + $0x38] sm:$0xf]
        %v2907 = vld [vmem:[%s2 + $0x3c] sm:$0xf]
        %v2908 = vld [vmem:[%s2 + $0x40] sm:$0xf]
        %v2909 = vld [vmem:[%s2 + $0x44] sm:$0xf]
        %v2910 = vld [vmem:[%s2 + $0x48] sm:$0xf]
        %v2911 = vld [vmem:[%s2 + $0x4c] sm:$0xf]
        %v2912 = vld [vmem:[%s2 + $0x50] sm:$0xf]
        %v2913 = vld [vmem:[%s2 + $0x54] sm:$0xf]
        %v2914 = vld [vmem:[%s2 + $0x58] sm:$0xf]
        %v2915 = vld [vmem:[%s2 + $0x5c] sm:$0xf]
        %v2916 = vld [vmem:[%s2 + $0x60] sm:$0xf]
        %v2917 = vld [vmem:[%s2 + $0x64] sm:$0xf]
        %v2918 = vld [vmem:[%s2 + $0x68] sm:$0xf]
        %v2919 = vld [vmem:[%s2 + $0x6c] sm:$0xf]
        %v2920 = vld [vmem:[%s2 + $0x70] sm:$0xf]
        %v2921 = vld [vmem:[%s2 + $0x74] sm:$0xf]
        %v2922 = vld [vmem:[%s2 + $0x78] sm:$0xf]
        %v2923 = vld [vmem:[%s2 + $0x7c] sm:$0xf]
        %v2924 = vld [vmem:[%s2 + $0x80] sm:$0xf]
        %v2925 = vld [vmem:[%s2 + $0x84] sm:$0xf]
        %v2926 = vld [vmem:[%s2 + $0x88] sm:$0xf]
        %v2927 = vld [vmem:[%s2 + $0x8c] sm:$0xf]
        %v2928 = vld [vmem:[%s2 + $0x90] sm:$0xf]
        %v2929 = vld [vmem:[%s2 + $0x94] sm:$0xf]
        %v2930 = vld [vmem:[%s2 + $0x98] sm:$0xf]
        %v2931 = vld [vmem:[%s2 + $0x9c] sm:$0xf]
        %v2932 = vld [vmem:[%s2 + $0xa0] sm:$0xf]
        %v2933 = vld [vmem:[%s2 + $0xa4] sm:$0xf]
        %v2934 = vld [vmem:[%s2 + $0xa8] sm:$0xf]
        %v2935 = vld [vmem:[%s2 + $0xac] sm:$0xf]
        %v2936 = vld [vmem:[%s2 + $0xb0] sm:$0xf]
        %v2937 = vld [vmem:[%s2 + $0xb4] sm:$0xf]
        %v2938 = vld [vmem:[%s2 + $0xb8] sm:$0xf]
        %v2939 = vld [vmem:[%s2 + $0xbc] sm:$0xf]
        %v2940 = vld [vmem:[%s2 + $0xc0] sm:$0xf]
        %v2941 = vld [vmem:[%s2 + $0xc4] sm:$0xf]
        %v2942 = vld [vmem:[%s2 + $0xc8] sm:$0xf]
        %v2943 = vld [vmem:[%s2 + $0xcc] sm:$0xf]
        %v2944 = vld [vmem:[%s2 + $0xd0] sm:$0xf]
        %v2945 = vld [vmem:[%s2 + $0xd4] sm:$0xf]
        %v2946 = vld [vmem:[%s2 + $0xd8] sm:$0xf]
        %v2947 = vld [vmem:[%s2 + $0xdc] sm:$0xf]
        %v2948 = vld [vmem:[%s2 + $0xe0] sm:$0xf]
        %v2949 = vld [vmem:[%s2 + $0xe4] sm:$0xf]
        %v2950 = vld [vmem:[%s2 + $0xe8] sm:$0xf]
        %v2951 = vld [vmem:[%s2 + $0xec] sm:$0xf]
        %v2952 = vld [vmem:[%s2 + $0xf0] sm:$0xf]
        %v2953 = vld [vmem:[%s2 + $0xf4] sm:$0xf]
        %v2954 = vld [vmem:[%s2 + $0xf8] sm:$0xf]
        %v2955 = vld [vmem:[%s2 + $0xfc] sm:$0xf]
        %v2956 = vld [vmem:[%s2 + $0x100] sm:$0xf]
        %v2957 = vld [vmem:[%s2 + $0x104] sm:$0xf]
        %v2958 = vld [vmem:[%s2 + $0x108] sm:$0xf]
        %v2959 = vld [vmem:[%s2 + $0x10c] sm:$0xf]
        %v2960 = vld [vmem:[%s2 + $0x110] sm:$0xf]
        %v2961 = vld [vmem:[%s2 + $0x114] sm:$0xf]
        %v2962 = vld [vmem:[%s2 + $0x118] sm:$0xf]
        %v2963 = vld [vmem:[%s2 + $0x11c] sm:$0xf]
        %v2964 = vld [vmem:[%s2 + $0x120] sm:$0xf]
        %v2965 = vld [vmem:[%s2 + $0x124] sm:$0xf]
        %v2966 = vld [vmem:[%s2 + $0x128] sm:$0xf]
        %v2967 = vld [vmem:[%s2 + $0x12c] sm:$0xf]
        %v2968 = vld [vmem:[%s2 + $0x130] sm:$0xf]
        %v2969 = vld [vmem:[%s2 + $0x134] sm:$0xf]
        %v2970 = vld [vmem:[%s2 + $0x138] sm:$0xf]
        %v2971 = vld [vmem:[%s2 + $0x13c] sm:$0xf]
        %v2972 = vld [vmem:[%s2 + $0x140] sm:$0xf]
        %v2973 = vld [vmem:[%s2 + $0x144] sm:$0xf]
        %v2974 = vld [vmem:[%s2 + $0x148] sm:$0xf]
        %v2975 = vld [vmem:[%s2 + $0x14c] sm:$0xf]
        %v2976 = vld [vmem:[%s2 + $0x150] sm:$0xf]
        %v2977 = vld [vmem:[%s2 + $0x154] sm:$0xf]
        %v2978 = vld [vmem:[%s2 + $0x158] sm:$0xf]
        %v2979 = vld [vmem:[%s2 + $0x15c] sm:$0xf]
        %v2980 = vld [vmem:[%s2 + $0x160] sm:$0xf]
        %v2981 = vld [vmem:[%s2 + $0x164] sm:$0xf]
        %v2982 = vld [vmem:[%s2 + $0x168] sm:$0xf]
        %v2983 = vld [vmem:[%s2 + $0x16c] sm:$0xf]
        %v2984 = vld [vmem:[%s2 + $0x170] sm:$0xf]
        %v2985 = vld [vmem:[%s2 + $0x174] sm:$0xf]
        %v2986 = vld [vmem:[%s2 + $0x178] sm:$0xf]
        %v2987 = vld [vmem:[%s2 + $0x17c] sm:$0xf]
        %v2988 = vld [vmem:[%s2 + $0x180] sm:$0xf]
        %v2989 = vld [vmem:[%s2 + $0x184] sm:$0xf]
        %v2990 = vld [vmem:[%s2 + $0x188] sm:$0xf]
        %v2991 = vld [vmem:[%s2 + $0x18c] sm:$0xf]
        %v2992 = vld [vmem:[%s2 + $0x190] sm:$0xf]
        %v2993 = vld [vmem:[%s2 + $0x194] sm:$0xf]
        %v2994 = vld [vmem:[%s2 + $0x198] sm:$0xf]
        %v2995 = vld [vmem:[%s2 + $0x19c] sm:$0xf]
        %v2996 = vld [vmem:[%s2 + $0x1a0] sm:$0xf]
        %v2997 = vld [vmem:[%s2 + $0x1a4] sm:$0xf]
        %v2998 = vld [vmem:[%s2 + $0x1a8] sm:$0xf]
        %v2999 = vld [vmem:[%s2 + $0x1ac] sm:$0xf]
        %v3000 = vld [vmem:[%s2 + $0x1b0] sm:$0xf]
        %v3001 = vld [vmem:[%s2 + $0x1b4] sm:$0xf]
        %v3002 = vld [vmem:[%s2 + $0x1b8] sm:$0xf]
        %v3003 = vld [vmem:[%s2 + $0x1bc] sm:$0xf]
        %v3004 = vld [vmem:[%s2 + $0x1c0] sm:$0xf]
        %v3005 = vld [vmem:[%s2 + $0x1c4] sm:$0xf]
        %v3006 = vld [vmem:[%s2 + $0x1c8] sm:$0xf]
        %v3007 = vld [vmem:[%s2 + $0x1cc] sm:$0xf]
        %v3008 = vld [vmem:[%s2 + $0x1d0] sm:$0xf]
        %v3009 = vld [vmem:[%s2 + $0x1d4] sm:$0xf]
        %v3010 = vld [vmem:[%s2 + $0x1d8] sm:$0xf]
        %v3011 = vld [vmem:[%s2 + $0x1dc] sm:$0xf]
        %v3012 = vld [vmem:[%s2 + $0x1e0] sm:$0xf]
        %v3013 = vld [vmem:[%s2 + $0x1e4] sm:$0xf]
        %v3014 = vld [vmem:[%s2 + $0x1e8] sm:$0xf]
        %v3015 = vld [vmem:[%s2 + $0x1ec] sm:$0xf]
        %v3016 = vld [vmem:[%s2 + $0x1f0] sm:$0xf]
        %v3017 = vld [vmem:[%s2 + $0x1f4] sm:$0xf]
        %v3018 = vld [vmem:[%s2 + $0x1f8] sm:$0xf]
        %v3019 = vld [vmem:[%s2 + $0x1fc] sm:$0xf]
        %v3020 = vld [vmem:[%s2 + $0x200] sm:$0xf]
        %v3021 = vld [vmem:[%s2 + $0x204] sm:$0xf]
        %v3022 = vld [vmem:[%s2 + $0x208] sm:$0xf]
        %v3023 = vld [vmem:[%s2 + $0x20c] sm:$0xf]
        %v3024 = vld [vmem:[%s2 + $0x210] sm:$0xf]
        %v3025 = vld [vmem:[%s2 + $0x214] sm:$0xf]
        %v3026 = vld [vmem:[%s2 + $0x218] sm:$0xf]
        %v3027 = vld [vmem:[%s2 + $0x21c] sm:$0xf]
        %v3028 = vld [vmem:[%s2 + $0x220] sm:$0xf]
        %v3029 = vld [vmem:[%s2 + $0x224] sm:$0xf]
        %v3030 = vld [vmem:[%s2 + $0x228] sm:$0xf]
        %v3031 = vld [vmem:[%s2 + $0x22c] sm:$0xf]
        %v3032 = vld [vmem:[%s2 + $0x230] sm:$0xf]
        %v3033 = vld [vmem:[%s2 + $0x234] sm:$0xf]
        %v3034 = vld [vmem:[%s2 + $0x238] sm:$0xf]
        %v3035 = vld [vmem:[%s2 + $0x23c] sm:$0xf]
        %v3180 = vunpack.c.l.b16 %v2892
        %v3181 = vunpack.c.l.b16 %v2893
        %v3182 = vunpack.c.l.b16 %v2894
        %v3183 = vunpack.c.l.b16 %v2895
        %v3184 = vunpack.c.l.b16 %v2896
        %v3185 = vunpack.c.l.b16 %v2897
        %v3186 = vunpack.c.l.b16 %v2898
        %v3187 = vunpack.c.l.b16 %v2899
        %v3188 = vunpack.c.l.b16 %v2900
        %v3189 = vunpack.c.l.b16 %v2901
        %v3190 = vunpack.c.l.b16 %v2902
        %v3191 = vunpack.c.l.b16 %v2903
        %v3192 = vunpack.c.l.b16 %v2904
        %v3193 = vunpack.c.l.b16 %v2905
        %v3194 = vunpack.c.l.b16 %v2906
        %v3195 = vunpack.c.l.b16 %v2907
        %v3196 = vunpack.c.l.b16 %v2908
        %v3197 = vunpack.c.l.b16 %v2909
        %v3198 = vunpack.c.l.b16 %v2910
        %v3199 = vunpack.c.l.b16 %v2911
        %v3200 = vunpack.c.l.b16 %v2912
        %v3201 = vunpack.c.l.b16 %v2913
        %v3202 = vunpack.c.l.b16 %v2914
        %v3203 = vunpack.c.l.b16 %v2915
        %v3204 = vunpack.c.l.b16 %v2916
        %v3205 = vunpack.c.l.b16 %v2917
        %v3206 = vunpack.c.l.b16 %v2918
        %v3207 = vunpack.c.l.b16 %v2919
        %v3208 = vunpack.c.l.b16 %v2920
        %v3209 = vunpack.c.l.b16 %v2921
        %v3210 = vunpack.c.l.b16 %v2922
        %v3211 = vunpack.c.l.b16 %v2923
        %v3212 = vunpack.c.l.b16 %v2924
        %v3213 = vunpack.c.l.b16 %v2925
        %v3214 = vunpack.c.l.b16 %v2926
        %v3215 = vunpack.c.l.b16 %v2927
        %v3216 = vunpack.c.l.b16 %v2928
        %v3217 = vunpack.c.l.b16 %v2929
        %v3218 = vunpack.c.l.b16 %v2930
        %v3219 = vunpack.c.l.b16 %v2931
        %v3220 = vunpack.c.l.b16 %v2932
        %v3221 = vunpack.c.l.b16 %v2933
        %v3222 = vunpack.c.l.b16 %v2934
        %v3223 = vunpack.c.l.b16 %v2935
        %v3224 = vunpack.c.l.b16 %v2936
        %v3225 = vunpack.c.l.b16 %v2937
        %v3226 = vunpack.c.l.b16 %v2938
        %v3227 = vunpack.c.l.b16 %v2939
        %v3228 = vunpack.c.l.b16 %v2940
        %v3229 = vunpack.c.l.b16 %v2941
        %v3230 = vunpack.c.l.b16 %v2942
        %v3231 = vunpack.c.l.b16 %v2943
        %v3232 = vunpack.c.l.b16 %v2944
        %v3233 = vunpack.c.l.b16 %v2945
        %v3234 = vunpack.c.l.b16 %v2946
        %v3235 = vunpack.c.l.b16 %v2947
        %v3236 = vunpack.c.l.b16 %v2948
        %v3237 = vunpack.c.l.b16 %v2949
        %v3238 = vunpack.c.l.b16 %v2950
        %v3239 = vunpack.c.l.b16 %v2951
        %v3240 = vunpack.c.l.b16 %v2952
        %v3241 = vunpack.c.l.b16 %v2953
        %v3242 = vunpack.c.l.b16 %v2954
        %v3243 = vunpack.c.l.b16 %v2955
        %v3244 = vunpack.c.l.b16 %v2956
        %v3245 = vunpack.c.l.b16 %v2957
        %v3246 = vunpack.c.l.b16 %v2958
        %v3247 = vunpack.c.l.b16 %v2959
        %v3248 = vunpack.c.l.b16 %v2960
        %v3249 = vunpack.c.l.b16 %v2961
        %v3250 = vunpack.c.l.b16 %v2962
        %v3251 = vunpack.c.l.b16 %v2963
        %v3252 = vunpack.c.l.b16 %v2964
        %v3253 = vunpack.c.l.b16 %v2965
        %v3254 = vunpack.c.l.b16 %v2966
        %v3255 = vunpack.c.l.b16 %v2967
        %v3256 = vunpack.c.l.b16 %v2968
        %v3257 = vunpack.c.l.b16 %v2969
        %v3258 = vunpack.c.l.b16 %v2970
        %v3259 = vunpack.c.l.b16 %v2971
        %v3260 = vunpack.c.l.b16 %v2972
        %v3261 = vunpack.c.l.b16 %v2973
        %v3262 = vunpack.c.l.b16 %v2974
        %v3263 = vunpack.c.l.b16 %v2975
        %v3264 = vunpack.c.l.b16 %v2976
        %v3265 = vunpack.c.l.b16 %v2977
        %v3266 = vunpack.c.l.b16 %v2978
        %v3267 = vunpack.c.l.b16 %v2979
        %v3268 = vunpack.c.l.b16 %v2980
        %v3269 = vunpack.c.l.b16 %v2981
        %v3270 = vunpack.c.l.b16 %v2982
        %v3271 = vunpack.c.l.b16 %v2983
        %v3272 = vunpack.c.l.b16 %v2984
        %v3273 = vunpack.c.l.b16 %v2985
        %v3274 = vunpack.c.l.b16 %v2986
        %v3275 = vunpack.c.l.b16 %v2987
        %v3276 = vunpack.c.l.b16 %v2988
        %v3277 = vunpack.c.l.b16 %v2989
        %v3278 = vunpack.c.l.b16 %v2990
        %v3279 = vunpack.c.l.b16 %v2991
        %v3280 = vunpack.c.l.b16 %v2992
        %v3281 = vunpack.c.l.b16 %v2993
        %v3282 = vunpack.c.l.b16 %v2994
        %v3283 = vunpack.c.l.b16 %v2995
        %v3284 = vunpack.c.l.b16 %v2996
        %v3285 = vunpack.c.l.b16 %v2997
        %v3286 = vunpack.c.l.b16 %v2998
        %v3287 = vunpack.c.l.b16 %v2999
        %v3288 = vunpack.c.l.b16 %v3000
        %v3289 = vunpack.c.l.b16 %v3001
        %v3290 = vunpack.c.l.b16 %v3002
        %v3291 = vunpack.c.l.b16 %v3003
        %v3292 = vunpack.c.l.b16 %v3004
        %v3293 = vunpack.c.l.b16 %v3005
        %v3294 = vunpack.c.l.b16 %v3006
        %v3295 = vunpack.c.l.b16 %v3007
        %v3296 = vunpack.c.l.b16 %v3008
        %v3297 = vunpack.c.l.b16 %v3009
        %v3298 = vunpack.c.l.b16 %v3010
        %v3299 = vunpack.c.l.b16 %v3011
        %v3300 = vunpack.c.l.b16 %v3012
        %v3301 = vunpack.c.l.b16 %v3013
        %v3302 = vunpack.c.l.b16 %v3014
        %v3303 = vunpack.c.l.b16 %v3015
        %v3304 = vunpack.c.l.b16 %v3016
        %v3305 = vunpack.c.l.b16 %v3017
        %v3306 = vunpack.c.l.b16 %v3018
        %v3307 = vunpack.c.l.b16 %v3019
        %v3308 = vunpack.c.l.b16 %v3020
        %v3309 = vunpack.c.l.b16 %v3021
        %v3310 = vunpack.c.l.b16 %v3022
        %v3311 = vunpack.c.l.b16 %v3023
        %v3312 = vunpack.c.l.b16 %v3024
        %v3313 = vunpack.c.l.b16 %v3025
        %v3314 = vunpack.c.l.b16 %v3026
        %v3315 = vunpack.c.l.b16 %v3027
        %v3316 = vunpack.c.l.b16 %v3028
        %v3317 = vunpack.c.l.b16 %v3029
        %v3318 = vunpack.c.l.b16 %v3030
        %v3319 = vunpack.c.l.b16 %v3031
        %v3320 = vunpack.c.l.b16 %v3032
        %v3321 = vunpack.c.l.b16 %v3033
        %v3322 = vunpack.c.l.b16 %v3034
        %v3323 = vunpack.c.l.b16 %v3035
        %v3324 = vpack.c.b16 %v3181, %v3180
        %v3325 = vpack.c.b16 %v3183, %v3182
        %v3326 = vpack.c.b16 %v3185, %v3184
        %v3327 = vpack.c.b16 %v3187, %v3186
        %v3328 = vpack.c.b16 %v3189, %v3188
        %v3329 = vpack.c.b16 %v3191, %v3190
        %v3330 = vpack.c.b16 %v3193, %v3192
        %v3331 = vpack.c.b16 %v3195, %v3194
        %v3332 = vpack.c.b16 %v3197, %v3196
        %v3333 = vpack.c.b16 %v3199, %v3198
        %v3334 = vpack.c.b16 %v3201, %v3200
        %v3335 = vpack.c.b16 %v3203, %v3202
        %v3336 = vpack.c.b16 %v3205, %v3204
        %v3337 = vpack.c.b16 %v3207, %v3206
        %v3338 = vpack.c.b16 %v3209, %v3208
        %v3339 = vpack.c.b16 %v3211, %v3210
        %v3340 = vpack.c.b16 %v3213, %v3212
        %v3341 = vpack.c.b16 %v3215, %v3214
        %v3342 = vpack.c.b16 %v3217, %v3216
        %v3343 = vpack.c.b16 %v3219, %v3218
        %v3344 = vpack.c.b16 %v3221, %v3220
        %v3345 = vpack.c.b16 %v3223, %v3222
        %v3346 = vpack.c.b16 %v3225, %v3224
        %v3347 = vpack.c.b16 %v3227, %v3226
        %v3348 = vpack.c.b16 %v3229, %v3228
        %v3349 = vpack.c.b16 %v3231, %v3230
        %v3350 = vpack.c.b16 %v3233, %v3232
        %v3351 = vpack.c.b16 %v3235, %v3234
        %v3352 = vpack.c.b16 %v3237, %v3236
        %v3353 = vpack.c.b16 %v3239, %v3238
        %v3354 = vpack.c.b16 %v3241, %v3240
        %v3355 = vpack.c.b16 %v3243, %v3242
        %v3356 = vpack.c.b16 %v3245, %v3244
        %v3357 = vpack.c.b16 %v3247, %v3246
        %v3358 = vpack.c.b16 %v3249, %v3248
        %v3359 = vpack.c.b16 %v3251, %v3250
        %v3360 = vpack.c.b16 %v3253, %v3252
        %v3361 = vpack.c.b16 %v3255, %v3254
        %v3362 = vpack.c.b16 %v3257, %v3256
        %v3363 = vpack.c.b16 %v3259, %v3258
        %v3364 = vpack.c.b16 %v3261, %v3260
        %v3365 = vpack.c.b16 %v3263, %v3262
        %v3366 = vpack.c.b16 %v3265, %v3264
        %v3367 = vpack.c.b16 %v3267, %v3266
        %v3368 = vpack.c.b16 %v3269, %v3268
        %v3369 = vpack.c.b16 %v3271, %v3270
        %v3370 = vpack.c.b16 %v3273, %v3272
        %v3371 = vpack.c.b16 %v3275, %v3274
        %v3372 = vpack.c.b16 %v3277, %v3276
        %v3373 = vpack.c.b16 %v3279, %v3278
        %v3374 = vpack.c.b16 %v3281, %v3280
        %v3375 = vpack.c.b16 %v3283, %v3282
        %v3376 = vpack.c.b16 %v3285, %v3284
        %v3377 = vpack.c.b16 %v3287, %v3286
        %v3378 = vpack.c.b16 %v3289, %v3288
        %v3379 = vpack.c.b16 %v3291, %v3290
        %v3380 = vpack.c.b16 %v3293, %v3292
        %v3381 = vpack.c.b16 %v3295, %v3294
        %v3382 = vpack.c.b16 %v3297, %v3296
        %v3383 = vpack.c.b16 %v3299, %v3298
        %v3384 = vpack.c.b16 %v3301, %v3300
        %v3385 = vpack.c.b16 %v3303, %v3302
        %v3386 = vpack.c.b16 %v3305, %v3304
        %v3387 = vpack.c.b16 %v3307, %v3306
        %v3388 = vpack.c.b16 %v3309, %v3308
        %v3389 = vpack.c.b16 %v3311, %v3310
        %v3390 = vpack.c.b16 %v3313, %v3312
        %v3391 = vpack.c.b16 %v3315, %v3314
        %v3392 = vpack.c.b16 %v3317, %v3316
        %v3393 = vpack.c.b16 %v3319, %v3318
        %v3394 = vpack.c.b16 %v3321, %v3320
        %v3395 = vpack.c.b16 %v3323, %v3322
        %3468 = vmatprep.subr.bf16.mxu0 0
        %3469 = vmatpush1.bf16.msra.mxu0 %v3324
        %3470 = vmatprep.subr.bf16.mxu0 0
        %3471 = vmatpush1.bf16.msra.mxu0 %v3325
        %3472 = vmatprep.subr.bf16.mxu0 0
        %3473 = vmatpush1.bf16.msra.mxu0 %v3326
        %3474 = vmatprep.subr.bf16.mxu0 0
        %3475 = vmatpush1.bf16.msra.mxu0 %v3327
        %3476 = vmatprep.subr.bf16.mxu0 0
        %3477 = vmatpush1.bf16.msra.mxu0 %v3328
        %3478 = vmatprep.subr.bf16.mxu0 0
        %3479 = vmatpush1.bf16.msra.mxu0 %v3329
        %3480 = vmatprep.subr.bf16.mxu0 0
        %3481 = vmatpush1.bf16.msra.mxu0 %v3330
        %3482 = vmatprep.subr.bf16.mxu0 0
        %3483 = vmatpush1.bf16.msra.mxu0 %v3331
        %3484 = vmatprep.subr.bf16.mxu0 0
        %3485 = vmatpush1.bf16.msra.mxu0 %v3332
        %3486 = vmatprep.subr.bf16.mxu0 0
        %3487 = vmatpush1.bf16.msra.mxu0 %v3333
        %3488 = vmatprep.subr.bf16.mxu0 0
        %3489 = vmatpush1.bf16.msra.mxu0 %v3334
        %3490 = vmatprep.subr.bf16.mxu0 0
        %3491 = vmatpush1.bf16.msra.mxu0 %v3335
        %3492 = vmatprep.subr.bf16.mxu0 0
        %3493 = vmatpush1.bf16.msra.mxu0 %v3336
        %3494 = vmatprep.subr.bf16.mxu0 0
        %3495 = vmatpush1.bf16.msra.mxu0 %v3337
        %3496 = vmatprep.subr.bf16.mxu0 0
        %3497 = vmatpush1.bf16.msra.mxu0 %v3338
        %3498 = vmatprep.subr.bf16.mxu0 0
        %3499 = vmatpush1.bf16.msra.mxu0 %v3339
        %3500 = vmatprep.mubr.bf16.mxu0 %v2749
        %3501 = vmatmul.mubr.bf16.gmra.mrb[0].mxu0 %v2748
        %v3502 = vpop.f32.mrb[0].mxu0
        %v3503 = vadd.f32 %v2351, %v3502
        %v3504 = vpop.f32.mrb[0].mxu0
        %v3505 = vpop.f32.mrb[0].mxu0
        %v3506 = vadd.f32 %v2352, %v3505
        %v3507 = vpop.f32.mrb[0].mxu0
        %3508 = vmatprep.mubr.bf16.mxu0 %v2758
        %3509 = vmatmul.mubr.bf16.gmra.mrb[0].mxu0 %v2757
        %v3510 = vpop.f32.mrb[0].mxu0
        %v3511 = vadd.f32 %v2353, %v3510
        %v3512 = vpop.f32.mrb[0].mxu0
        %v3513 = vpop.f32.mrb[0].mxu0
        %v3514 = vadd.f32 %v2354, %v3513
        %v3515 = vpop.f32.mrb[0].mxu0
        %3516 = vmatprep.mubr.bf16.mxu0 %v2767
        %3517 = vmatmul.mubr.bf16.gmra.mrb[0].mxu0 %v2766
        %v3518 = vpop.f32.mrb[0].mxu0
        %v3519 = vadd.f32 %v2355, %v3518
        %v3520 = vpop.f32.mrb[0].mxu0
        %v3521 = vpop.f32.mrb[0].mxu0
        %v3522 = vadd.f32 %v2356, %v3521
        %v3523 = vpop.f32.mrb[0].mxu0
        %3524 = vmatprep.mubr.bf16.mxu0 %v2776
        %3525 = vmatmul.mubr.bf16.gmra.mrb[0].mxu0 %v2775
        %v3526 = vpop.f32.mrb[0].mxu0
        %v3527 = vadd.f32 %v2357, %v3526
        %v3528 = vpop.f32.mrb[0].mxu0
        %v3529 = vpop.f32.mrb[0].mxu0
        %v3530 = vadd.f32 %v2358, %v3529
        %v3531 = vpop.f32.mrb[0].mxu0
        %3532 = vmatprep.mubr.bf16.mxu0 %v2785
        %3533 = vmatmul.mubr.bf16.gmra.mrb[0].mxu0 %v2784
        %v3534 = vpop.f32.mrb[0].mxu0
        %v3535 = vadd.f32 %v2359, %v3534
        %v3536 = vpop.f32.mrb[0].mxu0
        %v3537 = vpop.f32.mrb[0].mxu0
        %v3538 = vadd.f32 %v2360, %v3537
        %v3539 = vpop.f32.mrb[0].mxu0
        %3540 = vmatprep.mubr.bf16.mxu0 %v2794
        %3541 = vmatmul.mubr.bf16.gmra.mrb[0].mxu0 %v2793
        %v3542 = vpop.f32.mrb[0].mxu0
        %v3543 = vadd.f32 %v2361, %v3542
        %v3544 = vpop.f32.mrb[0].mxu0
        %v3545 = vpop.f32.mrb[0].mxu0
        %v3546 = vadd.f32 %v2362, %v3545
        %v3547 = vpop.f32.mrb[0].mxu0
        %3548 = vmatprep.mubr.bf16.mxu0 %v2803
        %3549 = vmatmul.mubr.bf16.gmra.mrb[0].mxu0 %v2802
        %v3550 = vpop.f32.mrb[0].mxu0
        %v3551 = vadd.f32 %v2363, %v3550
        %v3552 = vpop.f32.mrb[0].mxu0
        %v3553 = vpop.f32.mrb[0].mxu0
        %v3554 = vadd.f32 %v2364, %v3553
        %v3555 = vpop.f32.mrb[0].mxu0
        %3556 = vmatprep.mubr.bf16.mxu0 %v2812
        %3557 = vmatmul.mubr.bf16.gmra.mrb[0].mxu0 %v2811
        %v3558 = vpop.f32.mrb[0].mxu0
        %v3559 = vadd.f32 %v2365, %v3558
        %v3560 = vpop.f32.mrb[0].mxu0
        %v3561 = vpop.f32.mrb[0].mxu0
        %v3562 = vadd.f32 %v2366, %v3561
        %v3563 = vpop.f32.mrb[0].mxu0
        %3564 = vmatprep.mubr.bf16.mxu0 %v2821
        %3565 = vmatmul.mubr.bf16.gmra.mrb[0].mxu0 %v2820
        %v3566 = vpop.f32.mrb[0].mxu0
        %v3567 = vadd.f32 %v2367, %v3566
        %v3568 = vpop.f32.mrb[0].mxu0
        %v3569 = vpop.f32.mrb[0].mxu0
        %v3570 = vadd.f32 %v2368, %v3569
        %v3571 = vpop.f32.mrb[0].mxu0
        %3572 = vmatprep.mubr.bf16.mxu0 %v2830
        %3573 = vmatmul.mubr.bf16.gmra.mrb[0].mxu0 %v2829
        %v3574 = vpop.f32.mrb[0].mxu0
        %v3575 = vadd.f32 %v2369, %v3574
        %v3576 = vpop.f32.mrb[0].mxu0
        %v3577 = vpop.f32.mrb[0].mxu0
        %v3578 = vadd.f32 %v2370, %v3577
        %v3579 = vpop.f32.mrb[0].mxu0
        %3580 = vmatprep.mubr.bf16.mxu0 %v2839
        %3581 = vmatmul.mubr.bf16.gmra.mrb[0].mxu0 %v2838
        %v3582 = vpop.f32.mrb[0].mxu0
        %v3583 = vadd.f32 %v2371, %v3582
        %v3584 = vpop.f32.mrb[0].mxu0
        %v3585 = vpop.f32.mrb[0].mxu0
        %v3586 = vadd.f32 %v2372, %v3585
        %v3587 = vpop.f32.mrb[0].mxu0
        %3588 = vmatprep.mubr.bf16.mxu0 %v2848
        %3589 = vmatmul.mubr.bf16.gmra.mrb[0].mxu0 %v2847
        %v3590 = vpop.f32.mrb[0].mxu0
        %v3591 = vadd.f32 %v2373, %v3590
        %v3592 = vpop.f32.mrb[0].mxu0
        %v3593 = vpop.f32.mrb[0].mxu0
        %v3594 = vadd.f32 %v2374, %v3593
        %v3595 = vpop.f32.mrb[0].mxu0
        %3596 = vmatprep.mubr.bf16.mxu0 %v2857
        %3597 = vmatmul.mubr.bf16.gmra.mrb[0].mxu0 %v2856
        %v3598 = vpop.f32.mrb[0].mxu0
        %v3599 = vadd.f32 %v2375, %v3598
        %v3600 = vpop.f32.mrb[0].mxu0
        %v3601 = vpop.f32.mrb[0].mxu0
        %v3602 = vadd.f32 %v2376, %v3601
        %v3603 = vpop.f32.mrb[0].mxu0
        %3604 = vmatprep.mubr.bf16.mxu0 %v2866
        %3605 = vmatmul.mubr.bf16.gmra.mrb[0].mxu0 %v2865
        %v3606 = vpop.f32.mrb[0].mxu0
        %v3607 = vadd.f32 %v2377, %v3606
        %v3608 = vpop.f32.mrb[0].mxu0
        %v3609 = vpop.f32.mrb[0].mxu0
        %v3610 = vadd.f32 %v2378, %v3609
        %v3611 = vpop.f32.mrb[0].mxu0
        %3612 = vmatprep.mubr.bf16.mxu0 %v2875
        %3613 = vmatmul.mubr.bf16.gmra.mrb[0].mxu0 %v2874
        %v3614 = vpop.f32.mrb[0].mxu0
        %v3615 = vadd.f32 %v2379, %v3614
        %v3616 = vpop.f32.mrb[0].mxu0
        %v3617 = vpop.f32.mrb[0].mxu0
        %v3618 = vadd.f32 %v2380, %v3617
        %v3619 = vpop.f32.mrb[0].mxu0
        %3620 = vmatprep.mubr.bf16.mxu0 %v2884
        %3621 = vmatmul.mubr.bf16.gmra.mrb[0].mxu0 %v2883
        %v3622 = vpop.f32.mrb[0].mxu0
        %v3623 = vadd.f32 %v2381, %v3622
        %v3624 = vpop.f32.mrb[0].mxu0
        %v3625 = vpop.f32.mrb[0].mxu0
        %v3626 = vadd.f32 %v2382, %v3625
        %v3627 = vpop.f32.mrb[0].mxu0
        %3628 = vdwg.mxu0
        %3629 = vmatprep.subr.bf16.mxu0 0
        %3630 = vmatpush1.bf16.msra.mxu0 %v3340
        %3631 = vmatprep.subr.bf16.mxu0 0
        %3632 = vmatpush1.bf16.msra.mxu0 %v3341
        %3633 = vmatprep.subr.bf16.mxu0 0
        %3634 = vmatpush1.bf16.msra.mxu0 %v3342
        %3635 = vmatprep.subr.bf16.mxu0 0
        %3636 = vmatpush1.bf16.msra.mxu0 %v3343
        %3637 = vmatprep.subr.bf16.mxu0 0
        %3638 = vmatpush1.bf16.msra.mxu0 %v3344
        %3639 = vmatprep.subr.bf16.mxu0 0
        %3640 = vmatpush1.bf16.msra.mxu0 %v3345
        %3641 = vmatprep.subr.bf16.mxu0 0
        %3642 = vmatpush1.bf16.msra.mxu0 %v3346
        %3643 = vmatprep.subr.bf16.mxu0 0
        %3644 = vmatpush1.bf16.msra.mxu0 %v3347
        %3645 = vmatprep.subr.bf16.mxu0 0
        %3646 = vmatpush1.bf16.msra.mxu0 %v3348
        %3647 = vmatprep.subr.bf16.mxu0 0
        %3648 = vmatpush1.bf16.msra.mxu0 %v3349
        %3649 = vmatprep.subr.bf16.mxu0 0
        %3650 = vmatpush1.bf16.msra.mxu0 %v3350
        %3651 = vmatprep.subr.bf16.mxu0 0
        %3652 = vmatpush1.bf16.msra.mxu0 %v3351
        %3653 = vmatprep.subr.bf16.mxu0 0
        %3654 = vmatpush1.bf16.msra.mxu0 %v3352
        %3655 = vmatprep.subr.bf16.mxu0 0
        %3656 = vmatpush1.bf16.msra.mxu0 %v3353
        %3657 = vmatprep.subr.bf16.mxu0 0
        %3658 = vmatpush1.bf16.msra.mxu0 %v3354
        %3659 = vmatprep.subr.bf16.mxu0 0
        %3660 = vmatpush1.bf16.msra.mxu0 %v3355
        %3661 = vmatprep.mubr.bf16.mxu0 %v2751
        %3662 = vmatmul.mubr.bf16.gmra.mrb[0].mxu0 %v2750
        %v3663 = vpop.f32.mrb[0].mxu0
        %v3664 = vadd.f32 %v3503, %v3663
        %v3665 = vpop.f32.mrb[0].mxu0
        %v3666 = vpop.f32.mrb[0].mxu0
        %v3667 = vadd.f32 %v3506, %v3666
        %v3668 = vpop.f32.mrb[0].mxu0
        %3669 = vmatprep.mubr.bf16.mxu0 %v2760
        %3670 = vmatmul.mubr.bf16.gmra.mrb[0].mxu0 %v2759
        %v3671 = vpop.f32.mrb[0].mxu0
        %v3672 = vadd.f32 %v3511, %v3671
        %v3673 = vpop.f32.mrb[0].mxu0
        %v3674 = vpop.f32.mrb[0].mxu0
        %v3675 = vadd.f32 %v3514, %v3674
        %v3676 = vpop.f32.mrb[0].mxu0
        %3677 = vmatprep.mubr.bf16.mxu0 %v2769
        %3678 = vmatmul.mubr.bf16.gmra.mrb[0].mxu0 %v2768
        %v3679 = vpop.f32.mrb[0].mxu0
        %v3680 = vadd.f32 %v3519, %v3679
        %v3681 = vpop.f32.mrb[0].mxu0
        %v3682 = vpop.f32.mrb[0].mxu0
        %v3683 = vadd.f32 %v3522, %v3682
        %v3684 = vpop.f32.mrb[0].mxu0
        %3685 = vmatprep.mubr.bf16.mxu0 %v2778
        %3686 = vmatmul.mubr.bf16.gmra.mrb[0].mxu0 %v2777
        %v3687 = vpop.f32.mrb[0].mxu0
        %v3688 = vadd.f32 %v3527, %v3687
        %v3689 = vpop.f32.mrb[0].mxu0
        %v3690 = vpop.f32.mrb[0].mxu0
        %v3691 = vadd.f32 %v3530, %v3690
        %v3692 = vpop.f32.mrb[0].mxu0
        %3693 = vmatprep.mubr.bf16.mxu0 %v2787
        %3694 = vmatmul.mubr.bf16.gmra.mrb[0].mxu0 %v2786
        %v3695 = vpop.f32.mrb[0].mxu0
        %v3696 = vadd.f32 %v3535, %v3695
        %v3697 = vpop.f32.mrb[0].mxu0
        %v3698 = vpop.f32.mrb[0].mxu0
        %v3699 = vadd.f32 %v3538, %v3698
        %v3700 = vpop.f32.mrb[0].mxu0
        %3701 = vmatprep.mubr.bf16.mxu0 %v2796
        %3702 = vmatmul.mubr.bf16.gmra.mrb[0].mxu0 %v2795
        %v3703 = vpop.f32.mrb[0].mxu0
        %v3704 = vadd.f32 %v3543, %v3703
        %v3705 = vpop.f32.mrb[0].mxu0
        %v3706 = vpop.f32.mrb[0].mxu0
        %v3707 = vadd.f32 %v3546, %v3706
        %v3708 = vpop.f32.mrb[0].mxu0
        %3709 = vmatprep.mubr.bf16.mxu0 %v2805
        %3710 = vmatmul.mubr.bf16.gmra.mrb[0].mxu0 %v2804
        %v3711 = vpop.f32.mrb[0].mxu0
        %v3712 = vadd.f32 %v3551, %v3711
        %v3713 = vpop.f32.mrb[0].mxu0
        %v3714 = vpop.f32.mrb[0].mxu0
        %v3715 = vadd.f32 %v3554, %v3714
        %v3716 = vpop.f32.mrb[0].mxu0
        %3717 = vmatprep.mubr.bf16.mxu0 %v2814
        %3718 = vmatmul.mubr.bf16.gmra.mrb[0].mxu0 %v2813
        %v3719 = vpop.f32.mrb[0].mxu0
        %v3720 = vadd.f32 %v3559, %v3719
        %v3721 = vpop.f32.mrb[0].mxu0
        %v3722 = vpop.f32.mrb[0].mxu0
        %v3723 = vadd.f32 %v3562, %v3722
        %v3724 = vpop.f32.mrb[0].mxu0
        %3725 = vmatprep.mubr.bf16.mxu0 %v2823
        %3726 = vmatmul.mubr.bf16.gmra.mrb[0].mxu0 %v2822
        %v3727 = vpop.f32.mrb[0].mxu0
        %v3728 = vadd.f32 %v3567, %v3727
        %v3729 = vpop.f32.mrb[0].mxu0
        %v3730 = vpop.f32.mrb[0].mxu0
        %v3731 = vadd.f32 %v3570, %v3730
        %v3732 = vpop.f32.mrb[0].mxu0
        %3733 = vmatprep.mubr.bf16.mxu0 %v2832
        %3734 = vmatmul.mubr.bf16.gmra.mrb[0].mxu0 %v2831
        %v3735 = vpop.f32.mrb[0].mxu0
        %v3736 = vadd.f32 %v3575, %v3735
        %v3737 = vpop.f32.mrb[0].mxu0
        %v3738 = vpop.f32.mrb[0].mxu0
        %v3739 = vadd.f32 %v3578, %v3738
        %v3740 = vpop.f32.mrb[0].mxu0
        %3741 = vmatprep.mubr.bf16.mxu0 %v2841
        %3742 = vmatmul.mubr.bf16.gmra.mrb[0].mxu0 %v2840
        %v3743 = vpop.f32.mrb[0].mxu0
        %v3744 = vadd.f32 %v3583, %v3743
        %v3745 = vpop.f32.mrb[0].mxu0
        %v3746 = vpop.f32.mrb[0].mxu0
        %v3747 = vadd.f32 %v3586, %v3746
        %v3748 = vpop.f32.mrb[0].mxu0
        %3749 = vmatprep.mubr.bf16.mxu0 %v2850
        %3750 = vmatmul.mubr.bf16.gmra.mrb[0].mxu0 %v2849
        %v3751 = vpop.f32.mrb[0].mxu0
        %v3752 = vadd.f32 %v3591, %v3751
        %v3753 = vpop.f32.mrb[0].mxu0
        %v3754 = vpop.f32.mrb[0].mxu0
        %v3755 = vadd.f32 %v3594, %v3754
        %v3756 = vpop.f32.mrb[0].mxu0
        %3757 = vmatprep.mubr.bf16.mxu0 %v2859
        %3758 = vmatmul.mubr.bf16.gmra.mrb[0].mxu0 %v2858
        %v3759 = vpop.f32.mrb[0].mxu0
        %v3760 = vadd.f32 %v3599, %v3759
        %v3761 = vpop.f32.mrb[0].mxu0
        %v3762 = vpop.f32.mrb[0].mxu0
        %v3763 = vadd.f32 %v3602, %v3762
        %v3764 = vpop.f32.mrb[0].mxu0
        %3765 = vmatprep.mubr.bf16.mxu0 %v2868
        %3766 = vmatmul.mubr.bf16.gmra.mrb[0].mxu0 %v2867
        %v3767 = vpop.f32.mrb[0].mxu0
        %v3768 = vadd.f32 %v3607, %v3767
        %v3769 = vpop.f32.mrb[0].mxu0
        %v3770 = vpop.f32.mrb[0].mxu0
        %v3771 = vadd.f32 %v3610, %v3770
        %v3772 = vpop.f32.mrb[0].mxu0
        %3773 = vmatprep.mubr.bf16.mxu0 %v2877
        %3774 = vmatmul.mubr.bf16.gmra.mrb[0].mxu0 %v2876
        %v3775 = vpop.f32.mrb[0].mxu0
        %v3776 = vadd.f32 %v3615, %v3775
        %v3777 = vpop.f32.mrb[0].mxu0
        %v3778 = vpop.f32.mrb[0].mxu0
        %v3779 = vadd.f32 %v3618, %v3778
        %v3780 = vpop.f32.mrb[0].mxu0
        %3781 = vmatprep.mubr.bf16.mxu0 %v2886
        %3782 = vmatmul.mubr.bf16.gmra.mrb[0].mxu0 %v2885
        %v3783 = vpop.f32.mrb[0].mxu0
        %v3784 = vadd.f32 %v3623, %v3783
        %v3785 = vpop.f32.mrb[0].mxu0
        %v3786 = vpop.f32.mrb[0].mxu0
        %v3787 = vadd.f32 %v3626, %v3786
        %v3788 = vpop.f32.mrb[0].mxu0
        %3789 = vdwg.mxu0
        %3790 = vmatprep.subr.bf16.mxu0 0
        %3791 = vmatpush1.bf16.msra.mxu0 %v3356
        %3792 = vmatprep.subr.bf16.mxu0 0
        %3793 = vmatpush1.bf16.msra.mxu0 %v3357
        %3794 = vmatprep.subr.bf16.mxu0 0
        %3795 = vmatpush1.bf16.msra.mxu0 %v3358
        %3796 = vmatprep.subr.bf16.mxu0 0
        %3797 = vmatpush1.bf16.msra.mxu0 %v3359
        %3798 = vmatprep.subr.bf16.mxu0 0
        %3799 = vmatpush1.bf16.msra.mxu0 %v3360
        %3800 = vmatprep.subr.bf16.mxu0 0
        %3801 = vmatpush1.bf16.msra.mxu0 %v3361
        %3802 = vmatprep.subr.bf16.mxu0 0
        %3803 = vmatpush1.bf16.msra.mxu0 %v3362
        %3804 = vmatprep.subr.bf16.mxu0 0
        %3805 = vmatpush1.bf16.msra.mxu0 %v3363
        %3806 = vmatprep.subr.bf16.mxu0 0
        %3807 = vmatpush1.bf16.msra.mxu0 %v3364
        %3808 = vmatprep.subr.bf16.mxu0 0
        %3809 = vmatpush1.bf16.msra.mxu0 %v3365
        %3810 = vmatprep.subr.bf16.mxu0 0
        %3811 = vmatpush1.bf16.msra.mxu0 %v3366
        %3812 = vmatprep.subr.bf16.mxu0 0
        %3813 = vmatpush1.bf16.msra.mxu0 %v3367
        %3814 = vmatprep.subr.bf16.mxu0 0
        %3815 = vmatpush1.bf16.msra.mxu0 %v3368
        %3816 = vmatprep.subr.bf16.mxu0 0
        %3817 = vmatpush1.bf16.msra.mxu0 %v3369
        %3818 = vmatprep.subr.bf16.mxu0 0
        %3819 = vmatpush1.bf16.msra.mxu0 %v3370
        %3820 = vmatprep.subr.bf16.mxu0 0
        %3821 = vmatpush1.bf16.msra.mxu0 %v3371
        %3822 = vmatprep.mubr.bf16.mxu0 %v2753
        %3823 = vmatmul.mubr.bf16.gmra.mrb[0].mxu0 %v2752
        %v3824 = vpop.f32.mrb[0].mxu0
        %v3825 = vadd.f32 %v3664, %v3824
        %v3826 = vpop.f32.mrb[0].mxu0
        %v3827 = vpop.f32.mrb[0].mxu0
        %v3828 = vadd.f32 %v3667, %v3827
        %v3829 = vpop.f32.mrb[0].mxu0
        %3830 = vmatprep.mubr.bf16.mxu0 %v2762
        %3831 = vmatmul.mubr.bf16.gmra.mrb[0].mxu0 %v2761
        %v3832 = vpop.f32.mrb[0].mxu0
        %v3833 = vadd.f32 %v3672, %v3832
        %v3834 = vpop.f32.mrb[0].mxu0
        %v3835 = vpop.f32.mrb[0].mxu0
        %v3836 = vadd.f32 %v3675, %v3835
        %v3837 = vpop.f32.mrb[0].mxu0
        %3838 = vmatprep.mubr.bf16.mxu0 %v2771
        %3839 = vmatmul.mubr.bf16.gmra.mrb[0].mxu0 %v2770
        %v3840 = vpop.f32.mrb[0].mxu0
        %v3841 = vadd.f32 %v3680, %v3840
        %v3842 = vpop.f32.mrb[0].mxu0
        %v3843 = vpop.f32.mrb[0].mxu0
        %v3844 = vadd.f32 %v3683, %v3843
        %v3845 = vpop.f32.mrb[0].mxu0
        %3846 = vmatprep.mubr.bf16.mxu0 %v2780
        %3847 = vmatmul.mubr.bf16.gmra.mrb[0].mxu0 %v2779
        %v3848 = vpop.f32.mrb[0].mxu0
        %v3849 = vadd.f32 %v3688, %v3848
        %v3850 = vpop.f32.mrb[0].mxu0
        %v3851 = vpop.f32.mrb[0].mxu0
        %v3852 = vadd.f32 %v3691, %v3851
        %v3853 = vpop.f32.mrb[0].mxu0
        %3854 = vmatprep.mubr.bf16.mxu0 %v2789
        %3855 = vmatmul.mubr.bf16.gmra.mrb[0].mxu0 %v2788
        %v3856 = vpop.f32.mrb[0].mxu0
        %v3857 = vadd.f32 %v3696, %v3856
        %v3858 = vpop.f32.mrb[0].mxu0
        %v3859 = vpop.f32.mrb[0].mxu0
        %v3860 = vadd.f32 %v3699, %v3859
        %v3861 = vpop.f32.mrb[0].mxu0
        %3862 = vmatprep.mubr.bf16.mxu0 %v2798
        %3863 = vmatmul.mubr.bf16.gmra.mrb[0].mxu0 %v2797
        %v3864 = vpop.f32.mrb[0].mxu0
        %v3865 = vadd.f32 %v3704, %v3864
        %v3866 = vpop.f32.mrb[0].mxu0
        %v3867 = vpop.f32.mrb[0].mxu0
        %v3868 = vadd.f32 %v3707, %v3867
        %v3869 = vpop.f32.mrb[0].mxu0
        %3870 = vmatprep.mubr.bf16.mxu0 %v2807
        %3871 = vmatmul.mubr.bf16.gmra.mrb[0].mxu0 %v2806
        %v3872 = vpop.f32.mrb[0].mxu0
        %v3873 = vadd.f32 %v3712, %v3872
        %v3874 = vpop.f32.mrb[0].mxu0
        %v3875 = vpop.f32.mrb[0].mxu0
        %v3876 = vadd.f32 %v3715, %v3875
        %v3877 = vpop.f32.mrb[0].mxu0
        %3878 = vmatprep.mubr.bf16.mxu0 %v2816
        %3879 = vmatmul.mubr.bf16.gmra.mrb[0].mxu0 %v2815
        %v3880 = vpop.f32.mrb[0].mxu0
        %v3881 = vadd.f32 %v3720, %v3880
        %v3882 = vpop.f32.mrb[0].mxu0
        %v3883 = vpop.f32.mrb[0].mxu0
        %v3884 = vadd.f32 %v3723, %v3883
        %v3885 = vpop.f32.mrb[0].mxu0
        %3886 = vmatprep.mubr.bf16.mxu0 %v2825
        %3887 = vmatmul.mubr.bf16.gmra.mrb[0].mxu0 %v2824
        %v3888 = vpop.f32.mrb[0].mxu0
        %v3889 = vadd.f32 %v3728, %v3888
        %v3890 = vpop.f32.mrb[0].mxu0
        %v3891 = vpop.f32.mrb[0].mxu0
        %v3892 = vadd.f32 %v3731, %v3891
        %v3893 = vpop.f32.mrb[0].mxu0
        %3894 = vmatprep.mubr.bf16.mxu0 %v2834
        %3895 = vmatmul.mubr.bf16.gmra.mrb[0].mxu0 %v2833
        %v3896 = vpop.f32.mrb[0].mxu0
        %v3897 = vadd.f32 %v3736, %v3896
        %v3898 = vpop.f32.mrb[0].mxu0
        %v3899 = vpop.f32.mrb[0].mxu0
        %v3900 = vadd.f32 %v3739, %v3899
        %v3901 = vpop.f32.mrb[0].mxu0
        %3902 = vmatprep.mubr.bf16.mxu0 %v2843
        %3903 = vmatmul.mubr.bf16.gmra.mrb[0].mxu0 %v2842
        %v3904 = vpop.f32.mrb[0].mxu0
        %v3905 = vadd.f32 %v3744, %v3904
        %v3906 = vpop.f32.mrb[0].mxu0
        %v3907 = vpop.f32.mrb[0].mxu0
        %v3908 = vadd.f32 %v3747, %v3907
        %v3909 = vpop.f32.mrb[0].mxu0
        %3910 = vmatprep.mubr.bf16.mxu0 %v2852
        %3911 = vmatmul.mubr.bf16.gmra.mrb[0].mxu0 %v2851
        %v3912 = vpop.f32.mrb[0].mxu0
        %v3913 = vadd.f32 %v3752, %v3912
        %v3914 = vpop.f32.mrb[0].mxu0
        %v3915 = vpop.f32.mrb[0].mxu0
        %v3916 = vadd.f32 %v3755, %v3915
        %v3917 = vpop.f32.mrb[0].mxu0
        %3918 = vmatprep.mubr.bf16.mxu0 %v2861
        %3919 = vmatmul.mubr.bf16.gmra.mrb[0].mxu0 %v2860
        %v3920 = vpop.f32.mrb[0].mxu0
        %v3921 = vadd.f32 %v3760, %v3920
        %v3922 = vpop.f32.mrb[0].mxu0
        %v3923 = vpop.f32.mrb[0].mxu0
        %v3924 = vadd.f32 %v3763, %v3923
        %v3925 = vpop.f32.mrb[0].mxu0
        %3926 = vmatprep.mubr.bf16.mxu0 %v2870
        %3927 = vmatmul.mubr.bf16.gmra.mrb[0].mxu0 %v2869
        %v3928 = vpop.f32.mrb[0].mxu0
        %v3929 = vadd.f32 %v3768, %v3928
        %v3930 = vpop.f32.mrb[0].mxu0
        %v3931 = vpop.f32.mrb[0].mxu0
        %v3932 = vadd.f32 %v3771, %v3931
        %v3933 = vpop.f32.mrb[0].mxu0
        %3934 = vmatprep.mubr.bf16.mxu0 %v2879
        %3935 = vmatmul.mubr.bf16.gmra.mrb[0].mxu0 %v2878
        %v3936 = vpop.f32.mrb[0].mxu0
        %v3937 = vadd.f32 %v3776, %v3936
        %v3938 = vpop.f32.mrb[0].mxu0
        %v3939 = vpop.f32.mrb[0].mxu0
        %v3940 = vadd.f32 %v3779, %v3939
        %v3941 = vpop.f32.mrb[0].mxu0
        %3942 = vmatprep.mubr.bf16.mxu0 %v2888
        %3943 = vmatmul.mubr.bf16.gmra.mrb[0].mxu0 %v2887
        %v3944 = vpop.f32.mrb[0].mxu0
        %v3945 = vadd.f32 %v3784, %v3944
        %v3946 = vpop.f32.mrb[0].mxu0
        %v3947 = vpop.f32.mrb[0].mxu0
        %v3948 = vadd.f32 %v3787, %v3947
        %v3949 = vpop.f32.mrb[0].mxu0
        %3950 = vdwg.mxu0
        %3951 = vmatprep.subr.bf16.mxu0 0
        %3952 = vmatpush1.bf16.msra.mxu0 %v3372
        %3953 = vmatprep.subr.bf16.mxu0 0
        %3954 = vmatpush1.bf16.msra.mxu0 %v3373
        %3955 = vmatprep.subr.bf16.mxu0 0
        %3956 = vmatpush1.bf16.msra.mxu0 %v3374
        %3957 = vmatprep.subr.bf16.mxu0 0
        %3958 = vmatpush1.bf16.msra.mxu0 %v3375
        %3959 = vmatprep.subr.bf16.mxu0 0
        %3960 = vmatpush1.bf16.msra.mxu0 %v3376
        %3961 = vmatprep.subr.bf16.mxu0 0
        %3962 = vmatpush1.bf16.msra.mxu0 %v3377
        %3963 = vmatprep.subr.bf16.mxu0 0
        %3964 = vmatpush1.bf16.msra.mxu0 %v3378
        %3965 = vmatprep.subr.bf16.mxu0 0
        %3966 = vmatpush1.bf16.msra.mxu0 %v3379
        %3967 = vmatprep.subr.bf16.mxu0 0
        %3968 = vmatpush1.bf16.msra.mxu0 %v3380
        %3969 = vmatprep.subr.bf16.mxu0 0
        %3970 = vmatpush1.bf16.msra.mxu0 %v3381
        %3971 = vmatprep.subr.bf16.mxu0 0
        %3972 = vmatpush1.bf16.msra.mxu0 %v3382
        %3973 = vmatprep.subr.bf16.mxu0 0
        %3974 = vmatpush1.bf16.msra.mxu0 %v3383
        %3975 = vmatprep.subr.bf16.mxu0 0
        %3976 = vmatpush1.bf16.msra.mxu0 %v3384
        %3977 = vmatprep.subr.bf16.mxu0 0
        %3978 = vmatpush1.bf16.msra.mxu0 %v3385
        %3979 = vmatprep.subr.bf16.mxu0 0
        %3980 = vmatpush1.bf16.msra.mxu0 %v3386
        %3981 = vmatprep.subr.bf16.mxu0 0
        %3982 = vmatpush1.bf16.msra.mxu0 %v3387
        %3983 = vmatprep.mubr.bf16.mxu0 %v2755
        %3984 = vmatmul.mubr.bf16.gmra.mrb[0].mxu0 %v2754
        %v3985 = vpop.f32.mrb[0].mxu0
        %v3986 = vadd.f32 %v3825, %v3985
        %v3987 = vpop.f32.mrb[0].mxu0
        %v3988 = vpop.f32.mrb[0].mxu0
        %v3989 = vadd.f32 %v3828, %v3988
        %v3990 = vpop.f32.mrb[0].mxu0
        %3991 = vmatprep.mubr.bf16.mxu0 %v2764
        %3992 = vmatmul.mubr.bf16.gmra.mrb[0].mxu0 %v2763
        %v3993 = vpop.f32.mrb[0].mxu0
        %v3994 = vadd.f32 %v3833, %v3993
        %v3995 = vpop.f32.mrb[0].mxu0
        %v3996 = vpop.f32.mrb[0].mxu0
        %v3997 = vadd.f32 %v3836, %v3996
        %v3998 = vpop.f32.mrb[0].mxu0
        %3999 = vmatprep.mubr.bf16.mxu0 %v2773
        %4000 = vmatmul.mubr.bf16.gmra.mrb[0].mxu0 %v2772
        %v4001 = vpop.f32.mrb[0].mxu0
        %v4002 = vadd.f32 %v3841, %v4001
        %v4003 = vpop.f32.mrb[0].mxu0
        %v4004 = vpop.f32.mrb[0].mxu0
        %v4005 = vadd.f32 %v3844, %v4004
        %v4006 = vpop.f32.mrb[0].mxu0
        %4007 = vmatprep.mubr.bf16.mxu0 %v2782
        %4008 = vmatmul.mubr.bf16.gmra.mrb[0].mxu0 %v2781
        %v4009 = vpop.f32.mrb[0].mxu0
        %v4010 = vadd.f32 %v3849, %v4009
        %v4011 = vpop.f32.mrb[0].mxu0
        %v4012 = vpop.f32.mrb[0].mxu0
        %v4013 = vadd.f32 %v3852, %v4012
        %v4014 = vpop.f32.mrb[0].mxu0
        %4015 = vmatprep.mubr.bf16.mxu0 %v2791
        %4016 = vmatmul.mubr.bf16.gmra.mrb[0].mxu0 %v2790
        %v4017 = vpop.f32.mrb[0].mxu0
        %v4018 = vadd.f32 %v3857, %v4017
        %v4019 = vpop.f32.mrb[0].mxu0
        %v4020 = vpop.f32.mrb[0].mxu0
        %v4021 = vadd.f32 %v3860, %v4020
        %v4022 = vpop.f32.mrb[0].mxu0
        %4023 = vmatprep.mubr.bf16.mxu0 %v2800
        %4024 = vmatmul.mubr.bf16.gmra.mrb[0].mxu0 %v2799
        %v4025 = vpop.f32.mrb[0].mxu0
        %v4026 = vadd.f32 %v3865, %v4025
        %v4027 = vpop.f32.mrb[0].mxu0
        %v4028 = vpop.f32.mrb[0].mxu0
        %v4029 = vadd.f32 %v3868, %v4028
        %v4030 = vpop.f32.mrb[0].mxu0
        %4031 = vmatprep.mubr.bf16.mxu0 %v2809
        %4032 = vmatmul.mubr.bf16.gmra.mrb[0].mxu0 %v2808
        %v4033 = vpop.f32.mrb[0].mxu0
        %v4034 = vadd.f32 %v3873, %v4033
        %v4035 = vpop.f32.mrb[0].mxu0
        %v4036 = vpop.f32.mrb[0].mxu0
        %v4037 = vadd.f32 %v3876, %v4036
        %v4038 = vpop.f32.mrb[0].mxu0
        %4039 = vmatprep.mubr.bf16.mxu0 %v2818
        %4040 = vmatmul.mubr.bf16.gmra.mrb[0].mxu0 %v2817
        %v4041 = vpop.f32.mrb[0].mxu0
        %v4042 = vadd.f32 %v3881, %v4041
        %v4043 = vpop.f32.mrb[0].mxu0
        %v4044 = vpop.f32.mrb[0].mxu0
        %v4045 = vadd.f32 %v3884, %v4044
        %v4046 = vpop.f32.mrb[0].mxu0
        %4047 = vmatprep.mubr.bf16.mxu0 %v2827
        %4048 = vmatmul.mubr.bf16.gmra.mrb[0].mxu0 %v2826
        %v4049 = vpop.f32.mrb[0].mxu0
        %v4050 = vadd.f32 %v3889, %v4049
        %v4051 = vpop.f32.mrb[0].mxu0
        %v4052 = vpop.f32.mrb[0].mxu0
        %v4053 = vadd.f32 %v3892, %v4052
        %v4054 = vpop.f32.mrb[0].mxu0
        %4055 = vmatprep.mubr.bf16.mxu0 %v2836
        %4056 = vmatmul.mubr.bf16.gmra.mrb[0].mxu0 %v2835
        %v4057 = vpop.f32.mrb[0].mxu0
        %v4058 = vadd.f32 %v3897, %v4057
        %v4059 = vpop.f32.mrb[0].mxu0
        %v4060 = vpop.f32.mrb[0].mxu0
        %v4061 = vadd.f32 %v3900, %v4060
        %v4062 = vpop.f32.mrb[0].mxu0
        %4063 = vmatprep.mubr.bf16.mxu0 %v2845
        %4064 = vmatmul.mubr.bf16.gmra.mrb[0].mxu0 %v2844
        %v4065 = vpop.f32.mrb[0].mxu0
        %v4066 = vadd.f32 %v3905, %v4065
        %v4067 = vpop.f32.mrb[0].mxu0
        %v4068 = vpop.f32.mrb[0].mxu0
        %v4069 = vadd.f32 %v3908, %v4068
        %v4070 = vpop.f32.mrb[0].mxu0
        %4071 = vmatprep.mubr.bf16.mxu0 %v2854
        %4072 = vmatmul.mubr.bf16.gmra.mrb[0].mxu0 %v2853
        %v4073 = vpop.f32.mrb[0].mxu0
        %v4074 = vadd.f32 %v3913, %v4073
        %v4075 = vpop.f32.mrb[0].mxu0
        %v4076 = vpop.f32.mrb[0].mxu0
        %v4077 = vadd.f32 %v3916, %v4076
        %v4078 = vpop.f32.mrb[0].mxu0
        %4079 = vmatprep.mubr.bf16.mxu0 %v2863
        %4080 = vmatmul.mubr.bf16.gmra.mrb[0].mxu0 %v2862
        %v4081 = vpop.f32.mrb[0].mxu0
        %v4082 = vadd.f32 %v3921, %v4081
        %v4083 = vpop.f32.mrb[0].mxu0
        %v4084 = vpop.f32.mrb[0].mxu0
        %v4085 = vadd.f32 %v3924, %v4084
        %v4086 = vpop.f32.mrb[0].mxu0
        %4087 = vmatprep.mubr.bf16.mxu0 %v2872
        %4088 = vmatmul.mubr.bf16.gmra.mrb[0].mxu0 %v2871
        %v4089 = vpop.f32.mrb[0].mxu0
        %v4090 = vadd.f32 %v3929, %v4089
        %v4091 = vpop.f32.mrb[0].mxu0
        %v4092 = vpop.f32.mrb[0].mxu0
        %v4093 = vadd.f32 %v3932, %v4092
        %v4094 = vpop.f32.mrb[0].mxu0
        %4095 = vmatprep.mubr.bf16.mxu0 %v2881
        %4096 = vmatmul.mubr.bf16.gmra.mrb[0].mxu0 %v2880
        %v4097 = vpop.f32.mrb[0].mxu0
        %v4098 = vadd.f32 %v3937, %v4097
        %v4099 = vpop.f32.mrb[0].mxu0
        %v4100 = vpop.f32.mrb[0].mxu0
        %v4101 = vadd.f32 %v3940, %v4100
        %v4102 = vpop.f32.mrb[0].mxu0
        %4103 = vmatprep.mubr.bf16.mxu0 %v2890
        %4104 = vmatmul.mubr.bf16.gmra.mrb[0].mxu0 %v2889
        %v4105 = vpop.f32.mrb[0].mxu0
        %v4106 = vadd.f32 %v3945, %v4105
        %v4107 = vpop.f32.mrb[0].mxu0
        %v4108 = vpop.f32.mrb[0].mxu0
        %v4109 = vadd.f32 %v3948, %v4108
        %v4110 = vpop.f32.mrb[0].mxu0
        %4111 = vdwg.mxu0
        %4112 = vmatprep.subr.bf16.mxu0 0
        %4113 = vmatpush1.bf16.msra.mxu0 %v3388
        %4114 = vmatprep.subr.bf16.mxu0 0
        %4115 = vmatpush1.bf16.msra.mxu0 %v3389
        %4116 = vmatprep.subr.bf16.mxu0 0
        %4117 = vmatpush1.bf16.msra.mxu0 %v3390
        %4118 = vmatprep.subr.bf16.mxu0 0
        %4119 = vmatpush1.bf16.msra.mxu0 %v3391
        %4120 = vmatprep.subr.bf16.mxu0 0
        %4121 = vmatpush1.bf16.msra.mxu0 %v3392
        %4122 = vmatprep.subr.bf16.mxu0 0
        %4123 = vmatpush1.bf16.msra.mxu0 %v3393
        %4124 = vmatprep.subr.bf16.mxu0 0
        %4125 = vmatpush1.bf16.msra.mxu0 %v3394
        %4126 = vmatprep.subr.bf16.mxu0 0
        %4127 = vmatpush1.bf16.msra.mxu0 %v3395
        %4128 = vmatprep.subr.bf16.mxu0 0
        %4129 = vmatpush1.bf16.msra.mxu0 0
        %4130 = vmatprep.subr.bf16.mxu0 0
        %4131 = vmatpush1.bf16.msra.mxu0 0
        %4132 = vmatprep.subr.bf16.mxu0 0
        %4133 = vmatpush1.bf16.msra.mxu0 0
        %4134 = vmatprep.subr.bf16.mxu0 0
        %4135 = vmatpush1.bf16.msra.mxu0 0
        %4136 = vmatprep.subr.bf16.mxu0 0
        %4137 = vmatpush1.bf16.msra.mxu0 0
        %4138 = vmatprep.subr.bf16.mxu0 0
        %4139 = vmatpush1.bf16.msra.mxu0 0
        %4140 = vmatprep.subr.bf16.mxu0 0
        %4141 = vmatpush1.bf16.msra.mxu0 0
        %4142 = vmatprep.subr.bf16.mxu0 0
        %4143 = vmatpush1.bf16.msra.mxu0 0
        %4144 = vmatprep.mubr.bf16.mxu0 0
        %4145 = vmatmul.mubr.bf16.gmra.mrb[0].mxu0 %v2756
        %v4146 = vpop.f32.mrb[0].mxu0
        %v4147 = vadd.f32 %v3986, %v4146
        %v4148 = vpop.f32.mrb[0].mxu0
        %v4149 = vpop.f32.mrb[0].mxu0
        %v4150 = vadd.f32 %v3989, %v4149
        %v4151 = vpop.f32.mrb[0].mxu0
        %4152 = vmatprep.mubr.bf16.mxu0 0
        %4153 = vmatmul.mubr.bf16.gmra.mrb[0].mxu0 %v2765
        %v4154 = vpop.f32.mrb[0].mxu0
        %v4155 = vadd.f32 %v3994, %v4154
        %v4156 = vpop.f32.mrb[0].mxu0
        %v4157 = vpop.f32.mrb[0].mxu0
        %v4158 = vadd.f32 %v3997, %v4157
        %v4159 = vpop.f32.mrb[0].mxu0
        %4160 = vmatprep.mubr.bf16.mxu0 0
        %4161 = vmatmul.mubr.bf16.gmra.mrb[0].mxu0 %v2774
        %v4162 = vpop.f32.mrb[0].mxu0
        %v4163 = vadd.f32 %v4002, %v4162
        %v4164 = vpop.f32.mrb[0].mxu0
        %v4165 = vpop.f32.mrb[0].mxu0
        %v4166 = vadd.f32 %v4005, %v4165
        %v4167 = vpop.f32.mrb[0].mxu0
        %4168 = vmatprep.mubr.bf16.mxu0 0
        %4169 = vmatmul.mubr.bf16.gmra.mrb[0].mxu0 %v2783
        %v4170 = vpop.f32.mrb[0].mxu0
        %v4171 = vadd.f32 %v4010, %v4170
        %v4172 = vpop.f32.mrb[0].mxu0
        %v4173 = vpop.f32.mrb[0].mxu0
        %v4174 = vadd.f32 %v4013, %v4173
        %v4175 = vpop.f32.mrb[0].mxu0
        %4176 = vmatprep.mubr.bf16.mxu0 0
        %4177 = vmatmul.mubr.bf16.gmra.mrb[0].mxu0 %v2792
        %v4178 = vpop.f32.mrb[0].mxu0
        %v4179 = vadd.f32 %v4018, %v4178
        %v4180 = vpop.f32.mrb[0].mxu0
        %v4181 = vpop.f32.mrb[0].mxu0
        %v4182 = vadd.f32 %v4021, %v4181
        %v4183 = vpop.f32.mrb[0].mxu0
        %4184 = vmatprep.mubr.bf16.mxu0 0
        %4185 = vmatmul.mubr.bf16.gmra.mrb[0].mxu0 %v2801
        %v4186 = vpop.f32.mrb[0].mxu0
        %v4187 = vadd.f32 %v4026, %v4186
        %v4188 = vpop.f32.mrb[0].mxu0
        %v4189 = vpop.f32.mrb[0].mxu0
        %v4190 = vadd.f32 %v4029, %v4189
        %v4191 = vpop.f32.mrb[0].mxu0
        %4192 = vmatprep.mubr.bf16.mxu0 0
        %4193 = vmatmul.mubr.bf16.gmra.mrb[0].mxu0 %v2810
        %v4194 = vpop.f32.mrb[0].mxu0
        %v4195 = vadd.f32 %v4034, %v4194
        %v4196 = vpop.f32.mrb[0].mxu0
        %v4197 = vpop.f32.mrb[0].mxu0
        %v4198 = vadd.f32 %v4037, %v4197
        %v4199 = vpop.f32.mrb[0].mxu0
        %4200 = vmatprep.mubr.bf16.mxu0 0
        %4201 = vmatmul.mubr.bf16.gmra.mrb[0].mxu0 %v2819
        %v4202 = vpop.f32.mrb[0].mxu0
        %v4203 = vadd.f32 %v4042, %v4202
        %v4204 = vpop.f32.mrb[0].mxu0
        %v4205 = vpop.f32.mrb[0].mxu0
        %v4206 = vadd.f32 %v4045, %v4205
        %v4207 = vpop.f32.mrb[0].mxu0
        %4208 = vmatprep.mubr.bf16.mxu0 0
        %4209 = vmatmul.mubr.bf16.gmra.mrb[0].mxu0 %v2828
        %v4210 = vpop.f32.mrb[0].mxu0
        %v4211 = vadd.f32 %v4050, %v4210
        %v4212 = vpop.f32.mrb[0].mxu0
        %v4213 = vpop.f32.mrb[0].mxu0
        %v4214 = vadd.f32 %v4053, %v4213
        %v4215 = vpop.f32.mrb[0].mxu0
        %4216 = vmatprep.mubr.bf16.mxu0 0
        %4217 = vmatmul.mubr.bf16.gmra.mrb[0].mxu0 %v2837
        %v4218 = vpop.f32.mrb[0].mxu0
        %v4219 = vadd.f32 %v4058, %v4218
        %v4220 = vpop.f32.mrb[0].mxu0
        %v4221 = vpop.f32.mrb[0].mxu0
        %v4222 = vadd.f32 %v4061, %v4221
        %v4223 = vpop.f32.mrb[0].mxu0
        %4224 = vmatprep.mubr.bf16.mxu0 0
        %4225 = vmatmul.mubr.bf16.gmra.mrb[0].mxu0 %v2846
        %v4226 = vpop.f32.mrb[0].mxu0
        %v4227 = vadd.f32 %v4066, %v4226
        %v4228 = vpop.f32.mrb[0].mxu0
        %v4229 = vpop.f32.mrb[0].mxu0
        %v4230 = vadd.f32 %v4069, %v4229
        %v4231 = vpop.f32.mrb[0].mxu0
        %4232 = vmatprep.mubr.bf16.mxu0 0
        %4233 = vmatmul.mubr.bf16.gmra.mrb[0].mxu0 %v2855
        %v4234 = vpop.f32.mrb[0].mxu0
        %v4235 = vadd.f32 %v4074, %v4234
        %v4236 = vpop.f32.mrb[0].mxu0
        %v4237 = vpop.f32.mrb[0].mxu0
        %v4238 = vadd.f32 %v4077, %v4237
        %v4239 = vpop.f32.mrb[0].mxu0
        %4240 = vmatprep.mubr.bf16.mxu0 0
        %4241 = vmatmul.mubr.bf16.gmra.mrb[0].mxu0 %v2864
        %v4242 = vpop.f32.mrb[0].mxu0
        %v4243 = vadd.f32 %v4082, %v4242
        %v4244 = vpop.f32.mrb[0].mxu0
        %v4245 = vpop.f32.mrb[0].mxu0
        %v4246 = vadd.f32 %v4085, %v4245
        %v4247 = vpop.f32.mrb[0].mxu0
        %4248 = vmatprep.mubr.bf16.mxu0 0
        %4249 = vmatmul.mubr.bf16.gmra.mrb[0].mxu0 %v2873
        %v4250 = vpop.f32.mrb[0].mxu0
        %v4251 = vadd.f32 %v4090, %v4250
        %v4252 = vpop.f32.mrb[0].mxu0
        %v4253 = vpop.f32.mrb[0].mxu0
        %v4254 = vadd.f32 %v4093, %v4253
        %v4255 = vpop.f32.mrb[0].mxu0
        %4256 = vmatprep.mubr.bf16.mxu0 0
        %4257 = vmatmul.mubr.bf16.gmra.mrb[0].mxu0 %v2882
        %v4258 = vpop.f32.mrb[0].mxu0
        %v4259 = vadd.f32 %v4098, %v4258
        %v4260 = vpop.f32.mrb[0].mxu0
        %v4261 = vpop.f32.mrb[0].mxu0
        %v4262 = vadd.f32 %v4101, %v4261
        %v4263 = vpop.f32.mrb[0].mxu0
        %4264 = vmatprep.mubr.bf16.mxu0 0
        %4265 = vmatmul.mubr.bf16.gmra.mrb[0].mxu0 %v2891
        %v4266 = vpop.f32.mrb[0].mxu0
        %v4267 = vadd.f32 %v4106, %v4266
        %v4268 = vpop.f32.mrb[0].mxu0
        %v4269 = vpop.f32.mrb[0].mxu0
        %v4270 = vadd.f32 %v4109, %v4269
        %v4271 = vpop.f32.mrb[0].mxu0
        %4272 = vdwg.mxu0
        %v4273 = vmax.f32 %v4147, 0.0
        %v4274 = vmax.f32 %v4150, 0.0
        %v4275 = vmax.f32 %v4155, 0.0
        %v4276 = vmax.f32 %v4158, 0.0
        %v4277 = vmax.f32 %v4163, 0.0
        %v4278 = vmax.f32 %v4166, 0.0
        %v4279 = vmax.f32 %v4171, 0.0
        %v4280 = vmax.f32 %v4174, 0.0
        %v4281 = vmax.f32 %v4179, 0.0
        %v4282 = vmax.f32 %v4182, 0.0
        %v4283 = vmax.f32 %v4187, 0.0
        %v4284 = vmax.f32 %v4190, 0.0
        %v4285 = vmax.f32 %v4195, 0.0
        %v4286 = vmax.f32 %v4198, 0.0
        %v4287 = vmax.f32 %v4203, 0.0
        %v4288 = vmax.f32 %v4206, 0.0
        %v4289 = vmax.f32 %v4211, 0.0
        %v4290 = vmax.f32 %v4214, 0.0
        %v4291 = vmax.f32 %v4219, 0.0
        %v4292 = vmax.f32 %v4222, 0.0
        %v4293 = vmax.f32 %v4227, 0.0
        %v4294 = vmax.f32 %v4230, 0.0
        %v4295 = vmax.f32 %v4235, 0.0
        %v4296 = vmax.f32 %v4238, 0.0
        %v4297 = vmax.f32 %v4243, 0.0
        %v4298 = vmax.f32 %v4246, 0.0
        %v4299 = vmax.f32 %v4251, 0.0
        %v4300 = vmax.f32 %v4254, 0.0
        %v4301 = vmax.f32 %v4259, 0.0
        %v4302 = vmax.f32 %v4262, 0.0
        %v4303 = vmax.f32 %v4267, 0.0
        %v4304 = vmax.f32 %v4270, 0.0
        %4305 = vst [vmem:[%s244] sm:$0xff] %v4273
        %4306 = vst [vmem:[%s244 + $0x8] sm:$0xff] %v4274
        %4307 = vst [vmem:[%s244 + $0x10] sm:$0xff] %v4275
        %4308 = vst [vmem:[%s244 + $0x18] sm:$0xff] %v4276
        %4309 = vst [vmem:[%s244 + $0x20] sm:$0xff] %v4277
        %4310 = vst [vmem:[%s244 + $0x28] sm:$0xff] %v4278
        %4311 = vst [vmem:[%s244 + $0x30] sm:$0xff] %v4279
        %4312 = vst [vmem:[%s244 + $0x38] sm:$0xff] %v4280
        %4313 = vst [vmem:[%s244 + $0x40] sm:$0xff] %v4281
        %4314 = vst [vmem:[%s244 + $0x48] sm:$0xff] %v4282
        %4315 = vst [vmem:[%s244 + $0x50] sm:$0xff] %v4283
        %4316 = vst [vmem:[%s244 + $0x58] sm:$0xff] %v4284
        %4317 = vst [vmem:[%s244 + $0x60] sm:$0xff] %v4285
        %4318 = vst [vmem:[%s244 + $0x68] sm:$0xff] %v4286
        %4319 = vst [vmem:[%s244 + $0x70] sm:$0xff] %v4287
        %4320 = vst [vmem:[%s244 + $0x78] sm:$0xff] %v4288
        %4321 = vst [vmem:[%s244 + $0x80] sm:$0xff] %v4289
        %4322 = vst [vmem:[%s244 + $0x88] sm:$0xff] %v4290
        %4323 = vst [vmem:[%s244 + $0x90] sm:$0xff] %v4291
        %4324 = vst [vmem:[%s244 + $0x98] sm:$0xff] %v4292
        %4325 = vst [vmem:[%s244 + $0xa0] sm:$0xff] %v4293
        %4326 = vst [vmem:[%s244 + $0xa8] sm:$0xff] %v4294
        %4327 = vst [vmem:[%s244 + $0xb0] sm:$0xff] %v4295
        %4328 = vst [vmem:[%s244 + $0xb8] sm:$0xff] %v4296
        %4329 = vst [vmem:[%s244 + $0xc0] sm:$0xff] %v4297
        %4330 = vst [vmem:[%s244 + $0xc8] sm:$0xff] %v4298
        %4331 = vst [vmem:[%s244 + $0xd0] sm:$0xff] %v4299
        %4332 = vst [vmem:[%s244 + $0xd8] sm:$0xff] %v4300
        %4333 = vst [vmem:[%s244 + $0xe0] sm:$0xff] %v4301
        %4334 = vst [vmem:[%s244 + $0xe8] sm:$0xff] %v4302
        %4335 = vst [vmem:[%s244 + $0xf0] sm:$0xff] %v4303
        %4336 = vst [vmem:[%s244 + $0xf8] sm:$0xff] %v4304
        %s4337 = sand.u32 %s159, 1
        %s4338 = scalar_lea.sflag [#allocation4], %s4337
        %s4339 = sand.u32 %s159, 1
        %s4340 = smul.addr %s4339, 256
        %s4341 = scalar_lea.vmem [#allocation3], %s4340
        // Predicated region
        $region45: #{tpu_custom_call.1} parent=43 // pred_check
          %p4342 = pneg %p169
        $region46: #{tpu_custom_call.1} parent=43 // pred_check_branch
          %4344 = sbr.rel (%p4342) target = $region48
        $region47: #{tpu_custom_call.1} parent=43 // pred_region
          %s4346 = ssub.s32 4096, 4096
          %4347 = vsyncadd %s4338, %s4346
          %s4348 = smul.addr %s20, 32
          %s4349 = smul.addr %s4348, 128
          %s4350 = scalar_lea.hbm %s6, %s4349
          %s4351 = sshll.u32 %s4341, 4
          %s4352 = int_to_ptr.vmem [resolvable:$true] %s4351
          %4357 = dma.vmem_to_hbm [thread:$0]  %s4352, 4096, %s4350, %s4338, 128, 128, 8
        $region48: #{tpu_custom_call.1} parent=43 // pred_fallthru
          _
      $region44: #{tpu_custom_call.1} parent=5 // pred_fallthru
        _
      %p4358 = scmp.le.s32.totalorder 2, %s15
      // Predicated region
      $region49: #{tpu_custom_call.1} parent=5 // pred_check
        %p4359 = pneg %p4358
      $region50: #{tpu_custom_call.1} parent=5 // pred_check_branch
        %4361 = sbr.rel (%p4359) target = $region52
      $region51: #{tpu_custom_call.1} parent=5 // pred_region
        %s4362 = ssub.s32 %s15, 2
        // Predicated region
        $region53: #{tpu_custom_call.1} parent=51 // pred_check
          %p4363 = pneg %p175
        $region54: #{tpu_custom_call.1} parent=51 // pred_check_branch
          %4365 = sbr.rel (%p4363) target = $region56
        $region55: #{tpu_custom_call.1} parent=51 // pred_region
          %s4366 = sand.u32 %s160, 1
          %s4367 = scalar_lea.sflag [#allocation4], %s4366
          %s4368 = sand.u32 %s160, 1
          %s4369 = smul.addr %s4368, 256
          %s4370 = scalar_lea.vmem [#allocation3], %s4369
          %4371 = dma.done %s4367, 4096
        $region56: #{tpu_custom_call.1} parent=51 // pred_fallthru
          _
      $region52: #{tpu_custom_call.1} parent=5 // pred_fallthru
        _
    $region6: #{tpu_custom_call.1} parent=1 // loop_footer
      %s19 = sadd.s32 1, %s15
    $region7: #{tpu_custom_call.1} parent=1 // loop_footer_branch
      %14 = sbr.rel target = $region3
    $region8: #{tpu_custom_call.1} parent=1 // loop_exit
      _
    %4372 = vsyncpa [#allocation4], 1
    %s4373 = scalar_lea.sflag [#allocation4], 1
    %4374 = vsyncpa %s4373, 1

</llo_original>
